<compile_context>
chip_gen: v6e
topology: v6e:2x2x1
jax: 0.10.0
libtpu: 0.0.40
codegen_flags: <defaults>
</compile_context>

<pallas_src>
import functools

import jax
import jax.numpy as jnp
from jax import lax
from jax.experimental import pallas as pl
from jax.experimental.pallas import tpu as pltpu

DIM_H = 256    # Lex3d.dim_in == dim_h
DIM_TRI = 128  # Lex3d.dim_tri


# ------------------------------ helpers -------------------------------------
def _elu(x):
    return jnp.where(x > 0, x, jnp.exp(jnp.minimum(x, 0.0)) - 1.0)


def _leaky_relu(x, slope=0.01):
    return jnp.where(x >= 0, x, slope * x)


def _round_up(v, m):
    return ((v + m - 1) // m) * m


# ------------------------------ TransferBlock kernels -----------------------
def _transfer_kernel(x_ref, w1_ref, w2_ref, o_ref):
    x = x_ref[...]
    h = jnp.dot(x.astype(jnp.bfloat16), w1_ref[...], preferred_element_type=jnp.float32)
    h = _elu(h)
    mu = jnp.mean(h, axis=-1, keepdims=True)
    var = jnp.mean(jnp.square(h - mu), axis=-1, keepdims=True)
    h = (h - mu) * lax.rsqrt(var + 1e-5)        # F.layer_norm, no affine
    h = jnp.dot(h.astype(jnp.bfloat16), w2_ref[...], preferred_element_type=jnp.float32)
    o_ref[...] = _elu(h + x)


def _transfer_exit_kernel(x_ref, w1_ref, w2_ref, wexit_ref, o_ref):
    # Second TransferBlock fused with lin_exit (bias=False).
    x = x_ref[...]
    h = jnp.dot(x.astype(jnp.bfloat16), w1_ref[...], preferred_element_type=jnp.float32)
    h = _elu(h)
    mu = jnp.mean(h, axis=-1, keepdims=True)
    var = jnp.mean(jnp.square(h - mu), axis=-1, keepdims=True)
    h = (h - mu) * lax.rsqrt(var + 1e-5)
    h = jnp.dot(h.astype(jnp.bfloat16), w2_ref[...], preferred_element_type=jnp.float32)
    y = _elu(h + x)
    o_ref[...] = jnp.dot(y.astype(jnp.bfloat16), wexit_ref[...],
                         preferred_element_type=jnp.float32)


def transfer_block(x, w1, w2, w_exit=None, block_rows=None):
    n, d = x.shape
    bm = block_rows if block_rows is not None else min(n, 256)
    row_spec = pl.BlockSpec((bm, d), lambda i: (i, 0))
    w_spec = pl.BlockSpec((d, d), lambda i: (0, 0))
    if w_exit is None:
        kernel, ops, in_specs = _transfer_kernel, (x, w1, w2), [row_spec, w_spec, w_spec]
    else:
        kernel, ops, in_specs = (_transfer_exit_kernel, (x, w1, w2, w_exit),
                                 [row_spec, w_spec, w_spec, w_spec])
    return pl.pallas_call(
        kernel,
        out_shape=jax.ShapeDtypeStruct((n, d), jnp.float32),
        grid=(pl.cdiv(n, bm),),
        in_specs=in_specs,
        out_specs=row_spec,
        compiler_params=pltpu.CompilerParams(
            dimension_semantics=("parallel",),          # 2 TCs on v7x
            vmem_limit_bytes=32 * 1024 * 1024),
    )(*ops)


# ------------------------------ fused TriangularAttention kernel ------------
def _tri_fused_kernel(x_ref, wcat_ref, bcat_ref, we_ref, be_ref, wl_ref, att_ref,
                      w2_ref, cbias_ref, idxi_ref, idxj_ref, idxk_ref, idxt_ref,
                      eattr_ref, ew_ref, o_ref,
                      proj_sc, m_sc, l_sc, s_sc, acc_sc):
    """Fused TriangularAttention + Edge3dConv over one tile of hyperedges.

    Grid: (num_e_tiles,), 'arbitrary'.  Online segment-softmax state in scratch:
      proj_sc : [N, 4*DIM_TRI]  x @ [Wi|Wj|Wk|Wr] (+ biases), computed on tile 0
      m_sc    : [1, N] running per-target-node max of attention logits
      l_sc    : [1, N] running sum exp(alpha - m)
      s_sc    : [1, N] running sum exp(alpha - m) * edge_weight
      acc_sc  : [N, DIM_H] running sum exp(alpha - m) * edge_weight * lin2(xijk)
    Final (algebraically equal to softmax + edge-weight renorm + scatter-add):
      agg = acc / (s + 1e-5 * (l + 1e-16));   out = elu(x + agg + conv_bias)
    Padded edges use index == N -> all-zero one-hot rows -> inert.
    """
    t = pl.program_id(0)
    n = x_ref.shape[0]
    te = idxt_ref.shape[0]
    dt = DIM_TRI

    @pl.when(t == 0)
    def _init():
        xb = x_ref[...].astype(jnp.bfloat16)
        proj_sc[...] = (jnp.dot(xb, wcat_ref[...], preferred_element_type=jnp.float32)
                        + bcat_ref[...])
        m_sc[...] = jnp.full_like(m_sc, -1e30)
        l_sc[...] = jnp.zeros_like(l_sc)
        s_sc[...] = jnp.zeros_like(s_sc)
        acc_sc[...] = jnp.zeros_like(acc_sc)

    # One-hot gather / scatter matrices built from the index tile.
    # TODO(synk): for very large N, switch these one-hot MXU gathers to
    # pl.Element / scalar-prefetch row gathers and tile the node axis as well.
    lanes = lax.broadcasted_iota(jnp.int32, (te, n), 1)
    oh_i = (lanes == idxi_ref[...]).astype(jnp.bfloat16)
    oh_j = (lanes == idxj_ref[...]).astype(jnp.bfloat16)
    oh_k = (lanes == idxk_ref[...]).astype(jnp.bfloat16)
    oh_t_b = (lanes == idxt_ref[...])
    oh_t = oh_t_b.astype(jnp.float32)

    proj = proj_sc[...].astype(jnp.bfloat16)                         # [n, 4*dt]
    xi = jnp.dot(oh_i, proj[:, 0 * dt:1 * dt], preferred_element_type=jnp.float32)
    xj = jnp.dot(oh_j, proj[:, 1 * dt:2 * dt], preferred_element_type=jnp.float32)
    xk = jnp.dot(oh_k, proj[:, 2 * dt:3 * dt], preferred_element_type=jnp.float32)
    xr = jnp.dot(oh_t_b.astype(jnp.bfloat16), proj[:, 3 * dt:4 * dt],
                 preferred_element_type=jnp.float32)                 # lin1_r(x)[tgt]
    eijk = (jnp.dot(eattr_ref[...].astype(jnp.bfloat16), we_ref[...],
                    preferred_element_type=jnp.float32) + be_ref[...])
    xijk = _elu(xi + xj + xk + eijk)                                 # [te, dt]

    # Attention logits (Edge3dConv.message).
    x_ji = _leaky_relu(
        jnp.dot(xijk.astype(jnp.bfloat16), wl_ref[...],
                preferred_element_type=jnp.float32) + xr)
    alpha = _leaky_relu(jnp.sum(x_ji * att_ref[...], axis=-1, keepdims=True))  # [te,1]

    # Online segment softmax over edges sharing a target node.
    masked = jnp.where(oh_t_b, alpha, -1e30)                         # [te, n]
    tile_max = jnp.max(masked, axis=0, keepdims=True)                # [1, n] (XLU)
    m_new = jnp.maximum(m_sc[...], tile_max)
    scale = jnp.exp(m_sc[...] - m_new)                               # [1, n]

    edge_m = lax.dot_general(oh_t, m_new, (((1,), (1,)), ((), ())),
                             preferred_element_type=jnp.float32)     # [te,1] = m_new[tgt]
    p = jnp.exp(alpha - edge_m)                                      # [te,1]
    pw = p * ew_ref[...]                                             # [te,1]

    l_sc[...] = l_sc[...] * scale + lax.dot_general(
        p, oh_t, (((0,), (0,)), ((), ())), preferred_element_type=jnp.float32)
    s_sc[...] = s_sc[...] * scale + lax.dot_general(
        pw, oh_t, (((0,), (0,)), ((), ())), preferred_element_type=jnp.float32)

    # Row -> column conversion via the MXU (avoids lane<->sublane transposes).
    eye = (lax.broadcasted_iota(jnp.int32, (n, n), 0)
           == lax.broadcasted_iota(jnp.int32, (n, n), 1)).astype(jnp.float32)
    scale_col = lax.dot_general(eye, scale, (((1,), (1,)), ((), ())),
                                preferred_element_type=jnp.float32)  # [n,1]

    msg = jnp.dot(xijk.astype(jnp.bfloat16), w2_ref[...],
                  preferred_element_type=jnp.float32)                # [te, DIM_H]
    contrib = (msg * pw).astype(jnp.bfloat16)
    acc_sc[...] = acc_sc[...] * scale_col + lax.dot_general(
        oh_t_b.astype(jnp.bfloat16), contrib, (((0,), (0,)), ((), ())),
        preferred_element_type=jnp.float32)                          # [n, DIM_H]
    m_sc[...] = m_new

    @pl.when(t == pl.num_programs(0) - 1)
    def _finalize():
        denom = s_sc[...] + 1e-5 * (l_sc[...] + 1e-16)               # [1, n]
        denom_col = lax.dot_general(eye, denom, (((1,), (1,)), ((), ())),
                                    preferred_element_type=jnp.float32)
        agg = acc_sc[...] * pl.reciprocal(denom_col, approx=True)
        o_ref[...] = _elu(x_ref[...] + agg + cbias_ref[...])


def tri_attention(x, he_index, he_attr, he_weight, kp, update_vertex, tile_e):
    n, dh = x.shape
    e = he_index.shape[1]
    de = he_attr.shape[1]

    tile_e = min(_round_up(max(tile_e, 8), 8), _round_up(e, 8))
    e_pad = _round_up(e, tile_e)
    pad = e_pad - e
    nt = e_pad // tile_e

    idx = he_index.astype(jnp.int32)

    def pad_idx(v):  # padded edges point at node N -> all-zero one-hot rows
        return jnp.pad(v, (0, pad), constant_values=n).reshape(e_pad, 1)

    idx_i, idx_j, idx_k = pad_idx(idx[0]), pad_idx(idx[1]), pad_idx(idx[2])
    idx_t = pad_idx(idx[update_vertex])
    attr_p = jnp.pad(he_attr.astype(jnp.float32), ((0, pad), (0, 0)))
    ew_p = jnp.pad(he_weight.astype(jnp.float32), (0, pad)).reshape(e_pad, 1)

    def full(shape):
        return pl.BlockSpec(shape, lambda i, _r=len(shape): (0,) * _r)

    def etile(cols):
        return pl.BlockSpec((tile_e, cols), lambda i: (i, 0))

    return pl.pallas_call(
        _tri_fused_kernel,
        out_shape=jax.ShapeDtypeStruct((n, dh), jnp.float32),
        grid=(nt,),
        in_specs=[
            full((n, dh)),                  # x (residual + projections)
            full((dh, 4 * DIM_TRI)),        # [Wi|Wj|Wk|Wr]  (bf16)
            full((1, 4 * DIM_TRI)),         # [bi|bj|bk|0]
            full((de, DIM_TRI)),            # We             (bf16)
            full((1, DIM_TRI)),             # be
            full((DIM_TRI, DIM_TRI)),       # Wl             (bf16)
            full((1, DIM_TRI)),             # att
            full((DIM_TRI, dh)),            # W2             (bf16)
            full((1, dh)),                  # conv bias
            etile(1),                       # idx_i
            etile(1),                       # idx_j
            etile(1),                       # idx_k
            etile(1),                       # idx_target
            etile(de),                      # hyperedge_attr tile
            etile(1),                       # hyperedge_weight tile
        ],
        out_specs=full((n, dh)),
        scratch_shapes=[
            pltpu.VMEM((n, 4 * DIM_TRI), jnp.float32),   # cached projections
            pltpu.VMEM((1, n), jnp.float32),             # running max
            pltpu.VMEM((1, n), jnp.float32),             # running softmax denom
            pltpu.VMEM((1, n), jnp.float32),             # running weighted denom
            pltpu.VMEM((n, dh), jnp.float32),            # aggregate accumulator
        ],
        compiler_params=pltpu.CompilerParams(
            dimension_semantics=("arbitrary",),          # online accumulation over E
            vmem_limit_bytes=48 * 1024 * 1024),          # fits v7x's 64 MiB physical
    )(x, kp["wcat"], kp["bcat"], kp["we"], kp["be"], kp["wl"], kp["att"],
      kp["w2"], kp["cbias"], idx_i, idx_j, idx_k, idx_t, attr_p, ew_p)


# ------------------------------ full forward ---------------------------------
def lex3d_forward(kp, x, he_index, he_attr, he_weight, tile_e=512, block_rows=None):
    x = transfer_block(x, kp["t0_w1"], kp["t0_w2"], block_rows=block_rows)
    x = tri_attention(x, he_index, he_attr, he_weight, kp["out_pass"], 2, tile_e)
    x = tri_attention(x, he_index, he_attr, he_weight, kp["in_pass"], 0, tile_e)
    x = transfer_block(x, kp["t1_w1"], kp["t1_w2"], w_exit=kp["w_exit"],
                       block_rows=block_rows)
    return x


# ------------------------------ parameters -----------------------------------
def init_params(key, dim_edge):
    ks = iter(jax.random.split(key, 64))

    def lin(din, dout):
        w = jax.random.normal(next(ks), (din, dout), jnp.float32) / jnp.sqrt(float(din))
        return w.astype(jnp.bfloat16).astype(jnp.float32)   # bf16-representable weights

    def bias(dout):
        return jax.random.normal(next(ks), (dout,), jnp.float32) * 0.01

    def tri():
        att = jax.random.normal(next(ks), (1, DIM_TRI), jnp.float32) / jnp.sqrt(float(DIM_TRI))
        return dict(
            wi=lin(DIM_H, DIM_TRI), bi=bias(DIM_TRI),
            wj=lin(DIM_H, DIM_TRI), bj=bias(DIM_TRI),
            wk=lin(DIM_H, DIM_TRI), bk=bias(DIM_TRI),
            we=lin(dim_edge, DIM_TRI), be=bias(DIM_TRI),
            wl=lin(DIM_TRI, DIM_TRI),            # Edge3dConv.lin1_l (no bias)
            wr=lin(DIM_H, DIM_TRI),              # Edge3dConv.lin1_r (no bias)
            att=att,
            w2=lin(DIM_TRI, DIM_H),              # Edge3dConv.lin2   (no bias)
            cbias=jnp.zeros((DIM_H,), jnp.float32),
        )

    return dict(
        t0_w1=lin(DIM_H, DIM_H), t0_w2=lin(DIM_H, DIM_H),
        out_pass=tri(), in_pass=tri(),
        t1_w1=lin(DIM_H, DIM_H), t1_w2=lin(DIM_H, DIM_H),
        w_exit=lin(DIM_H, DIM_H),
    )


def pack_params(params):
    """One-time packing: concatenated projection weights, bf16 matmul operands."""
    def pack_tri(p):
        wcat = jnp.concatenate([p["wi"], p["wj"], p["wk"], p["wr"]], axis=1)
        bcat = jnp.concatenate(
            [p["bi"], p["bj"], p["bk"], jnp.zeros((DIM_TRI,), jnp.float32)]).reshape(1, -1)
        return dict(
            wcat=wcat.astype(jnp.bfloat16),
            bcat=bcat,
            we=p["we"].astype(jnp.bfloat16),
            be=p["be"].reshape(1, -1),
            wl=p["wl"].astype(jnp.bfloat16),
            att=p["att"],
            w2=p["w2"].astype(jnp.bfloat16),
            cbias=p["cbias"].reshape(1, -1),
        )

    return dict(
        t0_w1=params["t0_w1"].astype(jnp.bfloat16),
        t0_w2=params["t0_w2"].astype(jnp.bfloat16),
        out_pass=pack_tri(params["out_pass"]),
        in_pass=pack_tri(params["in_pass"]),
        t1_w1=params["t1_w1"].astype(jnp.bfloat16),
        t1_w2=params["t1_w2"].astype(jnp.bfloat16),
        w_exit=params["w_exit"].astype(jnp.bfloat16),
    )


# ------------------------------ plain-JAX reference --------------------------
def _reference_transfer(x, w1, w2):
    h = _elu(x @ w1)
    mu = jnp.mean(h, axis=-1, keepdims=True)
    var = jnp.mean(jnp.square(h - mu), axis=-1, keepdims=True)
    h = (h - mu) / jnp.sqrt(var + 1e-5)
    return _elu(h @ w2 + x)


def _reference_tri(x, he_index, he_attr, he_weight, p, update_vertex):
    n = x.shape[0]
    xi = (x @ p["wi"] + p["bi"])[he_index[0]]
    xj = (x @ p["wj"] + p["bj"])[he_index[1]]
    xk = (x @ p["wk"] + p["bk"])[he_index[2]]
    eijk = he_attr @ p["we"] + p["be"]
    xijk = _elu(xi + xj + xk + eijk)
    tgt = he_index[update_vertex]
    x_ji = _leaky_relu(xijk @ p["wl"] + x[tgt] @ p["wr"])
    alpha = _leaky_relu(jnp.sum(x_ji * p["att"], axis=-1))
    seg_max = jnp.full((n,), -jnp.inf, jnp.float32).at[tgt].max(alpha)
    ex = jnp.exp(alpha - seg_max[tgt])
    seg_sum = jnp.zeros((n,), jnp.float32).at[tgt].add(ex)
    a = ex / (seg_sum[tgt] + 1e-16)
    a = a * he_weight
    sums = jnp.zeros((n,), jnp.float32).at[tgt].add(a)
    a = a / (sums[tgt] + 1e-5)
    msg = (xijk @ p["w2"]) * a[:, None]
    agg = jnp.zeros((n, x.shape[1]), jnp.float32).at[tgt].add(msg)
    return _elu(x + agg + p["cbias"])


def lex3d_reference(params, x, he_index, he_attr, he_weight):
    x = _reference_transfer(x, params["t0_w1"], params["t0_w2"])
    x = _reference_tri(x, he_index, he_attr, he_weight, params["out_pass"], 2)
    x = _reference_tri(x, he_index, he_attr, he_weight, params["in_pass"], 0)
    x = _reference_transfer(x, params["t1_w1"], params["t1_w2"])
    return x @ params["w_exit"]


# ------------------------------ main ------------------------------------------
if __name__ == "__main__":
    key = jax.random.PRNGKey(0)
    k_x, k_idx, k_attr, k_w, k_par = jax.random.split(key, 5)

    N = 16          # number of nodes
    E = 24          # number of hyperedges (triangles)
    DIM_EDGE = 32   # hyperedge attribute dimension

    x = jax.random.normal(k_x, (N, DIM_H), jnp.float32) * 0.5
    hyperedge_index = jax.random.randint(k_idx, (3, E), 0, N, dtype=jnp.int32)
    hyperedge_attr = jax.random.normal(k_attr, (E, DIM_EDGE), jnp.float32)
    hyperedge_weight = jax.random.uniform(k_w, (E,), jnp.float32, 0.5, 1.5)

    params = init_params(k_par, DIM_EDGE)
    kparams = pack_params(params)

    # small tiles so the multi-tile online-softmax and parallel row grid are exercised
    fwd = jax.jit(functools.partial(lex3d_forward, tile_e=16, block_rows=8))
    out = jax.block_until_ready(
        fwd(kparams, x, hyperedge_index, hyperedge_attr, hyperedge_weight))

    assert out.shape == (N, DIM_H), out.shape
    assert bool(jnp.all(jnp.isfinite(out)))

    # Check against a plain-JAX f32 reference of the PyTorch forward; the only
    # expected difference is bf16 rounding of matmul operands inside the kernels.
    ref = jax.block_until_ready(
        jax.jit(lex3d_reference)(params, x, hyperedge_index, hyperedge_attr,
                                 hyperedge_weight))
    max_err = float(jnp.max(jnp.abs(out - ref)))
    ref_scale = float(jnp.max(jnp.abs(ref)))
    assert max_err <= 0.08 * ref_scale + 0.08, (max_err, ref_scale)

    print("KERNEL_OK")
</pallas_src>

<mosaic_0001>
module attributes {stable_mosaic.version = 11 : i64} {
  func.func @_transfer_kernel(%arg0: i32, %arg1: memref<8x256xf32, #tpu.memory_space<vmem>>, %arg2: memref<256x256xbf16, #tpu.memory_space<vmem>>, %arg3: memref<256x256xbf16, #tpu.memory_space<vmem>>, %arg4: memref<8x256xf32, #tpu.memory_space<vmem>>) attributes {dimension_semantics = [#tpu.dimension_semantics<parallel>], iteration_bounds = array<i64: 2>, scalar_prefetch = 0 : i64, scratch_operands = 0 : i64, tpu.core_type = #tpu.core_type<tc>, window_params = [{transform_indices = @transform_0, window_bounds = array<i64: 8, 256>}, {pipeline_mode = #tpu.pipeline_mode<synchronous>, transform_indices = @transform_1, window_bounds = array<i64: 256, 256>}, {pipeline_mode = #tpu.pipeline_mode<synchronous>, transform_indices = @transform_2, window_bounds = array<i64: 256, 256>}, {transform_indices = @transform_3, window_bounds = array<i64: 8, 256>}]} {
    %c0 = arith.constant 0 : index
    %c0_0 = arith.constant 0 : index
    %0 = vector.load %arg1[%c0, %c0_0] : memref<8x256xf32, #tpu.memory_space<vmem>>, vector<8x256xf32>
    %1 = arith.truncf %0 : vector<8x256xf32> to vector<8x256xbf16>
    %c0_1 = arith.constant 0 : index
    %c0_2 = arith.constant 0 : index
    %2 = vector.load %arg2[%c0_1, %c0_2] : memref<256x256xbf16, #tpu.memory_space<vmem>>, vector<256x256xbf16>
    %cst = arith.constant dense<0.000000e+00> : vector<8x256xf32>
    %3 = tpu.matmul %1, %2, %cst {dimension_numbers = #tpu.dot_dimension_numbers<[1], [0], [0], [1], [0, 0, 1, 1], [], []>} : vector<8x256xbf16>, vector<256x256xbf16>, vector<8x256xf32> -> vector<8x256xf32>
    %cst_3 = arith.constant 0.000000e+00 : f32
    %4 = vector.broadcast %cst_3 : f32 to vector<8x256xf32>
    %5 = arith.cmpf ogt, %3, %4 : vector<8x256xf32>
    %cst_4 = arith.constant 0.000000e+00 : f32
    %6 = vector.broadcast %cst_4 : f32 to vector<8x256xf32>
    %7 = arith.minimumf %3, %6 : vector<8x256xf32>
    %8 = math.exp %7 : vector<8x256xf32>
    %cst_5 = arith.constant 1.000000e+00 : f32
    %9 = vector.broadcast %cst_5 : f32 to vector<8x256xf32>
    %10 = arith.subf %8, %9 : vector<8x256xf32>
    %11 = arith.select %5, %3, %10 : vector<8x256xi1>, vector<8x256xf32>
    %cst_6 = arith.constant dense<0.000000e+00> : vector<8xf32>
    %12 = vector.multi_reduction <add>, %11, %cst_6 [1] : vector<8x256xf32> to vector<8xf32>
    %13 = vector.shape_cast %12 : vector<8xf32> to vector<8x1xf32>
    %cst_7 = arith.constant 2.560000e+02 : f32
    %14 = vector.broadcast %cst_7 : f32 to vector<8x1xf32>
    %15 = arith.divf %13, %14 : vector<8x1xf32>
    %16 = vector.broadcast %15 : vector<8x1xf32> to vector<8x256xf32>
    %17 = arith.subf %11, %16 : vector<8x256xf32>
    %18 = arith.mulf %17, %17 : vector<8x256xf32>
    %cst_8 = arith.constant dense<0.000000e+00> : vector<8xf32>
    %19 = vector.multi_reduction <add>, %18, %cst_8 [1] : vector<8x256xf32> to vector<8xf32>
    %20 = vector.shape_cast %19 : vector<8xf32> to vector<8x1xf32>
    %cst_9 = arith.constant 2.560000e+02 : f32
    %21 = vector.broadcast %cst_9 : f32 to vector<8x1xf32>
    %22 = arith.divf %20, %21 : vector<8x1xf32>
    %23 = vector.broadcast %15 : vector<8x1xf32> to vector<8x256xf32>
    %24 = arith.subf %11, %23 : vector<8x256xf32>
    %cst_10 = arith.constant 9.99999974E-6 : f32
    %25 = vector.broadcast %cst_10 : f32 to vector<8x1xf32>
    %26 = arith.addf %22, %25 : vector<8x1xf32>
    %27 = math.rsqrt %26 : vector<8x1xf32>
    %28 = vector.broadcast %27 : vector<8x1xf32> to vector<8x256xf32>
    %29 = arith.mulf %24, %28 : vector<8x256xf32>
    %30 = arith.truncf %29 : vector<8x256xf32> to vector<8x256xbf16>
    %c0_11 = arith.constant 0 : index
    %c0_12 = arith.constant 0 : index
    %31 = vector.load %arg3[%c0_11, %c0_12] : memref<256x256xbf16, #tpu.memory_space<vmem>>, vector<256x256xbf16>
    %cst_13 = arith.constant dense<0.000000e+00> : vector<8x256xf32>
    %32 = tpu.matmul %30, %31, %cst_13 {dimension_numbers = #tpu.dot_dimension_numbers<[1], [0], [0], [1], [0, 0, 1, 1], [], []>} : vector<8x256xbf16>, vector<256x256xbf16>, vector<8x256xf32> -> vector<8x256xf32>
    %33 = arith.addf %32, %0 : vector<8x256xf32>
    %cst_14 = arith.constant 0.000000e+00 : f32
    %34 = vector.broadcast %cst_14 : f32 to vector<8x256xf32>
    %35 = arith.cmpf ogt, %33, %34 : vector<8x256xf32>
    %cst_15 = arith.constant 0.000000e+00 : f32
    %36 = vector.broadcast %cst_15 : f32 to vector<8x256xf32>
    %37 = arith.minimumf %33, %36 : vector<8x256xf32>
    %38 = math.exp %37 : vector<8x256xf32>
    %cst_16 = arith.constant 1.000000e+00 : f32
    %39 = vector.broadcast %cst_16 : f32 to vector<8x256xf32>
    %40 = arith.subf %38, %39 : vector<8x256xf32>
    %41 = arith.select %35, %33, %40 : vector<8x256xi1>, vector<8x256xf32>
    %c0_17 = arith.constant 0 : index
    %c0_18 = arith.constant 0 : index
    %42 = vector.load %arg4[%c0_17, %c0_18] : memref<8x256xf32, #tpu.memory_space<vmem>>, vector<8x256xf32>
    tpu.vector_store %arg4[%c0_17, %c0_18], %41 {strides = array<i32>} : memref<8x256xf32, #tpu.memory_space<vmem>>, vector<8x256xf32>,
    return
  }
  func.func @transform_0(%arg0: i32) -> (i32, i32) {
    %c0_i32 = arith.constant 0 : i32
    %c0_i32_0 = arith.constant 0 : i32
    return %arg0, %c0_i32 : i32, i32
  }
  func.func @transform_1(%arg0: i32) -> (i32, i32) {
    %c0_i32 = arith.constant 0 : i32
    %c0_i32_0 = arith.constant 0 : i32
    %c0_i32_1 = arith.constant 0 : i32
    return %c0_i32, %c0_i32_0 : i32, i32
  }
  func.func @transform_2(%arg0: i32) -> (i32, i32) {
    %c0_i32 = arith.constant 0 : i32
    %c0_i32_0 = arith.constant 0 : i32
    %c0_i32_1 = arith.constant 0 : i32
    return %c0_i32, %c0_i32_0 : i32, i32
  }
  func.func @transform_3(%arg0: i32) -> (i32, i32) {
    %c0_i32 = arith.constant 0 : i32
    %c0_i32_0 = arith.constant 0 : i32
    return %arg0, %c0_i32 : i32, i32
  }
}

module attributes {stable_mosaic.version = 11 : i64} {
  func.func @_transfer_exit_kernel(%arg0: i32, %arg1: memref<8x256xf32, #tpu.memory_space<vmem>>, %arg2: memref<256x256xbf16, #tpu.memory_space<vmem>>, %arg3: memref<256x256xbf16, #tpu.memory_space<vmem>>, %arg4: memref<256x256xbf16, #tpu.memory_space<vmem>>, %arg5: memref<8x256xf32, #tpu.memory_space<vmem>>) attributes {dimension_semantics = [#tpu.dimension_semantics<parallel>], iteration_bounds = array<i64: 2>, scalar_prefetch = 0 : i64, scratch_operands = 0 : i64, tpu.core_type = #tpu.core_type<tc>, window_params = [{transform_indices = @transform_0, window_bounds = array<i64: 8, 256>}, {pipeline_mode = #tpu.pipeline_mode<synchronous>, transform_indices = @transform_1, window_bounds = array<i64: 256, 256>}, {pipeline_mode = #tpu.pipeline_mode<synchronous>, transform_indices = @transform_2, window_bounds = array<i64: 256, 256>}, {pipeline_mode = #tpu.pipeline_mode<synchronous>, transform_indices = @transform_3, window_bounds = array<i64: 256, 256>}, {transform_indices = @transform_4, window_bounds = array<i64: 8, 256>}]} {
    %c0 = arith.constant 0 : index
    %c0_0 = arith.constant 0 : index
    %0 = vector.load %arg1[%c0, %c0_0] : memref<8x256xf32, #tpu.memory_space<vmem>>, vector<8x256xf32>
    %1 = arith.truncf %0 : vector<8x256xf32> to vector<8x256xbf16>
    %c0_1 = arith.constant 0 : index
    %c0_2 = arith.constant 0 : index
    %2 = vector.load %arg2[%c0_1, %c0_2] : memref<256x256xbf16, #tpu.memory_space<vmem>>, vector<256x256xbf16>
    %cst = arith.constant dense<0.000000e+00> : vector<8x256xf32>
    %3 = tpu.matmul %1, %2, %cst {dimension_numbers = #tpu.dot_dimension_numbers<[1], [0], [0], [1], [0, 0, 1, 1], [], []>} : vector<8x256xbf16>, vector<256x256xbf16>, vector<8x256xf32> -> vector<8x256xf32>
    %cst_3 = arith.constant 0.000000e+00 : f32
    %4 = vector.broadcast %cst_3 : f32 to vector<8x256xf32>
    %5 = arith.cmpf ogt, %3, %4 : vector<8x256xf32>
    %cst_4 = arith.constant 0.000000e+00 : f32
    %6 = vector.broadcast %cst_4 : f32 to vector<8x256xf32>
    %7 = arith.minimumf %3, %6 : vector<8x256xf32>
    %8 = math.exp %7 : vector<8x256xf32>
    %cst_5 = arith.constant 1.000000e+00 : f32
    %9 = vector.broadcast %cst_5 : f32 to vector<8x256xf32>
    %10 = arith.subf %8, %9 : vector<8x256xf32>
    %11 = arith.select %5, %3, %10 : vector<8x256xi1>, vector<8x256xf32>
    %cst_6 = arith.constant dense<0.000000e+00> : vector<8xf32>
    %12 = vector.multi_reduction <add>, %11, %cst_6 [1] : vector<8x256xf32> to vector<8xf32>
    %13 = vector.shape_cast %12 : vector<8xf32> to vector<8x1xf32>
    %cst_7 = arith.constant 2.560000e+02 : f32
    %14 = vector.broadcast %cst_7 : f32 to vector<8x1xf32>
    %15 = arith.divf %13, %14 : vector<8x1xf32>
    %16 = vector.broadcast %15 : vector<8x1xf32> to vector<8x256xf32>
    %17 = arith.subf %11, %16 : vector<8x256xf32>
    %18 = arith.mulf %17, %17 : vector<8x256xf32>
    %cst_8 = arith.constant dense<0.000000e+00> : vector<8xf32>
    %19 = vector.multi_reduction <add>, %18, %cst_8 [1] : vector<8x256xf32> to vector<8xf32>
    %20 = vector.shape_cast %19 : vector<8xf32> to vector<8x1xf32>
    %cst_9 = arith.constant 2.560000e+02 : f32
    %21 = vector.broadcast %cst_9 : f32 to vector<8x1xf32>
    %22 = arith.divf %20, %21 : vector<8x1xf32>
    %23 = vector.broadcast %15 : vector<8x1xf32> to vector<8x256xf32>
    %24 = arith.subf %11, %23 : vector<8x256xf32>
    %cst_10 = arith.constant 9.99999974E-6 : f32
    %25 = vector.broadcast %cst_10 : f32 to vector<8x1xf32>
    %26 = arith.addf %22, %25 : vector<8x1xf32>
    %27 = math.rsqrt %26 : vector<8x1xf32>
    %28 = vector.broadcast %27 : vector<8x1xf32> to vector<8x256xf32>
    %29 = arith.mulf %24, %28 : vector<8x256xf32>
    %30 = arith.truncf %29 : vector<8x256xf32> to vector<8x256xbf16>
    %c0_11 = arith.constant 0 : index
    %c0_12 = arith.constant 0 : index
    %31 = vector.load %arg3[%c0_11, %c0_12] : memref<256x256xbf16, #tpu.memory_space<vmem>>, vector<256x256xbf16>
    %cst_13 = arith.constant dense<0.000000e+00> : vector<8x256xf32>
    %32 = tpu.matmul %30, %31, %cst_13 {dimension_numbers = #tpu.dot_dimension_numbers<[1], [0], [0], [1], [0, 0, 1, 1], [], []>} : vector<8x256xbf16>, vector<256x256xbf16>, vector<8x256xf32> -> vector<8x256xf32>
    %33 = arith.addf %32, %0 : vector<8x256xf32>
    %cst_14 = arith.constant 0.000000e+00 : f32
    %34 = vector.broadcast %cst_14 : f32 to vector<8x256xf32>
    %35 = arith.cmpf ogt, %33, %34 : vector<8x256xf32>
    %cst_15 = arith.constant 0.000000e+00 : f32
    %36 = vector.broadcast %cst_15 : f32 to vector<8x256xf32>
    %37 = arith.minimumf %33, %36 : vector<8x256xf32>
    %38 = math.exp %37 : vector<8x256xf32>
    %cst_16 = arith.constant 1.000000e+00 : f32
    %39 = vector.broadcast %cst_16 : f32 to vector<8x256xf32>
    %40 = arith.subf %38, %39 : vector<8x256xf32>
    %41 = arith.select %35, %33, %40 : vector<8x256xi1>, vector<8x256xf32>
    %42 = arith.truncf %41 : vector<8x256xf32> to vector<8x256xbf16>
    %c0_17 = arith.constant 0 : index
    %c0_18 = arith.constant 0 : index
    %43 = vector.load %arg4[%c0_17, %c0_18] : memref<256x256xbf16, #tpu.memory_space<vmem>>, vector<256x256xbf16>
    %cst_19 = arith.constant dense<0.000000e+00> : vector<8x256xf32>
    %44 = tpu.matmul %42, %43, %cst_19 {dimension_numbers = #tpu.dot_dimension_numbers<[1], [0], [0], [1], [0, 0, 1, 1], [], []>} : vector<8x256xbf16>, vector<256x256xbf16>, vector<8x256xf32> -> vector<8x256xf32>
    %c0_20 = arith.constant 0 : index
    %c0_21 = arith.constant 0 : index
    %45 = vector.load %arg5[%c0_20, %c0_21] : memref<8x256xf32, #tpu.memory_space<vmem>>, vector<8x256xf32>
    tpu.vector_store %arg5[%c0_20, %c0_21], %44 {strides = array<i32>} : memref<8x256xf32, #tpu.memory_space<vmem>>, vector<8x256xf32>,
    return
  }
  func.func @transform_0(%arg0: i32) -> (i32, i32) {
    %c0_i32 = arith.constant 0 : i32
    %c0_i32_0 = arith.constant 0 : i32
    return %arg0, %c0_i32 : i32, i32
  }
  func.func @transform_1(%arg0: i32) -> (i32, i32) {
    %c0_i32 = arith.constant 0 : i32
    %c0_i32_0 = arith.constant 0 : i32
    %c0_i32_1 = arith.constant 0 : i32
    return %c0_i32, %c0_i32_0 : i32, i32
  }
  func.func @transform_2(%arg0: i32) -> (i32, i32) {
    %c0_i32 = arith.constant 0 : i32
    %c0_i32_0 = arith.constant 0 : i32
    %c0_i32_1 = arith.constant 0 : i32
    return %c0_i32, %c0_i32_0 : i32, i32
  }
  func.func @transform_3(%arg0: i32) -> (i32, i32) {
    %c0_i32 = arith.constant 0 : i32
    %c0_i32_0 = arith.constant 0 : i32
    %c0_i32_1 = arith.constant 0 : i32
    return %c0_i32, %c0_i32_0 : i32, i32
  }
  func.func @transform_4(%arg0: i32) -> (i32, i32) {
    %c0_i32 = arith.constant 0 : i32
    %c0_i32_0 = arith.constant 0 : i32
    return %arg0, %c0_i32 : i32, i32
  }
}

module attributes {stable_mosaic.version = 11 : i64} {
  func.func @_tri_fused_kernel(%arg0: i32, %arg1: memref<16x256xf32, #tpu.memory_space<vmem>>, %arg2: memref<256x512xbf16, #tpu.memory_space<vmem>>, %arg3: memref<1x512xf32, #tpu.memory_space<vmem>>, %arg4: memref<32x128xbf16, #tpu.memory_space<vmem>>, %arg5: memref<1x128xf32, #tpu.memory_space<vmem>>, %arg6: memref<128x128xbf16, #tpu.memory_space<vmem>>, %arg7: memref<1x128xf32, #tpu.memory_space<vmem>>, %arg8: memref<128x256xbf16, #tpu.memory_space<vmem>>, %arg9: memref<1x256xf32, #tpu.memory_space<vmem>>, %arg10: memref<16x1xi32, #tpu.memory_space<vmem>>, %arg11: memref<16x1xi32, #tpu.memory_space<vmem>>, %arg12: memref<16x1xi32, #tpu.memory_space<vmem>>, %arg13: memref<16x1xi32, #tpu.memory_space<vmem>>, %arg14: memref<16x32xf32, #tpu.memory_space<vmem>>, %arg15: memref<16x1xf32, #tpu.memory_space<vmem>>, %arg16: memref<16x256xf32, #tpu.memory_space<vmem>>, %arg17: memref<16x512xf32, #tpu.memory_space<vmem>>, %arg18: memref<1x16xf32, #tpu.memory_space<vmem>>, %arg19: memref<1x16xf32, #tpu.memory_space<vmem>>, %arg20: memref<1x16xf32, #tpu.memory_space<vmem>>, %arg21: memref<16x256xf32, #tpu.memory_space<vmem>>) attributes {dimension_semantics = [#tpu.dimension_semantics<arbitrary>], iteration_bounds = array<i64: 2>, scalar_prefetch = 0 : i64, scratch_operands = 5 : i64, tpu.core_type = #tpu.core_type<tc>, window_params = [{pipeline_mode = #tpu.pipeline_mode<synchronous>, transform_indices = @transform_0, window_bounds = array<i64: 16, 256>}, {pipeline_mode = #tpu.pipeline_mode<synchronous>, transform_indices = @transform_1, window_bounds = array<i64: 256, 512>}, {pipeline_mode = #tpu.pipeline_mode<synchronous>, transform_indices = @transform_2, window_bounds = array<i64: 1, 512>}, {pipeline_mode = #tpu.pipeline_mode<synchronous>, transform_indices = @transform_3, window_bounds = array<i64: 32, 128>}, {pipeline_mode = #tpu.pipeline_mode<synchronous>, transform_indices = @transform_4, window_bounds = array<i64: 1, 128>}, {pipeline_mode = #tpu.pipeline_mode<synchronous>, transform_indices = @transform_5, window_bounds = array<i64: 128, 128>}, {pipeline_mode = #tpu.pipeline_mode<synchronous>, transform_indices = @transform_6, window_bounds = array<i64: 1, 128>}, {pipeline_mode = #tpu.pipeline_mode<synchronous>, transform_indices = @transform_7, window_bounds = array<i64: 128, 256>}, {pipeline_mode = #tpu.pipeline_mode<synchronous>, transform_indices = @transform_8, window_bounds = array<i64: 1, 256>}, {transform_indices = @transform_9, window_bounds = array<i64: 16, 1>}, {transform_indices = @transform_10, window_bounds = array<i64: 16, 1>}, {transform_indices = @transform_11, window_bounds = array<i64: 16, 1>}, {transform_indices = @transform_12, window_bounds = array<i64: 16, 1>}, {transform_indices = @transform_13, window_bounds = array<i64: 16, 32>}, {transform_indices = @transform_14, window_bounds = array<i64: 16, 1>}, {pipeline_mode = #tpu.pipeline_mode<synchronous>, transform_indices = @transform_15, window_bounds = array<i64: 16, 256>}]} {
    %c0_i32 = arith.constant 0 : i32
    %0 = arith.cmpi eq, %arg0, %c0_i32 : i32
    %1 = arith.extui %0 : i1 to i32
    %c0_i32_0 = arith.constant 0 : i32
    %2 = arith.cmpi ne, %1, %c0_i32_0 : i32
    scf.if %2 {
      %c0_64 = arith.constant 0 : index
      %c0_65 = arith.constant 0 : index
      %128 = vector.load %arg1[%c0_64, %c0_65] : memref<16x256xf32, #tpu.memory_space<vmem>>, vector<16x256xf32>
      %129 = arith.truncf %128 : vector<16x256xf32> to vector<16x256xbf16>
      %c0_66 = arith.constant 0 : index
      %c0_67 = arith.constant 0 : index
      %130 = vector.load %arg2[%c0_66, %c0_67] : memref<256x512xbf16, #tpu.memory_space<vmem>>, vector<256x512xbf16>
      %cst_68 = arith.constant dense<0.000000e+00> : vector<16x512xf32>
      %131 = tpu.matmul %129, %130, %cst_68 {dimension_numbers = #tpu.dot_dimension_numbers<[1], [0], [0], [1], [0, 0, 1, 1], [], []>} : vector<16x256xbf16>, vector<256x512xbf16>, vector<16x512xf32> -> vector<16x512xf32>
      %c0_69 = arith.constant 0 : index
      %c0_70 = arith.constant 0 : index
      %132 = vector.load %arg3[%c0_69, %c0_70] : memref<1x512xf32, #tpu.memory_space<vmem>>, vector<1x512xf32>
      %133 = vector.broadcast %132 : vector<1x512xf32> to vector<16x512xf32>
      %134 = arith.addf %131, %133 : vector<16x512xf32>
      %c0_71 = arith.constant 0 : index
      %c0_72 = arith.constant 0 : index
      %135 = vector.load %arg17[%c0_71, %c0_72] : memref<16x512xf32, #tpu.memory_space<vmem>>, vector<16x512xf32>
      tpu.vector_store %arg17[%c0_71, %c0_72], %134 {strides = array<i32>} : memref<16x512xf32, #tpu.memory_space<vmem>>, vector<16x512xf32>,
      %cst_73 = arith.constant -1.000000e+30 : f32
      %136 = vector.broadcast %cst_73 : f32 to vector<1x16xf32>
      %c0_74 = arith.constant 0 : index
      %c0_75 = arith.constant 0 : index
      %137 = vector.load %arg18[%c0_74, %c0_75] : memref<1x16xf32, #tpu.memory_space<vmem>>, vector<1x16xf32>
      tpu.vector_store %arg18[%c0_74, %c0_75], %136 {strides = array<i32>} : memref<1x16xf32, #tpu.memory_space<vmem>>, vector<1x16xf32>,
      %cst_76 = arith.constant 0.000000e+00 : f32
      %138 = vector.broadcast %cst_76 : f32 to vector<1x16xf32>
      %c0_77 = arith.constant 0 : index
      %c0_78 = arith.constant 0 : index
      %139 = vector.load %arg19[%c0_77, %c0_78] : memref<1x16xf32, #tpu.memory_space<vmem>>, vector<1x16xf32>
      tpu.vector_store %arg19[%c0_77, %c0_78], %138 {strides = array<i32>} : memref<1x16xf32, #tpu.memory_space<vmem>>, vector<1x16xf32>,
      %cst_79 = arith.constant 0.000000e+00 : f32
      %140 = vector.broadcast %cst_79 : f32 to vector<1x16xf32>
      %c0_80 = arith.constant 0 : index
      %c0_81 = arith.constant 0 : index
      %141 = vector.load %arg20[%c0_80, %c0_81] : memref<1x16xf32, #tpu.memory_space<vmem>>, vector<1x16xf32>
      tpu.vector_store %arg20[%c0_80, %c0_81], %140 {strides = array<i32>} : memref<1x16xf32, #tpu.memory_space<vmem>>, vector<1x16xf32>,
      %cst_82 = arith.constant 0.000000e+00 : f32
      %142 = vector.broadcast %cst_82 : f32 to vector<16x256xf32>
      %c0_83 = arith.constant 0 : index
      %c0_84 = arith.constant 0 : index
      %143 = vector.load %arg21[%c0_83, %c0_84] : memref<16x256xf32, #tpu.memory_space<vmem>>, vector<16x256xf32>
      tpu.vector_store %arg21[%c0_83, %c0_84], %142 {strides = array<i32>} : memref<16x256xf32, #tpu.memory_space<vmem>>, vector<16x256xf32>,
    } else {
    }
    %3 = tpu.iota {dimensions = array<i32: 1>} : vector<16x16xi32>
    %c0 = arith.constant 0 : index
    %c0_1 = arith.constant 0 : index
    %4 = vector.load %arg10[%c0, %c0_1] : memref<16x1xi32, #tpu.memory_space<vmem>>, vector<16x1xi32>
    %5 = vector.broadcast %4 : vector<16x1xi32> to vector<16x16xi32>
    %6 = arith.cmpi eq, %3, %5 : vector<16x16xi32>
    %7 = arith.extui %6 : vector<16x16xi1> to vector<16x16xi32>
    %8 = arith.sitofp %7 : vector<16x16xi32> to vector<16x16xf32>
    %9 = arith.truncf %8 : vector<16x16xf32> to vector<16x16xbf16>
    %c0_2 = arith.constant 0 : index
    %c0_3 = arith.constant 0 : index
    %10 = vector.load %arg11[%c0_2, %c0_3] : memref<16x1xi32, #tpu.memory_space<vmem>>, vector<16x1xi32>
    %11 = vector.broadcast %10 : vector<16x1xi32> to vector<16x16xi32>
    %12 = arith.cmpi eq, %3, %11 : vector<16x16xi32>
    %13 = arith.extui %12 : vector<16x16xi1> to vector<16x16xi32>
    %14 = arith.sitofp %13 : vector<16x16xi32> to vector<16x16xf32>
    %15 = arith.truncf %14 : vector<16x16xf32> to vector<16x16xbf16>
    %c0_4 = arith.constant 0 : index
    %c0_5 = arith.constant 0 : index
    %16 = vector.load %arg12[%c0_4, %c0_5] : memref<16x1xi32, #tpu.memory_space<vmem>>, vector<16x1xi32>
    %17 = vector.broadcast %16 : vector<16x1xi32> to vector<16x16xi32>
    %18 = arith.cmpi eq, %3, %17 : vector<16x16xi32>
    %19 = arith.extui %18 : vector<16x16xi1> to vector<16x16xi32>
    %20 = arith.sitofp %19 : vector<16x16xi32> to vector<16x16xf32>
    %21 = arith.truncf %20 : vector<16x16xf32> to vector<16x16xbf16>
    %c0_6 = arith.constant 0 : index
    %c0_7 = arith.constant 0 : index
    %22 = vector.load %arg13[%c0_6, %c0_7] : memref<16x1xi32, #tpu.memory_space<vmem>>, vector<16x1xi32>
    %23 = vector.broadcast %22 : vector<16x1xi32> to vector<16x16xi32>
    %24 = arith.cmpi eq, %3, %23 : vector<16x16xi32>
    %25 = arith.extui %24 : vector<16x16xi1> to vector<16x16xi32>
    %26 = arith.sitofp %25 : vector<16x16xi32> to vector<16x16xf32>
    %c0_8 = arith.constant 0 : index
    %c0_9 = arith.constant 0 : index
    %27 = vector.load %arg17[%c0_8, %c0_9] : memref<16x512xf32, #tpu.memory_space<vmem>>, vector<16x512xf32>
    %28 = arith.truncf %27 : vector<16x512xf32> to vector<16x512xbf16>
    %29 = vector.extract_strided_slice %28 {offsets = [0, 0], sizes = [16, 128], strides = [1, 1]} : vector<16x512xbf16> to vector<16x128xbf16>
    %cst = arith.constant dense<0.000000e+00> : vector<16x128xf32>
    %30 = tpu.matmul %9, %29, %cst {dimension_numbers = #tpu.dot_dimension_numbers<[1], [0], [0], [1], [0, 0, 1, 1], [], []>} : vector<16x16xbf16>, vector<16x128xbf16>, vector<16x128xf32> -> vector<16x128xf32>
    %31 = vector.extract_strided_slice %28 {offsets = [0, 128], sizes = [16, 128], strides = [1, 1]} : vector<16x512xbf16> to vector<16x128xbf16>
    %cst_10 = arith.constant dense<0.000000e+00> : vector<16x128xf32>
    %32 = tpu.matmul %15, %31, %cst_10 {dimension_numbers = #tpu.dot_dimension_numbers<[1], [0], [0], [1], [0, 0, 1, 1], [], []>} : vector<16x16xbf16>, vector<16x128xbf16>, vector<16x128xf32> -> vector<16x128xf32>
    %33 = vector.extract_strided_slice %28 {offsets = [0, 256], sizes = [16, 128], strides = [1, 1]} : vector<16x512xbf16> to vector<16x128xbf16>
    %cst_11 = arith.constant dense<0.000000e+00> : vector<16x128xf32>
    %34 = tpu.matmul %21, %33, %cst_11 {dimension_numbers = #tpu.dot_dimension_numbers<[1], [0], [0], [1], [0, 0, 1, 1], [], []>} : vector<16x16xbf16>, vector<16x128xbf16>, vector<16x128xf32> -> vector<16x128xf32>
    %35 = arith.extui %24 : vector<16x16xi1> to vector<16x16xi32>
    %36 = arith.sitofp %35 : vector<16x16xi32> to vector<16x16xf32>
    %37 = arith.truncf %36 : vector<16x16xf32> to vector<16x16xbf16>
    %38 = vector.extract_strided_slice %28 {offsets = [0, 384], sizes = [16, 128], strides = [1, 1]} : vector<16x512xbf16> to vector<16x128xbf16>
    %cst_12 = arith.constant dense<0.000000e+00> : vector<16x128xf32>
    %39 = tpu.matmul %37, %38, %cst_12 {dimension_numbers = #tpu.dot_dimension_numbers<[1], [0], [0], [1], [0, 0, 1, 1], [], []>} : vector<16x16xbf16>, vector<16x128xbf16>, vector<16x128xf32> -> vector<16x128xf32>
    %c0_13 = arith.constant 0 : index
    %c0_14 = arith.constant 0 : index
    %40 = vector.load %arg14[%c0_13, %c0_14] : memref<16x32xf32, #tpu.memory_space<vmem>>, vector<16x32xf32>
    %41 = arith.truncf %40 : vector<16x32xf32> to vector<16x32xbf16>
    %c0_15 = arith.constant 0 : index
    %c0_16 = arith.constant 0 : index
    %42 = vector.load %arg4[%c0_15, %c0_16] : memref<32x128xbf16, #tpu.memory_space<vmem>>, vector<32x128xbf16>
    %cst_17 = arith.constant dense<0.000000e+00> : vector<16x128xf32>
    %43 = tpu.matmul %41, %42, %cst_17 {dimension_numbers = #tpu.dot_dimension_numbers<[1], [0], [0], [1], [0, 0, 1, 1], [], []>} : vector<16x32xbf16>, vector<32x128xbf16>, vector<16x128xf32> -> vector<16x128xf32>
    %c0_18 = arith.constant 0 : index
    %c0_19 = arith.constant 0 : index
    %44 = vector.load %arg5[%c0_18, %c0_19] : memref<1x128xf32, #tpu.memory_space<vmem>>, vector<1x128xf32>
    %45 = vector.broadcast %44 : vector<1x128xf32> to vector<16x128xf32>
    %46 = arith.addf %43, %45 : vector<16x128xf32>
    %47 = arith.addf %30, %32 : vector<16x128xf32>
    %48 = arith.addf %47, %34 : vector<16x128xf32>
    %49 = arith.addf %48, %46 : vector<16x128xf32>
    %cst_20 = arith.constant 0.000000e+00 : f32
    %50 = vector.broadcast %cst_20 : f32 to vector<16x128xf32>
    %51 = arith.cmpf ogt, %49, %50 : vector<16x128xf32>
    %cst_21 = arith.constant 0.000000e+00 : f32
    %52 = vector.broadcast %cst_21 : f32 to vector<16x128xf32>
    %53 = arith.minimumf %49, %52 : vector<16x128xf32>
    %54 = math.exp %53 : vector<16x128xf32>
    %cst_22 = arith.constant 1.000000e+00 : f32
    %55 = vector.broadcast %cst_22 : f32 to vector<16x128xf32>
    %56 = arith.subf %54, %55 : vector<16x128xf32>
    %57 = arith.select %51, %49, %56 : vector<16x128xi1>, vector<16x128xf32>
    %58 = arith.truncf %57 : vector<16x128xf32> to vector<16x128xbf16>
    %c0_23 = arith.constant 0 : index
    %c0_24 = arith.constant 0 : index
    %59 = vector.load %arg6[%c0_23, %c0_24] : memref<128x128xbf16, #tpu.memory_space<vmem>>, vector<128x128xbf16>
    %cst_25 = arith.constant dense<0.000000e+00> : vector<16x128xf32>
    %60 = tpu.matmul %58, %59, %cst_25 {dimension_numbers = #tpu.dot_dimension_numbers<[1], [0], [0], [1], [0, 0, 1, 1], [], []>} : vector<16x128xbf16>, vector<128x128xbf16>, vector<16x128xf32> -> vector<16x128xf32>
    %61 = arith.addf %60, %39 : vector<16x128xf32>
    %cst_26 = arith.constant 0.000000e+00 : f32
    %62 = vector.broadcast %cst_26 : f32 to vector<16x128xf32>
    %63 = arith.cmpf oge, %61, %62 : vector<16x128xf32>
    %cst_27 = arith.constant 0.00999999977 : f32
    %64 = vector.broadcast %cst_27 : f32 to vector<16x128xf32>
    %65 = arith.mulf %64, %61 : vector<16x128xf32>
    %66 = arith.select %63, %61, %65 : vector<16x128xi1>, vector<16x128xf32>
    %c0_28 = arith.constant 0 : index
    %c0_29 = arith.constant 0 : index
    %67 = vector.load %arg7[%c0_28, %c0_29] : memref<1x128xf32, #tpu.memory_space<vmem>>, vector<1x128xf32>
    %68 = vector.broadcast %67 : vector<1x128xf32> to vector<16x128xf32>
    %69 = arith.mulf %66, %68 : vector<16x128xf32>
    %cst_30 = arith.constant dense<0.000000e+00> : vector<16xf32>
    %70 = vector.multi_reduction <add>, %69, %cst_30 [1] : vector<16x128xf32> to vector<16xf32>
    %71 = vector.shape_cast %70 : vector<16xf32> to vector<16x1xf32>
    %cst_31 = arith.constant 0.000000e+00 : f32
    %72 = vector.broadcast %cst_31 : f32 to vector<16x1xf32>
    %73 = arith.cmpf oge, %71, %72 : vector<16x1xf32>
    %cst_32 = arith.constant 0.00999999977 : f32
    %74 = vector.broadcast %cst_32 : f32 to vector<16x1xf32>
    %75 = arith.mulf %74, %71 : vector<16x1xf32>
    %76 = arith.select %73, %71, %75 : vector<16x1xi1>, vector<16x1xf32>
    %cst_33 = arith.constant -1.000000e+30 : f32
    %77 = vector.shape_cast %76 : vector<16x1xf32> to vector<16x1xf32>
    %78 = vector.broadcast %77 : vector<16x1xf32> to vector<16x16xf32>
    %79 = vector.broadcast %cst_33 : f32 to vector<16x16xf32>
    %80 = arith.select %24, %78, %79 : vector<16x16xi1>, vector<16x16xf32>
    %cst_34 = arith.constant dense<0xFF800000> : vector<16xf32>
    %81 = vector.multi_reduction <maximumf>, %80, %cst_34 [0] : vector<16x16xf32> to vector<16xf32>
    %82 = vector.shape_cast %81 : vector<16xf32> to vector<1x16xf32>
    %c0_35 = arith.constant 0 : index
    %c0_36 = arith.constant 0 : index
    %83 = vector.load %arg18[%c0_35, %c0_36] : memref<1x16xf32, #tpu.memory_space<vmem>>, vector<1x16xf32>
    %84 = arith.maximumf %83, %82 : vector<1x16xf32>
    %c0_37 = arith.constant 0 : index
    %c0_38 = arith.constant 0 : index
    %85 = vector.load %arg18[%c0_37, %c0_38] : memref<1x16xf32, #tpu.memory_space<vmem>>, vector<1x16xf32>
    %86 = arith.subf %85, %84 : vector<1x16xf32>
    %87 = math.exp %86 : vector<1x16xf32>
    %cst_39 = arith.constant dense<0.000000e+00> : vector<16x1xf32>
    %88 = tpu.matmul %26, %84, %cst_39 {dimension_numbers = #tpu.dot_dimension_numbers<[1], [1], [0], [0], [0, 0, 1, 0], [], []>} : vector<16x16xf32>, vector<1x16xf32>, vector<16x1xf32> -> vector<16x1xf32>
    %89 = arith.subf %76, %88 : vector<16x1xf32>
    %90 = math.exp %89 : vector<16x1xf32>
    %c0_40 = arith.constant 0 : index
    %c0_41 = arith.constant 0 : index
    %91 = vector.load %arg15[%c0_40, %c0_41] : memref<16x1xf32, #tpu.memory_space<vmem>>, vector<16x1xf32>
    %92 = arith.mulf %90, %91 : vector<16x1xf32>
    %c0_42 = arith.constant 0 : index
    %c0_43 = arith.constant 0 : index
    %93 = vector.load %arg19[%c0_42, %c0_43] : memref<1x16xf32, #tpu.memory_space<vmem>>, vector<1x16xf32>
    %94 = arith.mulf %93, %87 : vector<1x16xf32>
    %cst_44 = arith.constant dense<0.000000e+00> : vector<1x16xf32>
    %95 = tpu.matmul %90, %26, %cst_44 {dimension_numbers = #tpu.dot_dimension_numbers<[0], [0], [1], [1], [0, 1, 1, 1], [], []>} : vector<16x1xf32>, vector<16x16xf32>, vector<1x16xf32> -> vector<1x16xf32>
    %96 = arith.addf %94, %95 : vector<1x16xf32>
    %c0_45 = arith.constant 0 : index
    %c0_46 = arith.constant 0 : index
    %97 = vector.load %arg19[%c0_45, %c0_46] : memref<1x16xf32, #tpu.memory_space<vmem>>, vector<1x16xf32>
    tpu.vector_store %arg19[%c0_45, %c0_46], %96 {strides = array<i32>} : memref<1x16xf32, #tpu.memory_space<vmem>>, vector<1x16xf32>,
    %c0_47 = arith.constant 0 : index
    %c0_48 = arith.constant 0 : index
    %98 = vector.load %arg20[%c0_47, %c0_48] : memref<1x16xf32, #tpu.memory_space<vmem>>, vector<1x16xf32>
    %99 = arith.mulf %98, %87 : vector<1x16xf32>
    %cst_49 = arith.constant dense<0.000000e+00> : vector<1x16xf32>
    %100 = tpu.matmul %92, %26, %cst_49 {dimension_numbers = #tpu.dot_dimension_numbers<[0], [0], [1], [1], [0, 1, 1, 1], [], []>} : vector<16x1xf32>, vector<16x16xf32>, vector<1x16xf32> -> vector<1x16xf32>
    %101 = arith.addf %99, %100 : vector<1x16xf32>
    %c0_50 = arith.constant 0 : index
    %c0_51 = arith.constant 0 : index
    %102 = vector.load %arg20[%c0_50, %c0_51] : memref<1x16xf32, #tpu.memory_space<vmem>>, vector<1x16xf32>
    tpu.vector_store %arg20[%c0_50, %c0_51], %101 {strides = array<i32>} : memref<1x16xf32, #tpu.memory_space<vmem>>, vector<1x16xf32>,
    %103 = tpu.iota {dimensions = array<i32: 0>} : vector<16x16xi32>
    %104 = tpu.iota {dimensions = array<i32: 1>} : vector<16x16xi32>
    %105 = arith.cmpi eq, %103, %104 : vector<16x16xi32>
    %106 = arith.extui %105 : vector<16x16xi1> to vector<16x16xi32>
    %107 = arith.sitofp %106 : vector<16x16xi32> to vector<16x16xf32>
    %cst_52 = arith.constant dense<0.000000e+00> : vector<16x1xf32>
    %108 = tpu.matmul %107, %87, %cst_52 {dimension_numbers = #tpu.dot_dimension_numbers<[1], [1], [0], [0], [0, 0, 1, 0], [], []>} : vector<16x16xf32>, vector<1x16xf32>, vector<16x1xf32> -> vector<16x1xf32>
    %109 = arith.truncf %57 : vector<16x128xf32> to vector<16x128xbf16>
    %c0_53 = arith.constant 0 : index
    %c0_54 = arith.constant 0 : index
    %110 = vector.load %arg8[%c0_53, %c0_54] : memref<128x256xbf16, #tpu.memory_space<vmem>>, vector<128x256xbf16>
    %cst_55 = arith.constant dense<0.000000e+00> : vector<16x256xf32>
    %111 = tpu.matmul %109, %110, %cst_55 {dimension_numbers = #tpu.dot_dimension_numbers<[1], [0], [0], [1], [0, 0, 1, 1], [], []>} : vector<16x128xbf16>, vector<128x256xbf16>, vector<16x256xf32> -> vector<16x256xf32>
    %112 = vector.broadcast %92 : vector<16x1xf32> to vector<16x256xf32>
    %113 = arith.mulf %111, %112 : vector<16x256xf32>
    %114 = arith.truncf %113 : vector<16x256xf32> to vector<16x256xbf16>
    %c0_56 = arith.constant 0 : index
    %c0_57 = arith.constant 0 : index
    %115 = vector.load %arg21[%c0_56, %c0_57] : memref<16x256xf32, #tpu.memory_space<vmem>>, vector<16x256xf32>
    %116 = vector.broadcast %108 : vector<16x1xf32> to vector<16x256xf32>
    %117 = arith.mulf %115, %116 : vector<16x256xf32>
    %118 = arith.extui %24 : vector<16x16xi1> to vector<16x16xi32>
    %119 = arith.sitofp %118 : vector<16x16xi32> to vector<16x16xf32>
    %120 = arith.truncf %119 : vector<16x16xf32> to vector<16x16xbf16>
    %cst_58 = arith.constant dense<0.000000e+00> : vector<16x256xf32>
    %121 = tpu.matmul %120, %114, %cst_58 {dimension_numbers = #tpu.dot_dimension_numbers<[0], [0], [1], [1], [0, 1, 1, 1], [], []>} : vector<16x16xbf16>, vector<16x256xbf16>, vector<16x256xf32> -> vector<16x256xf32>
    %122 = arith.addf %117, %121 : vector<16x256xf32>
    %c0_59 = arith.constant 0 : index
    %c0_60 = arith.constant 0 : index
    %123 = vector.load %arg21[%c0_59, %c0_60] : memref<16x256xf32, #tpu.memory_space<vmem>>, vector<16x256xf32>
    tpu.vector_store %arg21[%c0_59, %c0_60], %122 {strides = array<i32>} : memref<16x256xf32, #tpu.memory_space<vmem>>, vector<16x256xf32>,
    %c0_61 = arith.constant 0 : index
    %c0_62 = arith.constant 0 : index
    %124 = vector.load %arg18[%c0_61, %c0_62] : memref<1x16xf32, #tpu.memory_space<vmem>>, vector<1x16xf32>
    tpu.vector_store %arg18[%c0_61, %c0_62], %84 {strides = array<i32>} : memref<1x16xf32, #tpu.memory_space<vmem>>, vector<1x16xf32>,
    %c1_i32 = arith.constant 1 : i32
    %125 = arith.cmpi eq, %arg0, %c1_i32 : i32
    %126 = arith.extui %125 : i1 to i32
    %c0_i32_63 = arith.constant 0 : i32
    %127 = arith.cmpi ne, %126, %c0_i32_63 : i32
    scf.if %127 {
      %c0_64 = arith.constant 0 : index
      %c0_65 = arith.constant 0 : index
      %128 = vector.load %arg20[%c0_64, %c0_65] : memref<1x16xf32, #tpu.memory_space<vmem>>, vector<1x16xf32>
      %c0_66 = arith.constant 0 : index
      %c0_67 = arith.constant 0 : index
      %129 = vector.load %arg19[%c0_66, %c0_67] : memref<1x16xf32, #tpu.memory_space<vmem>>, vector<1x16xf32>
      %cst_68 = arith.constant 1.000000e-16 : f32
      %130 = vector.broadcast %cst_68 : f32 to vector<1x16xf32>
      %131 = arith.addf %129, %130 : vector<1x16xf32>
      %cst_69 = arith.constant 9.99999974E-6 : f32
      %132 = vector.broadcast %cst_69 : f32 to vector<1x16xf32>
      %133 = arith.mulf %132, %131 : vector<1x16xf32>
      %134 = arith.addf %128, %133 : vector<1x16xf32>
      %cst_70 = arith.constant dense<0.000000e+00> : vector<16x1xf32>
      %135 = tpu.matmul %107, %134, %cst_70 {dimension_numbers = #tpu.dot_dimension_numbers<[1], [1], [0], [0], [0, 0, 1, 0], [], []>} : vector<16x16xf32>, vector<1x16xf32>, vector<16x1xf32> -> vector<16x1xf32>
      %c0_71 = arith.constant 0 : index
      %c0_72 = arith.constant 0 : index
      %136 = vector.load %arg21[%c0_71, %c0_72] : memref<16x256xf32, #tpu.memory_space<vmem>>, vector<16x256xf32>
      %137 = tpu.reciprocal %135 {approx = true} : vector<16x1xf32> -> vector<16x1xf32>
      %138 = vector.broadcast %137 : vector<16x1xf32> to vector<16x256xf32>
      %139 = arith.mulf %136, %138 : vector<16x256xf32>
      %c0_73 = arith.constant 0 : index
      %c0_74 = arith.constant 0 : index
      %140 = vector.load %arg1[%c0_73, %c0_74] : memref<16x256xf32, #tpu.memory_space<vmem>>, vector<16x256xf32>
      %141 = arith.addf %140, %139 : vector<16x256xf32>
      %c0_75 = arith.constant 0 : index
      %c0_76 = arith.constant 0 : index
      %142 = vector.load %arg9[%c0_75, %c0_76] : memref<1x256xf32, #tpu.memory_space<vmem>>, vector<1x256xf32>
      %143 = vector.broadcast %142 : vector<1x256xf32> to vector<16x256xf32>
      %144 = arith.addf %141, %143 : vector<16x256xf32>
      %cst_77 = arith.constant 0.000000e+00 : f32
      %145 = vector.broadcast %cst_77 : f32 to vector<16x256xf32>
      %146 = arith.cmpf ogt, %144, %145 : vector<16x256xf32>
      %cst_78 = arith.constant 0.000000e+00 : f32
      %147 = vector.broadcast %cst_78 : f32 to vector<16x256xf32>
      %148 = arith.minimumf %144, %147 : vector<16x256xf32>
      %149 = math.exp %148 : vector<16x256xf32>
      %cst_79 = arith.constant 1.000000e+00 : f32
      %150 = vector.broadcast %cst_79 : f32 to vector<16x256xf32>
      %151 = arith.subf %149, %150 : vector<16x256xf32>
      %152 = arith.select %146, %144, %151 : vector<16x256xi1>, vector<16x256xf32>
      %c0_80 = arith.constant 0 : index
      %c0_81 = arith.constant 0 : index
      %153 = vector.load %arg16[%c0_80, %c0_81] : memref<16x256xf32, #tpu.memory_space<vmem>>, vector<16x256xf32>
      tpu.vector_store %arg16[%c0_80, %c0_81], %152 {strides = array<i32>} : memref<16x256xf32, #tpu.memory_space<vmem>>, vector<16x256xf32>,
    } else {
    }
    return
  }
  func.func @transform_0(%arg0: i32) -> (i32, i32) {
    %c0_i32 = arith.constant 0 : i32
    %c0_i32_0 = arith.constant 0 : i32
    %c0_i32_1 = arith.constant 0 : i32
    return %c0_i32, %c0_i32_0 : i32, i32
  }
  func.func @transform_1(%arg0: i32) -> (i32, i32) {
    %c0_i32 = arith.constant 0 : i32
    %c0_i32_0 = arith.constant 0 : i32
    %c0_i32_1 = arith.constant 0 : i32
    return %c0_i32, %c0_i32_0 : i32, i32
  }
  func.func @transform_2(%arg0: i32) -> (i32, i32) {
    %c0_i32 = arith.constant 0 : i32
    %c0_i32_0 = arith.constant 0 : i32
    %c0_i32_1 = arith.constant 0 : i32
    return %c0_i32, %c0_i32_0 : i32, i32
  }
  func.func @transform_3(%arg0: i32) -> (i32, i32) {
    %c0_i32 = arith.constant 0 : i32
    %c0_i32_0 = arith.constant 0 : i32
    %c0_i32_1 = arith.constant 0 : i32
    return %c0_i32, %c0_i32_0 : i32, i32
  }
  func.func @transform_4(%arg0: i32) -> (i32, i32) {
    %c0_i32 = arith.constant 0 : i32
    %c0_i32_0 = arith.constant 0 : i32
    %c0_i32_1 = arith.constant 0 : i32
    return %c0_i32, %c0_i32_0 : i32, i32
  }
  func.func @transform_5(%arg0: i32) -> (i32, i32) {
    %c0_i32 = arith.constant 0 : i32
    %c0_i32_0 = arith.constant 0 : i32
    %c0_i32_1 = arith.constant 0 : i32
    return %c0_i32, %c0_i32_0 : i32, i32
  }
  func.func @transform_6(%arg0: i32) -> (i32, i32) {
    %c0_i32 = arith.constant 0 : i32
    %c0_i32_0 = arith.constant 0 : i32
    %c0_i32_1 = arith.constant 0 : i32
    return %c0_i32, %c0_i32_0 : i32, i32
  }
  func.func @transform_7(%arg0: i32) -> (i32, i32) {
    %c0_i32 = arith.constant 0 : i32
    %c0_i32_0 = arith.constant 0 : i32
    %c0_i32_1 = arith.constant 0 : i32
    return %c0_i32, %c0_i32_0 : i32, i32
  }
  func.func @transform_8(%arg0: i32) -> (i32, i32) {
    %c0_i32 = arith.constant 0 : i32
    %c0_i32_0 = arith.constant 0 : i32
    %c0_i32_1 = arith.constant 0 : i32
    return %c0_i32, %c0_i32_0 : i32, i32
  }
  func.func @transform_9(%arg0: i32) -> (i32, i32) {
    %c0_i32 = arith.constant 0 : i32
    %c0_i32_0 = arith.constant 0 : i32
    return %arg0, %c0_i32 : i32, i32
  }
  func.func @transform_10(%arg0: i32) -> (i32, i32) {
    %c0_i32 = arith.constant 0 : i32
    %c0_i32_0 = arith.constant 0 : i32
    return %arg0, %c0_i32 : i32, i32
  }
  func.func @transform_11(%arg0: i32) -> (i32, i32) {
    %c0_i32 = arith.constant 0 : i32
    %c0_i32_0 = arith.constant 0 : i32
    return %arg0, %c0_i32 : i32, i32
  }
  func.func @transform_12(%arg0: i32) -> (i32, i32) {
    %c0_i32 = arith.constant 0 : i32
    %c0_i32_0 = arith.constant 0 : i32
    return %arg0, %c0_i32 : i32, i32
  }
  func.func @transform_13(%arg0: i32) -> (i32, i32) {
    %c0_i32 = arith.constant 0 : i32
    %c0_i32_0 = arith.constant 0 : i32
    return %arg0, %c0_i32 : i32, i32
  }
  func.func @transform_14(%arg0: i32) -> (i32, i32) {
    %c0_i32 = arith.constant 0 : i32
    %c0_i32_0 = arith.constant 0 : i32
    return %arg0, %c0_i32 : i32, i32
  }
  func.func @transform_15(%arg0: i32) -> (i32, i32) {
    %c0_i32 = arith.constant 0 : i32
    %c0_i32_0 = arith.constant 0 : i32
    %c0_i32_1 = arith.constant 0 : i32
    return %c0_i32, %c0_i32_0 : i32, i32
  }
}

</mosaic_0001>

<llo_original>
// kernel: lex3d_forward.4
$region0: #{lex3d_forward.4}
  #allocation0 [shape = 'u32[]', space=smem, size = 0x4, offset = 0x4, fixed_abs, tag = 'smem constant byte address 0x4 - core index']
  #allocation1 [shape = 'u32[144,128]{1,0:T(1,128)}', space=vmem, size = 0x12000, scoped, tag = 'internal scratch']
  %s0 = inlined_call_operand.vmem [shape: f32[16,256], index: 0, kind: input, shape index: {}]
  %s1 = inlined_call_operand.hbm [shape: bf16[256,256], index: 1, kind: input, shape index: {}]
  %s2 = inlined_call_operand.hbm [shape: bf16[256,256], index: 2, kind: input, shape index: {}]
  %s3 = inlined_call_operand.vmem [shape: f32[16,256], index: 3, kind: output, shape index: {}]
  %s4 = sld [smem:[#allocation0]]
  $region53: #{lex3d_forward.4} parent=0
    _
  %s6 = ssub.s32 1, %s4
  %s7 = scalar_select 0, %s6, %s4
  $region1: #{lex3d_forward.4} parent=0
    #allocation2 [shape = 'u8[131072]{0}', space=vmem, size = 0x20000, scoped, tag = 'input window, operand 1, single buffered']
    #allocation3 [shape = 's32[2]{0}', space=sflag, size = 0x8, scoped, tag = 'scoped memory for lex3d_forward.4']
    #allocation4 [shape = 'u8[131072]{0}', space=vmem, size = 0x20000, scoped, tag = 'input window, operand 2, single buffered']
    #allocation5 [shape = 's32[1]{0}', space=sflag, size = 0x4, scoped, tag = 'scoped memory for lex3d_forward.4']
    %8 = vsyncpa [#allocation3], 0
    %9 = vsyncpa [#allocation5], 0
    loop: start=0, step=1, limit=4
    $region2: #{lex3d_forward.4} parent=1 // loop_pre_header
      _
    $region3: #{lex3d_forward.4} parent=1 // loop_header
      %s11 = sphi 0, %s15
      %p12 = scmp.ge.s32.totalorder %s11, 4
      %s21 = sphi 0, %s23
      %s24 = sphi 0, %s21
      %s25 = sphi 0, %s24
      %s41 = sphi 0, %s25
      %s45 = sphi 0, %s45
      %s47 = sphi 0, %s45
      %s48 = sphi 0, %s47
      %s62 = sphi 0, %s48
      %s66 = sphi 0, %s66
      %s68 = sphi 0, %s66
      %s69 = sphi 0, %s68
      %s83 = sphi 0, %s69
      %s89 = sphi 0, %s91
      %s92 = sphi 0, %s89
      %s93 = sphi 0, %s92
      %s109 = sphi 0, %s93
    $region4: #{lex3d_forward.4} parent=1 // loop_header_branch
      %14 = sbr.rel (%p12) target = $region8
    $region5: #{lex3d_forward.4} parent=1 // loop_body
      %s16 = ssub.s32 %s11, 1
      %s17 = ssub.s32 %s11, 2
      %s18 = sadd.s32 %s11, 1
      %s19 = ssub.s32 %s11, %s18
      %p20 = scmp.eq.s32.totalorder %s19, 0
      %s22 = sadd.s32 %s21, 1
      %s23 = scalar_select %p20, %s21, %s22
      %p26 = pneg %p20
      %p27 = scmp.eq.s32.totalorder %s11, 1
      %p28 = por %p26, %p27
      %p29 = scmp.ne.s32.totalorder %s21, %s24
      %p30 = scmp.eq.s32.totalorder %s11, 0
      %p31 = por %p29, %p30
      %p32 = scmp.ne.s32.totalorder %s21, %s24
      %p33 = scmp.eq.s32.totalorder %s16, 1
      %p34 = por %p32, %p33
      %p35 = scmp.ne.s32.totalorder %s24, %s25
      %p36 = scmp.eq.s32.totalorder %s16, 0
      %p37 = por %p35, %p36
      %p38 = scmp.ne.s32.totalorder %s24, %s25
      %p39 = scmp.eq.s32.totalorder %s17, 1
      %p40 = por %p38, %p39
      %p42 = scmp.ne.s32.totalorder %s25, %s41
      %p43 = scmp.eq.s32.totalorder %s17, 0
      %p44 = por %p42, %p43
      %s46 = sadd.s32 %s45, 1
      %p49 = scmp.eq.s32.totalorder %s11, 1
      %p50 = scmp.ne.s32.totalorder %s45, %s47
      %p51 = scmp.eq.s32.totalorder %s11, 0
      %p52 = por %p50, %p51
      %p53 = scmp.ne.s32.totalorder %s45, %s47
      %p54 = scmp.eq.s32.totalorder %s16, 1
      %p55 = por %p53, %p54
      %p56 = scmp.ne.s32.totalorder %s47, %s48
      %p57 = scmp.eq.s32.totalorder %s16, 0
      %p58 = por %p56, %p57
      %p59 = scmp.ne.s32.totalorder %s47, %s48
      %p60 = scmp.eq.s32.totalorder %s17, 1
      %p61 = por %p59, %p60
      %p63 = scmp.ne.s32.totalorder %s48, %s62
      %p64 = scmp.eq.s32.totalorder %s17, 0
      %p65 = por %p63, %p64
      %s67 = sadd.s32 %s66, 1
      %p70 = scmp.eq.s32.totalorder %s11, 1
      %p71 = scmp.ne.s32.totalorder %s66, %s68
      %p72 = scmp.eq.s32.totalorder %s11, 0
      %p73 = por %p71, %p72
      %p74 = scmp.ne.s32.totalorder %s66, %s68
      %p75 = scmp.eq.s32.totalorder %s16, 1
      %p76 = por %p74, %p75
      %p77 = scmp.ne.s32.totalorder %s68, %s69
      %p78 = scmp.eq.s32.totalorder %s16, 0
      %p79 = por %p77, %p78
      %p80 = scmp.ne.s32.totalorder %s68, %s69
      %p81 = scmp.eq.s32.totalorder %s17, 1
      %p82 = por %p80, %p81
      %p84 = scmp.ne.s32.totalorder %s69, %s83
      %p85 = scmp.eq.s32.totalorder %s17, 0
      %p86 = por %p84, %p85
      %s87 = ssub.s32 %s11, %s18
      %p88 = scmp.eq.s32.totalorder %s87, 0
      %s90 = sadd.s32 %s89, 1
      %s91 = scalar_select %p88, %s89, %s90
      %p94 = pneg %p88
      %p95 = scmp.eq.s32.totalorder %s11, 1
      %p96 = por %p94, %p95
      %p97 = scmp.ne.s32.totalorder %s89, %s92
      %p98 = scmp.eq.s32.totalorder %s11, 0
      %p99 = por %p97, %p98
      %p100 = scmp.ne.s32.totalorder %s89, %s92
      %p101 = scmp.eq.s32.totalorder %s16, 1
      %p102 = por %p100, %p101
      %p103 = scmp.ne.s32.totalorder %s92, %s93
      %p104 = scmp.eq.s32.totalorder %s16, 0
      %p105 = por %p103, %p104
      %p106 = scmp.ne.s32.totalorder %s92, %s93
      %p107 = scmp.eq.s32.totalorder %s17, 1
      %p108 = por %p106, %p107
      %p110 = scmp.ne.s32.totalorder %s93, %s109
      %p111 = scmp.eq.s32.totalorder %s17, 0
      %p112 = por %p110, %p111
      %p113 = scmp.le.s32.totalorder 1, %s11
      %p114 = scmp.lt.s32.totalorder %s11, 3
      %p115 = pnand %p113, %p114
      %p116 = pneg %p115
      // Predicated region
      $region9: #{lex3d_forward.4} parent=5 // pred_check
        _
      $region10: #{lex3d_forward.4} parent=5 // pred_check_branch
        %118 = sbr.rel (%p115) target = $region12
      $region11: #{lex3d_forward.4} parent=5 // pred_region
        %s119 = ssub.s32 %s11, 1
        // Predicated region
        $region13: #{lex3d_forward.4} parent=11 // pred_check
          %p120 = pneg %p58
        $region14: #{lex3d_forward.4} parent=11 // pred_check_branch
          %122 = sbr.rel (%p120) target = $region16
        $region15: #{lex3d_forward.4} parent=11 // pred_region
          %s124 = ssub.s32 4096, 4096
          %125 = vsyncadd [#allocation3], %s124
          %s126 = sshll.u32 [#allocation2], 4
          %s127 = int_to_ptr.vmem [resolvable:$true] %s126
          %132 = dma.hbm_to_vmem [thread:$0]  %s1, 4096, %s127, [#allocation3], 128, 128, 8
        $region16: #{lex3d_forward.4} parent=11 // pred_fallthru
          _
        // Predicated region
        $region17: #{lex3d_forward.4} parent=11 // pred_check
          %p133 = pneg %p79
        $region18: #{lex3d_forward.4} parent=11 // pred_check_branch
          %135 = sbr.rel (%p133) target = $region20
        $region19: #{lex3d_forward.4} parent=11 // pred_region
          %s137 = ssub.s32 4096, 4096
          %138 = vsyncadd [#allocation5], %s137
          %s139 = sshll.u32 [#allocation4], 4
          %s140 = int_to_ptr.vmem [resolvable:$true] %s139
          %145 = dma.hbm_to_vmem [thread:$0]  %s2, 4096, %s140, [#allocation5], 128, 128, 8
        $region20: #{lex3d_forward.4} parent=11 // pred_fallthru
          _
      $region12: #{lex3d_forward.4} parent=5 // pred_fallthru
        _
      %p146 = scmp.lt.s32.totalorder %s11, 2
      // Predicated region
      $region21: #{lex3d_forward.4} parent=5 // pred_check
        %p147 = pneg %p146
      $region22: #{lex3d_forward.4} parent=5 // pred_check_branch
        %149 = sbr.rel (%p147) target = $region24
      $region23: #{lex3d_forward.4} parent=5 // pred_region
        // Predicated region
        $region25: #{lex3d_forward.4} parent=23 // pred_check
          %p150 = pneg %p31
        $region26: #{lex3d_forward.4} parent=23 // pred_check_branch
          %152 = sbr.rel (%p150) target = $region28
        $region27: #{lex3d_forward.4} parent=23 // pred_region
          %p153 = scmp.lt.s32.totalorder %s11, 1
          %s154 = scalar_select %p153, %s11, 1
          %s155 = smul.addr %s154, 2
          %s156 = smul.addr %s155, 8
          %s157 = scalar_lea.vmem %s0, %s156
        $region28: #{lex3d_forward.4} parent=23 // pred_fallthru
          _
      $region24: #{lex3d_forward.4} parent=5 // pred_fallthru
        _
      %p158 = scmp.le.s32.totalorder 1, %s11
      %p159 = scmp.lt.s32.totalorder %s11, 3
      %p160 = pnand %p158, %p159
      %p161 = pneg %p160
      // Predicated region
      $region29: #{lex3d_forward.4} parent=5 // pred_check
        _
      $region30: #{lex3d_forward.4} parent=5 // pred_check_branch
        %163 = sbr.rel (%p160) target = $region32
      $region31: #{lex3d_forward.4} parent=5 // pred_region
        %s164 = ssub.s32 %s11, 1
        // Predicated region
        $region33: #{lex3d_forward.4} parent=31 // pred_check
          %p165 = pneg %p58
        $region34: #{lex3d_forward.4} parent=31 // pred_check_branch
          %167 = sbr.rel (%p165) target = $region36
        $region35: #{lex3d_forward.4} parent=31 // pred_region
          %168 = dma.done [#allocation3], 4096
        $region36: #{lex3d_forward.4} parent=31 // pred_fallthru
          _
        // Predicated region
        $region37: #{lex3d_forward.4} parent=31 // pred_check
          %p169 = pneg %p79
        $region38: #{lex3d_forward.4} parent=31 // pred_check_branch
          %171 = sbr.rel (%p169) target = $region40
        $region39: #{lex3d_forward.4} parent=31 // pred_region
          %172 = dma.done [#allocation5], 4096
        $region40: #{lex3d_forward.4} parent=31 // pred_fallthru
          _
        %p173 = scmp.lt.s32.totalorder %s16, 1
        %s174 = scalar_select %p173, %s16, 1
        %s175 = smul.addr %s174, 2
        %s176 = smul.addr %s175, 8
        %s177 = scalar_lea.vmem %s0, %s176
        %p178 = pneg %p37
        %p179 = pneg %p34
        %p180 = pneg %p58
        %p181 = pneg %p55
        %p182 = pneg %p79
        %p183 = pneg %p76
        %p184 = pneg %p105
        %p185 = pneg %p102
        %p186 = scmp.lt.s32.totalorder %s16, 1
        %s187 = scalar_select %p186, %s16, 1
        %s188 = smul.addr %s187, 2
        %s189 = smul.addr %s188, 8
        %s190 = scalar_lea.vmem %s3, %s189
        %p191 = scmp.lt.s32.totalorder %s16, 1
        %s192 = scalar_select %p191, %s16, 1
        %s193 = smul.addr %s192, 2
        %s194 = smul.addr %s193, 8
        %s195 = scalar_lea.vmem %s0, %s194
        %p196 = scmp.lt.s32.totalorder %s16, 1
        %s197 = scalar_select %p196, %s16, 1
        %s198 = smul.addr %s197, 2
        %s199 = smul.addr %s198, 8
        %s200 = scalar_lea.vmem %s3, %s199
        %v201 = vld [vmem:[%s195] sm:$0xff]
        %v202 = vld [vmem:[%s195 + $0x8] sm:$0xff]
        %v203 = vpack.c.bf16 %v201, %v201
        %v204 = vpack.c.bf16 %v202, %v202
        %v205 = vld [vmem:[#allocation2] sm:$0xff]
        %v206 = vld [vmem:[#allocation2 + $0x8] sm:$0xff]
        %v207 = vld [vmem:[#allocation2 + $0x10] sm:$0xff]
        %v208 = vld [vmem:[#allocation2 + $0x18] sm:$0xff]
        %v209 = vld [vmem:[#allocation2 + $0x20] sm:$0xff]
        %v210 = vld [vmem:[#allocation2 + $0x28] sm:$0xff]
        %v211 = vld [vmem:[#allocation2 + $0x30] sm:$0xff]
        %v212 = vld [vmem:[#allocation2 + $0x38] sm:$0xff]
        %v213 = vld [vmem:[#allocation2 + $0x40] sm:$0xff]
        %v214 = vld [vmem:[#allocation2 + $0x48] sm:$0xff]
        %v215 = vld [vmem:[#allocation2 + $0x50] sm:$0xff]
        %v216 = vld [vmem:[#allocation2 + $0x58] sm:$0xff]
        %v217 = vld [vmem:[#allocation2 + $0x60] sm:$0xff]
        %v218 = vld [vmem:[#allocation2 + $0x68] sm:$0xff]
        %v219 = vld [vmem:[#allocation2 + $0x70] sm:$0xff]
        %v220 = vld [vmem:[#allocation2 + $0x78] sm:$0xff]
        %v221 = vld [vmem:[#allocation2 + $0x80] sm:$0xff]
        %v222 = vld [vmem:[#allocation2 + $0x88] sm:$0xff]
        %v223 = vld [vmem:[#allocation2 + $0x90] sm:$0xff]
        %v224 = vld [vmem:[#allocation2 + $0x98] sm:$0xff]
        %v225 = vld [vmem:[#allocation2 + $0xa0] sm:$0xff]
        %v226 = vld [vmem:[#allocation2 + $0xa8] sm:$0xff]
        %v227 = vld [vmem:[#allocation2 + $0xb0] sm:$0xff]
        %v228 = vld [vmem:[#allocation2 + $0xb8] sm:$0xff]
        %v229 = vld [vmem:[#allocation2 + $0xc0] sm:$0xff]
        %v230 = vld [vmem:[#allocation2 + $0xc8] sm:$0xff]
        %v231 = vld [vmem:[#allocation2 + $0xd0] sm:$0xff]
        %v232 = vld [vmem:[#allocation2 + $0xd8] sm:$0xff]
        %v233 = vld [vmem:[#allocation2 + $0xe0] sm:$0xff]
        %v234 = vld [vmem:[#allocation2 + $0xe8] sm:$0xff]
        %v235 = vld [vmem:[#allocation2 + $0xf0] sm:$0xff]
        %v236 = vld [vmem:[#allocation2 + $0xf8] sm:$0xff]
        %v269 = vunpack.c.l.b16 %v205
        %v270 = vunpack.c.h.b16 %v205
        %v271 = vunpack.c.l.b16 %v206
        %v272 = vunpack.c.h.b16 %v206
        %v273 = vunpack.c.l.b16 %v207
        %v274 = vunpack.c.h.b16 %v207
        %v275 = vunpack.c.l.b16 %v208
        %v276 = vunpack.c.h.b16 %v208
        %v277 = vunpack.c.l.b16 %v209
        %v278 = vunpack.c.h.b16 %v209
        %v279 = vunpack.c.l.b16 %v210
        %v280 = vunpack.c.h.b16 %v210
        %v281 = vunpack.c.l.b16 %v211
        %v282 = vunpack.c.h.b16 %v211
        %v283 = vunpack.c.l.b16 %v212
        %v284 = vunpack.c.h.b16 %v212
        %v285 = vunpack.c.l.b16 %v213
        %v286 = vunpack.c.h.b16 %v213
        %v287 = vunpack.c.l.b16 %v214
        %v288 = vunpack.c.h.b16 %v214
        %v289 = vunpack.c.l.b16 %v215
        %v290 = vunpack.c.h.b16 %v215
        %v291 = vunpack.c.l.b16 %v216
        %v292 = vunpack.c.h.b16 %v216
        %v293 = vunpack.c.l.b16 %v217
        %v294 = vunpack.c.h.b16 %v217
        %v295 = vunpack.c.l.b16 %v218
        %v296 = vunpack.c.h.b16 %v218
        %v297 = vunpack.c.l.b16 %v219
        %v298 = vunpack.c.h.b16 %v219
        %v299 = vunpack.c.l.b16 %v220
        %v300 = vunpack.c.h.b16 %v220
        %v301 = vunpack.c.l.b16 %v221
        %v302 = vunpack.c.h.b16 %v221
        %v303 = vunpack.c.l.b16 %v222
        %v304 = vunpack.c.h.b16 %v222
        %v305 = vunpack.c.l.b16 %v223
        %v306 = vunpack.c.h.b16 %v223
        %v307 = vunpack.c.l.b16 %v224
        %v308 = vunpack.c.h.b16 %v224
        %v309 = vunpack.c.l.b16 %v225
        %v310 = vunpack.c.h.b16 %v225
        %v311 = vunpack.c.l.b16 %v226
        %v312 = vunpack.c.h.b16 %v226
        %v313 = vunpack.c.l.b16 %v227
        %v314 = vunpack.c.h.b16 %v227
        %v315 = vunpack.c.l.b16 %v228
        %v316 = vunpack.c.h.b16 %v228
        %v317 = vunpack.c.l.b16 %v229
        %v318 = vunpack.c.h.b16 %v229
        %v319 = vunpack.c.l.b16 %v230
        %v320 = vunpack.c.h.b16 %v230
        %v321 = vunpack.c.l.b16 %v231
        %v322 = vunpack.c.h.b16 %v231
        %v323 = vunpack.c.l.b16 %v232
        %v324 = vunpack.c.h.b16 %v232
        %v325 = vunpack.c.l.b16 %v233
        %v326 = vunpack.c.h.b16 %v233
        %v327 = vunpack.c.l.b16 %v234
        %v328 = vunpack.c.h.b16 %v234
        %v329 = vunpack.c.l.b16 %v235
        %v330 = vunpack.c.h.b16 %v235
        %v331 = vunpack.c.l.b16 %v236
        %v332 = vunpack.c.h.b16 %v236
        %v333 = vpack.c.b16 %v271, %v269
        %v334 = vpack.c.b16 %v272, %v270
        %v335 = vpack.c.b16 %v275, %v273
        %v336 = vpack.c.b16 %v276, %v274
        %v337 = vpack.c.b16 %v279, %v277
        %v338 = vpack.c.b16 %v280, %v278
        %v339 = vpack.c.b16 %v283, %v281
        %v340 = vpack.c.b16 %v284, %v282
        %v341 = vpack.c.b16 %v287, %v285
        %v342 = vpack.c.b16 %v288, %v286
        %v343 = vpack.c.b16 %v291, %v289
        %v344 = vpack.c.b16 %v292, %v290
        %v345 = vpack.c.b16 %v295, %v293
        %v346 = vpack.c.b16 %v296, %v294
        %v347 = vpack.c.b16 %v299, %v297
        %v348 = vpack.c.b16 %v300, %v298
        %v349 = vpack.c.b16 %v303, %v301
        %v350 = vpack.c.b16 %v304, %v302
        %v351 = vpack.c.b16 %v307, %v305
        %v352 = vpack.c.b16 %v308, %v306
        %v353 = vpack.c.b16 %v311, %v309
        %v354 = vpack.c.b16 %v312, %v310
        %v355 = vpack.c.b16 %v315, %v313
        %v356 = vpack.c.b16 %v316, %v314
        %v357 = vpack.c.b16 %v319, %v317
        %v358 = vpack.c.b16 %v320, %v318
        %v359 = vpack.c.b16 %v323, %v321
        %v360 = vpack.c.b16 %v324, %v322
        %v361 = vpack.c.b16 %v327, %v325
        %v362 = vpack.c.b16 %v328, %v326
        %v363 = vpack.c.b16 %v331, %v329
        %v364 = vpack.c.b16 %v332, %v330
        %397 = vmatprep.subr.bf16.mxu0 %v348
        %398 = vmatpush1.bf16.msra.mxu0 %v347
        %399 = vmatprep.subr.bf16.mxu0 %v346
        %400 = vmatpush1.bf16.msra.mxu0 %v345
        %401 = vmatprep.subr.bf16.mxu0 %v344
        %402 = vmatpush1.bf16.msra.mxu0 %v343
        %403 = vmatprep.subr.bf16.mxu0 %v342
        %404 = vmatpush1.bf16.msra.mxu0 %v341
        %405 = vmatprep.subr.bf16.mxu0 %v340
        %406 = vmatpush1.bf16.msra.mxu0 %v339
        %407 = vmatprep.subr.bf16.mxu0 %v338
        %408 = vmatpush1.bf16.msra.mxu0 %v337
        %409 = vmatprep.subr.bf16.mxu0 %v336
        %410 = vmatpush1.bf16.msra.mxu0 %v335
        %411 = vmatprep.subr.bf16.mxu0 %v334
        %412 = vmatpush1.bf16.msra.mxu0 %v333
        %413 = vmatprep.subr.bf16.mxu0 %v364
        %414 = vmatpush2.bf16.msra.mxu0 %v363
        %415 = vmatprep.subr.bf16.mxu0 %v362
        %416 = vmatpush2.bf16.msra.mxu0 %v361
        %417 = vmatprep.subr.bf16.mxu0 %v360
        %418 = vmatpush2.bf16.msra.mxu0 %v359
        %419 = vmatprep.subr.bf16.mxu0 %v358
        %420 = vmatpush2.bf16.msra.mxu0 %v357
        %421 = vmatprep.subr.bf16.mxu0 %v356
        %422 = vmatpush2.bf16.msra.mxu0 %v355
        %423 = vmatprep.subr.bf16.mxu0 %v354
        %424 = vmatpush2.bf16.msra.mxu0 %v353
        %425 = vmatprep.subr.bf16.mxu0 %v352
        %426 = vmatpush2.bf16.msra.mxu0 %v351
        %427 = vmatprep.subr.bf16.mxu0 %v350
        %428 = vmatpush2.bf16.msra.mxu0 %v349
        %429 = vmatprep.mubr.bf16.mxu0 %v204
        %430 = vmatmul.mubr.bf16.gmra.mxu0 %v203
        %v431 = vpop.f32.mrf.mxu0
        %v432 = vadd.f32 0.0, %v431
        %v433 = vpop.f32.mrf.mxu0
        %v434 = vadd.f32 0.0, %v433
        %v435 = vpop.f32.mrf.mxu0
        %v436 = vpop.f32.mrf.mxu0
        %437 = vdwg.mxu0
        %vm438 = vcmp.gt.f32.partialorder %v432, 0.0
        %vm439 = vcmp.gt.f32.partialorder %v434, 0.0
        %v440 = vmin.f32 %v432, 0.0
        %v441 = vmin.f32 %v434, 0.0
        %v442 = vmul.f32 %v440, 1.442695
        %v443 = vpow.pop %v442
        %v444 = vmul.f32 %v441, 1.442695
        %v445 = vpow.pop %v444
        %v446 = vsub.f32 %v443, 1.0
        %v447 = vsub.f32 %v445, 1.0
        %v448 = vsel %vm438, %v432, %v446
        %v449 = vsel %vm439, %v434, %v447
        %v450 = vadd.f32 %v448, %v449
        %451 = vadd.xlane.f32.xlu0 %v450
        %v452 = vpop.xlane.xlu0 %451
        %v453 = vrcp.pop 256.0
        %v454 = vmul.f32 %v452, %v453
        %v455 = vsub.f32 %v448, %v454
        %v456 = vsub.f32 %v449, %v454
        %v457 = vmul.f32 %v455, %v455
        %v458 = vmul.f32 %v456, %v456
        %v459 = vadd.f32 %v457, %v458
        %460 = vadd.xlane.f32.xlu0 %v459
        %v461 = vpop.xlane.xlu0 %460
        %v462 = vmul.f32 %v461, %v453
        %v463 = vadd.f32 %v462, 1e-05
        %v464 = vrsqrt.pop %v463
        %v465 = vmul.f32 %v455, %v464
        %v466 = vmul.f32 %v456, %v464
        %v467 = vpack.c.bf16 %v465, %v465
        %v468 = vpack.c.bf16 %v466, %v466
        %v469 = vld [vmem:[#allocation4] sm:$0xff]
        %v470 = vld [vmem:[#allocation4 + $0x8] sm:$0xff]
        %v471 = vld [vmem:[#allocation4 + $0x10] sm:$0xff]
        %v472 = vld [vmem:[#allocation4 + $0x18] sm:$0xff]
        %v473 = vld [vmem:[#allocation4 + $0x20] sm:$0xff]
        %v474 = vld [vmem:[#allocation4 + $0x28] sm:$0xff]
        %v475 = vld [vmem:[#allocation4 + $0x30] sm:$0xff]
        %v476 = vld [vmem:[#allocation4 + $0x38] sm:$0xff]
        %v477 = vld [vmem:[#allocation4 + $0x40] sm:$0xff]
        %v478 = vld [vmem:[#allocation4 + $0x48] sm:$0xff]
        %v479 = vld [vmem:[#allocation4 + $0x50] sm:$0xff]
        %v480 = vld [vmem:[#allocation4 + $0x58] sm:$0xff]
        %v481 = vld [vmem:[#allocation4 + $0x60] sm:$0xff]
        %v482 = vld [vmem:[#allocation4 + $0x68] sm:$0xff]
        %v483 = vld [vmem:[#allocation4 + $0x70] sm:$0xff]
        %v484 = vld [vmem:[#allocation4 + $0x78] sm:$0xff]
        %v485 = vld [vmem:[#allocation4 + $0x80] sm:$0xff]
        %v486 = vld [vmem:[#allocation4 + $0x88] sm:$0xff]
        %v487 = vld [vmem:[#allocation4 + $0x90] sm:$0xff]
        %v488 = vld [vmem:[#allocation4 + $0x98] sm:$0xff]
        %v489 = vld [vmem:[#allocation4 + $0xa0] sm:$0xff]
        %v490 = vld [vmem:[#allocation4 + $0xa8] sm:$0xff]
        %v491 = vld [vmem:[#allocation4 + $0xb0] sm:$0xff]
        %v492 = vld [vmem:[#allocation4 + $0xb8] sm:$0xff]
        %v493 = vld [vmem:[#allocation4 + $0xc0] sm:$0xff]
        %v494 = vld [vmem:[#allocation4 + $0xc8] sm:$0xff]
        %v495 = vld [vmem:[#allocation4 + $0xd0] sm:$0xff]
        %v496 = vld [vmem:[#allocation4 + $0xd8] sm:$0xff]
        %v497 = vld [vmem:[#allocation4 + $0xe0] sm:$0xff]
        %v498 = vld [vmem:[#allocation4 + $0xe8] sm:$0xff]
        %v499 = vld [vmem:[#allocation4 + $0xf0] sm:$0xff]
        %v500 = vld [vmem:[#allocation4 + $0xf8] sm:$0xff]
        %v533 = vunpack.c.l.b16 %v469
        %v534 = vunpack.c.h.b16 %v469
        %v535 = vunpack.c.l.b16 %v470
        %v536 = vunpack.c.h.b16 %v470
        %v537 = vunpack.c.l.b16 %v471
        %v538 = vunpack.c.h.b16 %v471
        %v539 = vunpack.c.l.b16 %v472
        %v540 = vunpack.c.h.b16 %v472
        %v541 = vunpack.c.l.b16 %v473
        %v542 = vunpack.c.h.b16 %v473
        %v543 = vunpack.c.l.b16 %v474
        %v544 = vunpack.c.h.b16 %v474
        %v545 = vunpack.c.l.b16 %v475
        %v546 = vunpack.c.h.b16 %v475
        %v547 = vunpack.c.l.b16 %v476
        %v548 = vunpack.c.h.b16 %v476
        %v549 = vunpack.c.l.b16 %v477
        %v550 = vunpack.c.h.b16 %v477
        %v551 = vunpack.c.l.b16 %v478
        %v552 = vunpack.c.h.b16 %v478
        %v553 = vunpack.c.l.b16 %v479
        %v554 = vunpack.c.h.b16 %v479
        %v555 = vunpack.c.l.b16 %v480
        %v556 = vunpack.c.h.b16 %v480
        %v557 = vunpack.c.l.b16 %v481
        %v558 = vunpack.c.h.b16 %v481
        %v559 = vunpack.c.l.b16 %v482
        %v560 = vunpack.c.h.b16 %v482
        %v561 = vunpack.c.l.b16 %v483
        %v562 = vunpack.c.h.b16 %v483
        %v563 = vunpack.c.l.b16 %v484
        %v564 = vunpack.c.h.b16 %v484
        %v565 = vunpack.c.l.b16 %v485
        %v566 = vunpack.c.h.b16 %v485
        %v567 = vunpack.c.l.b16 %v486
        %v568 = vunpack.c.h.b16 %v486
        %v569 = vunpack.c.l.b16 %v487
        %v570 = vunpack.c.h.b16 %v487
        %v571 = vunpack.c.l.b16 %v488
        %v572 = vunpack.c.h.b16 %v488
        %v573 = vunpack.c.l.b16 %v489
        %v574 = vunpack.c.h.b16 %v489
        %v575 = vunpack.c.l.b16 %v490
        %v576 = vunpack.c.h.b16 %v490
        %v577 = vunpack.c.l.b16 %v491
        %v578 = vunpack.c.h.b16 %v491
        %v579 = vunpack.c.l.b16 %v492
        %v580 = vunpack.c.h.b16 %v492
        %v581 = vunpack.c.l.b16 %v493
        %v582 = vunpack.c.h.b16 %v493
        %v583 = vunpack.c.l.b16 %v494
        %v584 = vunpack.c.h.b16 %v494
        %v585 = vunpack.c.l.b16 %v495
        %v586 = vunpack.c.h.b16 %v495
        %v587 = vunpack.c.l.b16 %v496
        %v588 = vunpack.c.h.b16 %v496
        %v589 = vunpack.c.l.b16 %v497
        %v590 = vunpack.c.h.b16 %v497
        %v591 = vunpack.c.l.b16 %v498
        %v592 = vunpack.c.h.b16 %v498
        %v593 = vunpack.c.l.b16 %v499
        %v594 = vunpack.c.h.b16 %v499
        %v595 = vunpack.c.l.b16 %v500
        %v596 = vunpack.c.h.b16 %v500
        %v597 = vpack.c.b16 %v535, %v533
        %v598 = vpack.c.b16 %v536, %v534
        %v599 = vpack.c.b16 %v539, %v537
        %v600 = vpack.c.b16 %v540, %v538
        %v601 = vpack.c.b16 %v543, %v541
        %v602 = vpack.c.b16 %v544, %v542
        %v603 = vpack.c.b16 %v547, %v545
        %v604 = vpack.c.b16 %v548, %v546
        %v605 = vpack.c.b16 %v551, %v549
        %v606 = vpack.c.b16 %v552, %v550
        %v607 = vpack.c.b16 %v555, %v553
        %v608 = vpack.c.b16 %v556, %v554
        %v609 = vpack.c.b16 %v559, %v557
        %v610 = vpack.c.b16 %v560, %v558
        %v611 = vpack.c.b16 %v563, %v561
        %v612 = vpack.c.b16 %v564, %v562
        %v613 = vpack.c.b16 %v567, %v565
        %v614 = vpack.c.b16 %v568, %v566
        %v615 = vpack.c.b16 %v571, %v569
        %v616 = vpack.c.b16 %v572, %v570
        %v617 = vpack.c.b16 %v575, %v573
        %v618 = vpack.c.b16 %v576, %v574
        %v619 = vpack.c.b16 %v579, %v577
        %v620 = vpack.c.b16 %v580, %v578
        %v621 = vpack.c.b16 %v583, %v581
        %v622 = vpack.c.b16 %v584, %v582
        %v623 = vpack.c.b16 %v587, %v585
        %v624 = vpack.c.b16 %v588, %v586
        %v625 = vpack.c.b16 %v591, %v589
        %v626 = vpack.c.b16 %v592, %v590
        %v627 = vpack.c.b16 %v595, %v593
        %v628 = vpack.c.b16 %v596, %v594
        %661 = vmatprep.subr.bf16.mxu0 %v612
        %662 = vmatpush1.bf16.msra.mxu0 %v611
        %663 = vmatprep.subr.bf16.mxu0 %v610
        %664 = vmatpush1.bf16.msra.mxu0 %v609
        %665 = vmatprep.subr.bf16.mxu0 %v608
        %666 = vmatpush1.bf16.msra.mxu0 %v607
        %667 = vmatprep.subr.bf16.mxu0 %v606
        %668 = vmatpush1.bf16.msra.mxu0 %v605
        %669 = vmatprep.subr.bf16.mxu0 %v604
        %670 = vmatpush1.bf16.msra.mxu0 %v603
        %671 = vmatprep.subr.bf16.mxu0 %v602
        %672 = vmatpush1.bf16.msra.mxu0 %v601
        %673 = vmatprep.subr.bf16.mxu0 %v600
        %674 = vmatpush1.bf16.msra.mxu0 %v599
        %675 = vmatprep.subr.bf16.mxu0 %v598
        %676 = vmatpush1.bf16.msra.mxu0 %v597
        %677 = vmatprep.subr.bf16.mxu0 %v628
        %678 = vmatpush2.bf16.msra.mxu0 %v627
        %679 = vmatprep.subr.bf16.mxu0 %v626
        %680 = vmatpush2.bf16.msra.mxu0 %v625
        %681 = vmatprep.subr.bf16.mxu0 %v624
        %682 = vmatpush2.bf16.msra.mxu0 %v623
        %683 = vmatprep.subr.bf16.mxu0 %v622
        %684 = vmatpush2.bf16.msra.mxu0 %v621
        %685 = vmatprep.subr.bf16.mxu0 %v620
        %686 = vmatpush2.bf16.msra.mxu0 %v619
        %687 = vmatprep.subr.bf16.mxu0 %v618
        %688 = vmatpush2.bf16.msra.mxu0 %v617
        %689 = vmatprep.subr.bf16.mxu0 %v616
        %690 = vmatpush2.bf16.msra.mxu0 %v615
        %691 = vmatprep.subr.bf16.mxu0 %v614
        %692 = vmatpush2.bf16.msra.mxu0 %v613
        %693 = vmatprep.mubr.bf16.mxu0 %v468
        %694 = vmatmul.mubr.bf16.gmra.mxu0 %v467
        %v695 = vpop.f32.mrf.mxu0
        %v696 = vadd.f32 %v201, %v695
        %v697 = vpop.f32.mrf.mxu0
        %v698 = vadd.f32 %v202, %v697
        %v699 = vpop.f32.mrf.mxu0
        %v700 = vpop.f32.mrf.mxu0
        %701 = vdwg.mxu0
        %vm702 = vcmp.gt.f32.partialorder %v696, 0.0
        %vm703 = vcmp.gt.f32.partialorder %v698, 0.0
        %v704 = vmin.f32 %v696, 0.0
        %v705 = vmin.f32 %v698, 0.0
        %v706 = vmul.f32 %v704, 1.442695
        %v707 = vpow.pop %v706
        %v708 = vmul.f32 %v705, 1.442695
        %v709 = vpow.pop %v708
        %v710 = vsub.f32 %v707, 1.0
        %v711 = vsub.f32 %v709, 1.0
        %v712 = vsel %vm702, %v696, %v710
        %v713 = vsel %vm703, %v698, %v711
        %714 = vst [vmem:[%s200] sm:$0xff] %v712
        %715 = vst [vmem:[%s200 + $0x8] sm:$0xff] %v713
        %p716 = scmp.lt.s32.totalorder %s16, 1
        %s717 = scalar_select %p716, %s16, 1
        %s718 = smul.addr %s717, 2
        %s719 = smul.addr %s718, 8
        %s720 = scalar_lea.vmem %s3, %s719
        // Predicated region
        $region41: #{lex3d_forward.4} parent=31 // pred_check
          %p721 = pneg %p102
        $region42: #{lex3d_forward.4} parent=31 // pred_check_branch
          %723 = sbr.rel (%p721) target = $region44
        $region43: #{lex3d_forward.4} parent=31 // pred_region
          _
        $region44: #{lex3d_forward.4} parent=31 // pred_fallthru
          _
      $region32: #{lex3d_forward.4} parent=5 // pred_fallthru
        _
      %p724 = scmp.le.s32.totalorder 2, %s11
      // Predicated region
      $region45: #{lex3d_forward.4} parent=5 // pred_check
        %p725 = pneg %p724
      $region46: #{lex3d_forward.4} parent=5 // pred_check_branch
        %727 = sbr.rel (%p725) target = $region48
      $region47: #{lex3d_forward.4} parent=5 // pred_region
        %s728 = ssub.s32 %s11, 2
        // Predicated region
        $region49: #{lex3d_forward.4} parent=47 // pred_check
          %p729 = pneg %p108
        $region50: #{lex3d_forward.4} parent=47 // pred_check_branch
          %731 = sbr.rel (%p729) target = $region52
        $region51: #{lex3d_forward.4} parent=47 // pred_region
          %p732 = scmp.lt.s32.totalorder %s17, 1
          %s733 = scalar_select %p732, %s17, 1
          %s734 = smul.addr %s733, 2
          %s735 = smul.addr %s734, 8
          %s736 = scalar_lea.vmem %s3, %s735
        $region52: #{lex3d_forward.4} parent=47 // pred_fallthru
          _
      $region48: #{lex3d_forward.4} parent=5 // pred_fallthru
        _
    $region6: #{lex3d_forward.4} parent=1 // loop_footer
      %s15 = sadd.s32 1, %s11
    $region7: #{lex3d_forward.4} parent=1 // loop_footer_branch
      %10 = sbr.rel target = $region3
    $region8: #{lex3d_forward.4} parent=1 // loop_exit
      _
    %737 = vsyncpa [#allocation3], 1
    %s738 = scalar_lea.sflag [#allocation3], 1
    %739 = vsyncpa %s738, 1
    %740 = vsyncpa [#allocation5], 1

// kernel: lex3d_forward.7
$region0: #{lex3d_forward.7}
  #allocation0 [shape = 'u32[]', space=smem, size = 0x4, offset = 0x4, fixed_abs, tag = 'smem constant byte address 0x4 - core index']
  #allocation1 [shape = 'u32[144,128]{1,0:T(1,128)}', space=vmem, size = 0x12000, scoped, tag = 'internal scratch']
  %s0 = inlined_call_operand.vmem [shape: f32[16,256], index: 0, kind: input, shape index: {}]
  %s1 = inlined_call_operand.vmem [shape: bf16[256,256], index: 1, kind: input, shape index: {}]
  %s2 = inlined_call_operand.vmem [shape: bf16[256,256], index: 2, kind: input, shape index: {}]
  %s3 = inlined_call_operand.vmem [shape: bf16[256,256], index: 3, kind: input, shape index: {}]
  %s4 = inlined_call_operand.hbm [shape: f32[16,256], index: 4, kind: output, shape index: {}]
  %s5 = sld [smem:[#allocation0]]
  $region49: #{lex3d_forward.7} parent=0
    _
  %s7 = ssub.s32 1, %s5
  %s8 = scalar_select 0, %s7, %s5
  $region1: #{lex3d_forward.7} parent=0
    #allocation2 [shape = 'u8[16384]{0}', space=vmem, size = 0x4000, scoped, tag = 'output window, operand 0']
    #allocation3 [shape = 's32[2]{0}', space=sflag, size = 0x8, scoped, tag = 'scoped memory for lex3d_forward.7']
    %9 = vsyncpa [#allocation3], 0
    %s10 = scalar_lea.sflag [#allocation3], 1
    %11 = vsyncpa %s10, 0
    loop: start=0, step=1, limit=4
    $region2: #{lex3d_forward.7} parent=1 // loop_pre_header
      _
    $region3: #{lex3d_forward.7} parent=1 // loop_header
      %s13 = sphi 0, %s17
      %p14 = scmp.ge.s32.totalorder %s13, 4
      %s23 = sphi 0, %s25
      %s26 = sphi 0, %s23
      %s27 = sphi 0, %s26
      %s43 = sphi 0, %s27
      %s47 = sphi 0, %s47
      %s49 = sphi 0, %s47
      %s50 = sphi 0, %s49
      %s64 = sphi 0, %s50
      %s68 = sphi 0, %s68
      %s70 = sphi 0, %s68
      %s71 = sphi 0, %s70
      %s85 = sphi 0, %s71
      %s89 = sphi 0, %s89
      %s91 = sphi 0, %s89
      %s92 = sphi 0, %s91
      %s106 = sphi 0, %s92
      %s112 = sphi 0, %s114
      %s115 = sphi 0, %s112
      %s116 = sphi 0, %s115
      %s132 = sphi 0, %s116
    $region4: #{lex3d_forward.7} parent=1 // loop_header_branch
      %16 = sbr.rel (%p14) target = $region8
    $region5: #{lex3d_forward.7} parent=1 // loop_body
      %s18 = ssub.s32 %s13, 1
      %s19 = ssub.s32 %s13, 2
      %s20 = sadd.s32 %s13, 1
      %s21 = ssub.s32 %s13, %s20
      %p22 = scmp.eq.s32.totalorder %s21, 0
      %s24 = sadd.s32 %s23, 1
      %s25 = scalar_select %p22, %s23, %s24
      %p28 = pneg %p22
      %p29 = scmp.eq.s32.totalorder %s13, 1
      %p30 = por %p28, %p29
      %p31 = scmp.ne.s32.totalorder %s23, %s26
      %p32 = scmp.eq.s32.totalorder %s13, 0
      %p33 = por %p31, %p32
      %p34 = scmp.ne.s32.totalorder %s23, %s26
      %p35 = scmp.eq.s32.totalorder %s18, 1
      %p36 = por %p34, %p35
      %p37 = scmp.ne.s32.totalorder %s26, %s27
      %p38 = scmp.eq.s32.totalorder %s18, 0
      %p39 = por %p37, %p38
      %p40 = scmp.ne.s32.totalorder %s26, %s27
      %p41 = scmp.eq.s32.totalorder %s19, 1
      %p42 = por %p40, %p41
      %p44 = scmp.ne.s32.totalorder %s27, %s43
      %p45 = scmp.eq.s32.totalorder %s19, 0
      %p46 = por %p44, %p45
      %s48 = sadd.s32 %s47, 1
      %p51 = scmp.eq.s32.totalorder %s13, 1
      %p52 = scmp.ne.s32.totalorder %s47, %s49
      %p53 = scmp.eq.s32.totalorder %s13, 0
      %p54 = por %p52, %p53
      %p55 = scmp.ne.s32.totalorder %s47, %s49
      %p56 = scmp.eq.s32.totalorder %s18, 1
      %p57 = por %p55, %p56
      %p58 = scmp.ne.s32.totalorder %s49, %s50
      %p59 = scmp.eq.s32.totalorder %s18, 0
      %p60 = por %p58, %p59
      %p61 = scmp.ne.s32.totalorder %s49, %s50
      %p62 = scmp.eq.s32.totalorder %s19, 1
      %p63 = por %p61, %p62
      %p65 = scmp.ne.s32.totalorder %s50, %s64
      %p66 = scmp.eq.s32.totalorder %s19, 0
      %p67 = por %p65, %p66
      %s69 = sadd.s32 %s68, 1
      %p72 = scmp.eq.s32.totalorder %s13, 1
      %p73 = scmp.ne.s32.totalorder %s68, %s70
      %p74 = scmp.eq.s32.totalorder %s13, 0
      %p75 = por %p73, %p74
      %p76 = scmp.ne.s32.totalorder %s68, %s70
      %p77 = scmp.eq.s32.totalorder %s18, 1
      %p78 = por %p76, %p77
      %p79 = scmp.ne.s32.totalorder %s70, %s71
      %p80 = scmp.eq.s32.totalorder %s18, 0
      %p81 = por %p79, %p80
      %p82 = scmp.ne.s32.totalorder %s70, %s71
      %p83 = scmp.eq.s32.totalorder %s19, 1
      %p84 = por %p82, %p83
      %p86 = scmp.ne.s32.totalorder %s71, %s85
      %p87 = scmp.eq.s32.totalorder %s19, 0
      %p88 = por %p86, %p87
      %s90 = sadd.s32 %s89, 1
      %p93 = scmp.eq.s32.totalorder %s13, 1
      %p94 = scmp.ne.s32.totalorder %s89, %s91
      %p95 = scmp.eq.s32.totalorder %s13, 0
      %p96 = por %p94, %p95
      %p97 = scmp.ne.s32.totalorder %s89, %s91
      %p98 = scmp.eq.s32.totalorder %s18, 1
      %p99 = por %p97, %p98
      %p100 = scmp.ne.s32.totalorder %s91, %s92
      %p101 = scmp.eq.s32.totalorder %s18, 0
      %p102 = por %p100, %p101
      %p103 = scmp.ne.s32.totalorder %s91, %s92
      %p104 = scmp.eq.s32.totalorder %s19, 1
      %p105 = por %p103, %p104
      %p107 = scmp.ne.s32.totalorder %s92, %s106
      %p108 = scmp.eq.s32.totalorder %s19, 0
      %p109 = por %p107, %p108
      %s110 = ssub.s32 %s13, %s20
      %p111 = scmp.eq.s32.totalorder %s110, 0
      %s113 = sadd.s32 %s112, 1
      %s114 = scalar_select %p111, %s112, %s113
      %p117 = pneg %p111
      %p118 = scmp.eq.s32.totalorder %s13, 1
      %p119 = por %p117, %p118
      %p120 = scmp.ne.s32.totalorder %s112, %s115
      %p121 = scmp.eq.s32.totalorder %s13, 0
      %p122 = por %p120, %p121
      %p123 = scmp.ne.s32.totalorder %s112, %s115
      %p124 = scmp.eq.s32.totalorder %s18, 1
      %p125 = por %p123, %p124
      %p126 = scmp.ne.s32.totalorder %s115, %s116
      %p127 = scmp.eq.s32.totalorder %s18, 0
      %p128 = por %p126, %p127
      %p129 = scmp.ne.s32.totalorder %s115, %s116
      %p130 = scmp.eq.s32.totalorder %s19, 1
      %p131 = por %p129, %p130
      %p133 = scmp.ne.s32.totalorder %s116, %s132
      %p134 = scmp.eq.s32.totalorder %s19, 0
      %p135 = por %p133, %p134
      %p136 = scmp.le.s32.totalorder 1, %s13
      %p137 = scmp.lt.s32.totalorder %s13, 3
      %p138 = pnand %p136, %p137
      %p139 = pneg %p138
      // Predicated region
      $region9: #{lex3d_forward.7} parent=5 // pred_check
        _
      $region10: #{lex3d_forward.7} parent=5 // pred_check_branch
        %141 = sbr.rel (%p138) target = $region12
      $region11: #{lex3d_forward.7} parent=5 // pred_region
        %s142 = ssub.s32 %s13, 1
        // Predicated region
        $region13: #{lex3d_forward.7} parent=11 // pred_check
          %p143 = pneg %p60
        $region14: #{lex3d_forward.7} parent=11 // pred_check_branch
          %145 = sbr.rel (%p143) target = $region16
        $region15: #{lex3d_forward.7} parent=11 // pred_region
          _
        $region16: #{lex3d_forward.7} parent=11 // pred_fallthru
          _
        // Predicated region
        $region17: #{lex3d_forward.7} parent=11 // pred_check
          %p146 = pneg %p81
        $region18: #{lex3d_forward.7} parent=11 // pred_check_branch
          %148 = sbr.rel (%p146) target = $region20
        $region19: #{lex3d_forward.7} parent=11 // pred_region
          _
        $region20: #{lex3d_forward.7} parent=11 // pred_fallthru
          _
        // Predicated region
        $region21: #{lex3d_forward.7} parent=11 // pred_check
          %p149 = pneg %p102
        $region22: #{lex3d_forward.7} parent=11 // pred_check_branch
          %151 = sbr.rel (%p149) target = $region24
        $region23: #{lex3d_forward.7} parent=11 // pred_region
          _
        $region24: #{lex3d_forward.7} parent=11 // pred_fallthru
          _
      $region12: #{lex3d_forward.7} parent=5 // pred_fallthru
        _
      %p152 = scmp.lt.s32.totalorder %s13, 2
      // Predicated region
      $region25: #{lex3d_forward.7} parent=5 // pred_check
        %p153 = pneg %p152
      $region26: #{lex3d_forward.7} parent=5 // pred_check_branch
        %155 = sbr.rel (%p153) target = $region28
      $region27: #{lex3d_forward.7} parent=5 // pred_region
        // Predicated region
        $region29: #{lex3d_forward.7} parent=27 // pred_check
          %p156 = pneg %p33
        $region30: #{lex3d_forward.7} parent=27 // pred_check_branch
          %158 = sbr.rel (%p156) target = $region32
        $region31: #{lex3d_forward.7} parent=27 // pred_region
          %p159 = scmp.lt.s32.totalorder %s13, 1
          %s160 = scalar_select %p159, %s13, 1
          %s161 = smul.addr %s160, 2
          %s162 = smul.addr %s161, 8
          %s163 = scalar_lea.vmem %s0, %s162
        $region32: #{lex3d_forward.7} parent=27 // pred_fallthru
          _
      $region28: #{lex3d_forward.7} parent=5 // pred_fallthru
        _
      %p164 = scmp.le.s32.totalorder 1, %s13
      %p165 = scmp.lt.s32.totalorder %s13, 3
      %p166 = pnand %p164, %p165
      %p167 = pneg %p166
      // Predicated region
      $region33: #{lex3d_forward.7} parent=5 // pred_check
        _
      $region34: #{lex3d_forward.7} parent=5 // pred_check_branch
        %169 = sbr.rel (%p166) target = $region36
      $region35: #{lex3d_forward.7} parent=5 // pred_region
        %s170 = ssub.s32 %s13, 1
        %p171 = scmp.lt.s32.totalorder %s18, 1
        %s172 = scalar_select %p171, %s18, 1
        %s173 = smul.addr %s172, 2
        %s174 = smul.addr %s173, 8
        %s175 = scalar_lea.vmem %s0, %s174
        %p176 = pneg %p39
        %p177 = pneg %p36
        %p178 = pneg %p60
        %p179 = pneg %p57
        %p180 = pneg %p81
        %p181 = pneg %p78
        %p182 = pneg %p102
        %p183 = pneg %p99
        %p184 = pneg %p128
        %p185 = pneg %p125
        %s186 = sand.u32 %s115, 1
        %s187 = scalar_lea.sflag [#allocation3], %s186
        %s188 = sand.u32 %s115, 1
        %s189 = smul.addr %s188, 16
        %s190 = scalar_lea.vmem [#allocation2], %s189
        %p191 = scmp.lt.s32.totalorder %s18, 1
        %s192 = scalar_select %p191, %s18, 1
        %s193 = smul.addr %s192, 2
        %s194 = smul.addr %s193, 8
        %s195 = scalar_lea.vmem %s0, %s194
        %v196 = vld [vmem:[%s195] sm:$0xff]
        %v197 = vld [vmem:[%s195 + $0x8] sm:$0xff]
        %v198 = vpack.c.bf16 %v196, %v196
        %v199 = vpack.c.bf16 %v197, %v197
        %v200 = vld [vmem:[%s1] sm:$0xff]
        %v201 = vld [vmem:[%s1 + $0x8] sm:$0xff]
        %v202 = vld [vmem:[%s1 + $0x10] sm:$0xff]
        %v203 = vld [vmem:[%s1 + $0x18] sm:$0xff]
        %v204 = vld [vmem:[%s1 + $0x20] sm:$0xff]
        %v205 = vld [vmem:[%s1 + $0x28] sm:$0xff]
        %v206 = vld [vmem:[%s1 + $0x30] sm:$0xff]
        %v207 = vld [vmem:[%s1 + $0x38] sm:$0xff]
        %v208 = vld [vmem:[%s1 + $0x40] sm:$0xff]
        %v209 = vld [vmem:[%s1 + $0x48] sm:$0xff]
        %v210 = vld [vmem:[%s1 + $0x50] sm:$0xff]
        %v211 = vld [vmem:[%s1 + $0x58] sm:$0xff]
        %v212 = vld [vmem:[%s1 + $0x60] sm:$0xff]
        %v213 = vld [vmem:[%s1 + $0x68] sm:$0xff]
        %v214 = vld [vmem:[%s1 + $0x70] sm:$0xff]
        %v215 = vld [vmem:[%s1 + $0x78] sm:$0xff]
        %v216 = vld [vmem:[%s1 + $0x80] sm:$0xff]
        %v217 = vld [vmem:[%s1 + $0x88] sm:$0xff]
        %v218 = vld [vmem:[%s1 + $0x90] sm:$0xff]
        %v219 = vld [vmem:[%s1 + $0x98] sm:$0xff]
        %v220 = vld [vmem:[%s1 + $0xa0] sm:$0xff]
        %v221 = vld [vmem:[%s1 + $0xa8] sm:$0xff]
        %v222 = vld [vmem:[%s1 + $0xb0] sm:$0xff]
        %v223 = vld [vmem:[%s1 + $0xb8] sm:$0xff]
        %v224 = vld [vmem:[%s1 + $0xc0] sm:$0xff]
        %v225 = vld [vmem:[%s1 + $0xc8] sm:$0xff]
        %v226 = vld [vmem:[%s1 + $0xd0] sm:$0xff]
        %v227 = vld [vmem:[%s1 + $0xd8] sm:$0xff]
        %v228 = vld [vmem:[%s1 + $0xe0] sm:$0xff]
        %v229 = vld [vmem:[%s1 + $0xe8] sm:$0xff]
        %v230 = vld [vmem:[%s1 + $0xf0] sm:$0xff]
        %v231 = vld [vmem:[%s1 + $0xf8] sm:$0xff]
        %v264 = vunpack.c.l.b16 %v200
        %v265 = vunpack.c.h.b16 %v200
        %v266 = vunpack.c.l.b16 %v201
        %v267 = vunpack.c.h.b16 %v201
        %v268 = vunpack.c.l.b16 %v202
        %v269 = vunpack.c.h.b16 %v202
        %v270 = vunpack.c.l.b16 %v203
        %v271 = vunpack.c.h.b16 %v203
        %v272 = vunpack.c.l.b16 %v204
        %v273 = vunpack.c.h.b16 %v204
        %v274 = vunpack.c.l.b16 %v205
        %v275 = vunpack.c.h.b16 %v205
        %v276 = vunpack.c.l.b16 %v206
        %v277 = vunpack.c.h.b16 %v206
        %v278 = vunpack.c.l.b16 %v207
        %v279 = vunpack.c.h.b16 %v207
        %v280 = vunpack.c.l.b16 %v208
        %v281 = vunpack.c.h.b16 %v208
        %v282 = vunpack.c.l.b16 %v209
        %v283 = vunpack.c.h.b16 %v209
        %v284 = vunpack.c.l.b16 %v210
        %v285 = vunpack.c.h.b16 %v210
        %v286 = vunpack.c.l.b16 %v211
        %v287 = vunpack.c.h.b16 %v211
        %v288 = vunpack.c.l.b16 %v212
        %v289 = vunpack.c.h.b16 %v212
        %v290 = vunpack.c.l.b16 %v213
        %v291 = vunpack.c.h.b16 %v213
        %v292 = vunpack.c.l.b16 %v214
        %v293 = vunpack.c.h.b16 %v214
        %v294 = vunpack.c.l.b16 %v215
        %v295 = vunpack.c.h.b16 %v215
        %v296 = vunpack.c.l.b16 %v216
        %v297 = vunpack.c.h.b16 %v216
        %v298 = vunpack.c.l.b16 %v217
        %v299 = vunpack.c.h.b16 %v217
        %v300 = vunpack.c.l.b16 %v218
        %v301 = vunpack.c.h.b16 %v218
        %v302 = vunpack.c.l.b16 %v219
        %v303 = vunpack.c.h.b16 %v219
        %v304 = vunpack.c.l.b16 %v220
        %v305 = vunpack.c.h.b16 %v220
        %v306 = vunpack.c.l.b16 %v221
        %v307 = vunpack.c.h.b16 %v221
        %v308 = vunpack.c.l.b16 %v222
        %v309 = vunpack.c.h.b16 %v222
        %v310 = vunpack.c.l.b16 %v223
        %v311 = vunpack.c.h.b16 %v223
        %v312 = vunpack.c.l.b16 %v224
        %v313 = vunpack.c.h.b16 %v224
        %v314 = vunpack.c.l.b16 %v225
        %v315 = vunpack.c.h.b16 %v225
        %v316 = vunpack.c.l.b16 %v226
        %v317 = vunpack.c.h.b16 %v226
        %v318 = vunpack.c.l.b16 %v227
        %v319 = vunpack.c.h.b16 %v227
        %v320 = vunpack.c.l.b16 %v228
        %v321 = vunpack.c.h.b16 %v228
        %v322 = vunpack.c.l.b16 %v229
        %v323 = vunpack.c.h.b16 %v229
        %v324 = vunpack.c.l.b16 %v230
        %v325 = vunpack.c.h.b16 %v230
        %v326 = vunpack.c.l.b16 %v231
        %v327 = vunpack.c.h.b16 %v231
        %v328 = vpack.c.b16 %v266, %v264
        %v329 = vpack.c.b16 %v267, %v265
        %v330 = vpack.c.b16 %v270, %v268
        %v331 = vpack.c.b16 %v271, %v269
        %v332 = vpack.c.b16 %v274, %v272
        %v333 = vpack.c.b16 %v275, %v273
        %v334 = vpack.c.b16 %v278, %v276
        %v335 = vpack.c.b16 %v279, %v277
        %v336 = vpack.c.b16 %v282, %v280
        %v337 = vpack.c.b16 %v283, %v281
        %v338 = vpack.c.b16 %v286, %v284
        %v339 = vpack.c.b16 %v287, %v285
        %v340 = vpack.c.b16 %v290, %v288
        %v341 = vpack.c.b16 %v291, %v289
        %v342 = vpack.c.b16 %v294, %v292
        %v343 = vpack.c.b16 %v295, %v293
        %v344 = vpack.c.b16 %v298, %v296
        %v345 = vpack.c.b16 %v299, %v297
        %v346 = vpack.c.b16 %v302, %v300
        %v347 = vpack.c.b16 %v303, %v301
        %v348 = vpack.c.b16 %v306, %v304
        %v349 = vpack.c.b16 %v307, %v305
        %v350 = vpack.c.b16 %v310, %v308
        %v351 = vpack.c.b16 %v311, %v309
        %v352 = vpack.c.b16 %v314, %v312
        %v353 = vpack.c.b16 %v315, %v313
        %v354 = vpack.c.b16 %v318, %v316
        %v355 = vpack.c.b16 %v319, %v317
        %v356 = vpack.c.b16 %v322, %v320
        %v357 = vpack.c.b16 %v323, %v321
        %v358 = vpack.c.b16 %v326, %v324
        %v359 = vpack.c.b16 %v327, %v325
        %392 = vmatprep.subr.bf16.mxu0 %v343
        %393 = vmatpush1.bf16.msra.mxu0 %v342
        %394 = vmatprep.subr.bf16.mxu0 %v341
        %395 = vmatpush1.bf16.msra.mxu0 %v340
        %396 = vmatprep.subr.bf16.mxu0 %v339
        %397 = vmatpush1.bf16.msra.mxu0 %v338
        %398 = vmatprep.subr.bf16.mxu0 %v337
        %399 = vmatpush1.bf16.msra.mxu0 %v336
        %400 = vmatprep.subr.bf16.mxu0 %v335
        %401 = vmatpush1.bf16.msra.mxu0 %v334
        %402 = vmatprep.subr.bf16.mxu0 %v333
        %403 = vmatpush1.bf16.msra.mxu0 %v332
        %404 = vmatprep.subr.bf16.mxu0 %v331
        %405 = vmatpush1.bf16.msra.mxu0 %v330
        %406 = vmatprep.subr.bf16.mxu0 %v329
        %407 = vmatpush1.bf16.msra.mxu0 %v328
        %408 = vmatprep.subr.bf16.mxu0 %v359
        %409 = vmatpush2.bf16.msra.mxu0 %v358
        %410 = vmatprep.subr.bf16.mxu0 %v357
        %411 = vmatpush2.bf16.msra.mxu0 %v356
        %412 = vmatprep.subr.bf16.mxu0 %v355
        %413 = vmatpush2.bf16.msra.mxu0 %v354
        %414 = vmatprep.subr.bf16.mxu0 %v353
        %415 = vmatpush2.bf16.msra.mxu0 %v352
        %416 = vmatprep.subr.bf16.mxu0 %v351
        %417 = vmatpush2.bf16.msra.mxu0 %v350
        %418 = vmatprep.subr.bf16.mxu0 %v349
        %419 = vmatpush2.bf16.msra.mxu0 %v348
        %420 = vmatprep.subr.bf16.mxu0 %v347
        %421 = vmatpush2.bf16.msra.mxu0 %v346
        %422 = vmatprep.subr.bf16.mxu0 %v345
        %423 = vmatpush2.bf16.msra.mxu0 %v344
        %424 = vmatprep.mubr.bf16.mxu0 %v199
        %425 = vmatmul.mubr.bf16.gmra.mxu0 %v198
        %v426 = vpop.f32.mrf.mxu0
        %v427 = vadd.f32 0.0, %v426
        %v428 = vpop.f32.mrf.mxu0
        %v429 = vadd.f32 0.0, %v428
        %v430 = vpop.f32.mrf.mxu0
        %v431 = vpop.f32.mrf.mxu0
        %432 = vdwg.mxu0
        %vm433 = vcmp.gt.f32.partialorder %v427, 0.0
        %vm434 = vcmp.gt.f32.partialorder %v429, 0.0
        %v435 = vmin.f32 %v427, 0.0
        %v436 = vmin.f32 %v429, 0.0
        %v437 = vmul.f32 %v435, 1.442695
        %v438 = vpow.pop %v437
        %v439 = vmul.f32 %v436, 1.442695
        %v440 = vpow.pop %v439
        %v441 = vsub.f32 %v438, 1.0
        %v442 = vsub.f32 %v440, 1.0
        %v443 = vsel %vm433, %v427, %v441
        %v444 = vsel %vm434, %v429, %v442
        %v445 = vadd.f32 %v443, %v444
        %446 = vadd.xlane.f32.xlu0 %v445
        %v447 = vpop.xlane.xlu0 %446
        %v448 = vrcp.pop 256.0
        %v449 = vmul.f32 %v447, %v448
        %v450 = vsub.f32 %v443, %v449
        %v451 = vsub.f32 %v444, %v449
        %v452 = vmul.f32 %v450, %v450
        %v453 = vmul.f32 %v451, %v451
        %v454 = vadd.f32 %v452, %v453
        %455 = vadd.xlane.f32.xlu0 %v454
        %v456 = vpop.xlane.xlu0 %455
        %v457 = vmul.f32 %v456, %v448
        %v458 = vadd.f32 %v457, 1e-05
        %v459 = vrsqrt.pop %v458
        %v460 = vmul.f32 %v450, %v459
        %v461 = vmul.f32 %v451, %v459
        %v462 = vpack.c.bf16 %v460, %v460
        %v463 = vpack.c.bf16 %v461, %v461
        %v464 = vld [vmem:[%s2] sm:$0xff]
        %v465 = vld [vmem:[%s2 + $0x8] sm:$0xff]
        %v466 = vld [vmem:[%s2 + $0x10] sm:$0xff]
        %v467 = vld [vmem:[%s2 + $0x18] sm:$0xff]
        %v468 = vld [vmem:[%s2 + $0x20] sm:$0xff]
        %v469 = vld [vmem:[%s2 + $0x28] sm:$0xff]
        %v470 = vld [vmem:[%s2 + $0x30] sm:$0xff]
        %v471 = vld [vmem:[%s2 + $0x38] sm:$0xff]
        %v472 = vld [vmem:[%s2 + $0x40] sm:$0xff]
        %v473 = vld [vmem:[%s2 + $0x48] sm:$0xff]
        %v474 = vld [vmem:[%s2 + $0x50] sm:$0xff]
        %v475 = vld [vmem:[%s2 + $0x58] sm:$0xff]
        %v476 = vld [vmem:[%s2 + $0x60] sm:$0xff]
        %v477 = vld [vmem:[%s2 + $0x68] sm:$0xff]
        %v478 = vld [vmem:[%s2 + $0x70] sm:$0xff]
        %v479 = vld [vmem:[%s2 + $0x78] sm:$0xff]
        %v480 = vld [vmem:[%s2 + $0x80] sm:$0xff]
        %v481 = vld [vmem:[%s2 + $0x88] sm:$0xff]
        %v482 = vld [vmem:[%s2 + $0x90] sm:$0xff]
        %v483 = vld [vmem:[%s2 + $0x98] sm:$0xff]
        %v484 = vld [vmem:[%s2 + $0xa0] sm:$0xff]
        %v485 = vld [vmem:[%s2 + $0xa8] sm:$0xff]
        %v486 = vld [vmem:[%s2 + $0xb0] sm:$0xff]
        %v487 = vld [vmem:[%s2 + $0xb8] sm:$0xff]
        %v488 = vld [vmem:[%s2 + $0xc0] sm:$0xff]
        %v489 = vld [vmem:[%s2 + $0xc8] sm:$0xff]
        %v490 = vld [vmem:[%s2 + $0xd0] sm:$0xff]
        %v491 = vld [vmem:[%s2 + $0xd8] sm:$0xff]
        %v492 = vld [vmem:[%s2 + $0xe0] sm:$0xff]
        %v493 = vld [vmem:[%s2 + $0xe8] sm:$0xff]
        %v494 = vld [vmem:[%s2 + $0xf0] sm:$0xff]
        %v495 = vld [vmem:[%s2 + $0xf8] sm:$0xff]
        %v528 = vunpack.c.l.b16 %v464
        %v529 = vunpack.c.h.b16 %v464
        %v530 = vunpack.c.l.b16 %v465
        %v531 = vunpack.c.h.b16 %v465
        %v532 = vunpack.c.l.b16 %v466
        %v533 = vunpack.c.h.b16 %v466
        %v534 = vunpack.c.l.b16 %v467
        %v535 = vunpack.c.h.b16 %v467
        %v536 = vunpack.c.l.b16 %v468
        %v537 = vunpack.c.h.b16 %v468
        %v538 = vunpack.c.l.b16 %v469
        %v539 = vunpack.c.h.b16 %v469
        %v540 = vunpack.c.l.b16 %v470
        %v541 = vunpack.c.h.b16 %v470
        %v542 = vunpack.c.l.b16 %v471
        %v543 = vunpack.c.h.b16 %v471
        %v544 = vunpack.c.l.b16 %v472
        %v545 = vunpack.c.h.b16 %v472
        %v546 = vunpack.c.l.b16 %v473
        %v547 = vunpack.c.h.b16 %v473
        %v548 = vunpack.c.l.b16 %v474
        %v549 = vunpack.c.h.b16 %v474
        %v550 = vunpack.c.l.b16 %v475
        %v551 = vunpack.c.h.b16 %v475
        %v552 = vunpack.c.l.b16 %v476
        %v553 = vunpack.c.h.b16 %v476
        %v554 = vunpack.c.l.b16 %v477
        %v555 = vunpack.c.h.b16 %v477
        %v556 = vunpack.c.l.b16 %v478
        %v557 = vunpack.c.h.b16 %v478
        %v558 = vunpack.c.l.b16 %v479
        %v559 = vunpack.c.h.b16 %v479
        %v560 = vunpack.c.l.b16 %v480
        %v561 = vunpack.c.h.b16 %v480
        %v562 = vunpack.c.l.b16 %v481
        %v563 = vunpack.c.h.b16 %v481
        %v564 = vunpack.c.l.b16 %v482
        %v565 = vunpack.c.h.b16 %v482
        %v566 = vunpack.c.l.b16 %v483
        %v567 = vunpack.c.h.b16 %v483
        %v568 = vunpack.c.l.b16 %v484
        %v569 = vunpack.c.h.b16 %v484
        %v570 = vunpack.c.l.b16 %v485
        %v571 = vunpack.c.h.b16 %v485
        %v572 = vunpack.c.l.b16 %v486
        %v573 = vunpack.c.h.b16 %v486
        %v574 = vunpack.c.l.b16 %v487
        %v575 = vunpack.c.h.b16 %v487
        %v576 = vunpack.c.l.b16 %v488
        %v577 = vunpack.c.h.b16 %v488
        %v578 = vunpack.c.l.b16 %v489
        %v579 = vunpack.c.h.b16 %v489
        %v580 = vunpack.c.l.b16 %v490
        %v581 = vunpack.c.h.b16 %v490
        %v582 = vunpack.c.l.b16 %v491
        %v583 = vunpack.c.h.b16 %v491
        %v584 = vunpack.c.l.b16 %v492
        %v585 = vunpack.c.h.b16 %v492
        %v586 = vunpack.c.l.b16 %v493
        %v587 = vunpack.c.h.b16 %v493
        %v588 = vunpack.c.l.b16 %v494
        %v589 = vunpack.c.h.b16 %v494
        %v590 = vunpack.c.l.b16 %v495
        %v591 = vunpack.c.h.b16 %v495
        %v592 = vpack.c.b16 %v530, %v528
        %v593 = vpack.c.b16 %v531, %v529
        %v594 = vpack.c.b16 %v534, %v532
        %v595 = vpack.c.b16 %v535, %v533
        %v596 = vpack.c.b16 %v538, %v536
        %v597 = vpack.c.b16 %v539, %v537
        %v598 = vpack.c.b16 %v542, %v540
        %v599 = vpack.c.b16 %v543, %v541
        %v600 = vpack.c.b16 %v546, %v544
        %v601 = vpack.c.b16 %v547, %v545
        %v602 = vpack.c.b16 %v550, %v548
        %v603 = vpack.c.b16 %v551, %v549
        %v604 = vpack.c.b16 %v554, %v552
        %v605 = vpack.c.b16 %v555, %v553
        %v606 = vpack.c.b16 %v558, %v556
        %v607 = vpack.c.b16 %v559, %v557
        %v608 = vpack.c.b16 %v562, %v560
        %v609 = vpack.c.b16 %v563, %v561
        %v610 = vpack.c.b16 %v566, %v564
        %v611 = vpack.c.b16 %v567, %v565
        %v612 = vpack.c.b16 %v570, %v568
        %v613 = vpack.c.b16 %v571, %v569
        %v614 = vpack.c.b16 %v574, %v572
        %v615 = vpack.c.b16 %v575, %v573
        %v616 = vpack.c.b16 %v578, %v576
        %v617 = vpack.c.b16 %v579, %v577
        %v618 = vpack.c.b16 %v582, %v580
        %v619 = vpack.c.b16 %v583, %v581
        %v620 = vpack.c.b16 %v586, %v584
        %v621 = vpack.c.b16 %v587, %v585
        %v622 = vpack.c.b16 %v590, %v588
        %v623 = vpack.c.b16 %v591, %v589
        %656 = vmatprep.subr.bf16.mxu0 %v607
        %657 = vmatpush1.bf16.msra.mxu0 %v606
        %658 = vmatprep.subr.bf16.mxu0 %v605
        %659 = vmatpush1.bf16.msra.mxu0 %v604
        %660 = vmatprep.subr.bf16.mxu0 %v603
        %661 = vmatpush1.bf16.msra.mxu0 %v602
        %662 = vmatprep.subr.bf16.mxu0 %v601
        %663 = vmatpush1.bf16.msra.mxu0 %v600
        %664 = vmatprep.subr.bf16.mxu0 %v599
        %665 = vmatpush1.bf16.msra.mxu0 %v598
        %666 = vmatprep.subr.bf16.mxu0 %v597
        %667 = vmatpush1.bf16.msra.mxu0 %v596
        %668 = vmatprep.subr.bf16.mxu0 %v595
        %669 = vmatpush1.bf16.msra.mxu0 %v594
        %670 = vmatprep.subr.bf16.mxu0 %v593
        %671 = vmatpush1.bf16.msra.mxu0 %v592
        %672 = vmatprep.subr.bf16.mxu0 %v623
        %673 = vmatpush2.bf16.msra.mxu0 %v622
        %674 = vmatprep.subr.bf16.mxu0 %v621
        %675 = vmatpush2.bf16.msra.mxu0 %v620
        %676 = vmatprep.subr.bf16.mxu0 %v619
        %677 = vmatpush2.bf16.msra.mxu0 %v618
        %678 = vmatprep.subr.bf16.mxu0 %v617
        %679 = vmatpush2.bf16.msra.mxu0 %v616
        %680 = vmatprep.subr.bf16.mxu0 %v615
        %681 = vmatpush2.bf16.msra.mxu0 %v614
        %682 = vmatprep.subr.bf16.mxu0 %v613
        %683 = vmatpush2.bf16.msra.mxu0 %v612
        %684 = vmatprep.subr.bf16.mxu0 %v611
        %685 = vmatpush2.bf16.msra.mxu0 %v610
        %686 = vmatprep.subr.bf16.mxu0 %v609
        %687 = vmatpush2.bf16.msra.mxu0 %v608
        %688 = vmatprep.mubr.bf16.mxu0 %v463
        %689 = vmatmul.mubr.bf16.gmra.mxu0 %v462
        %v690 = vpop.f32.mrf.mxu0
        %v691 = vadd.f32 %v196, %v690
        %v692 = vpop.f32.mrf.mxu0
        %v693 = vadd.f32 %v197, %v692
        %v694 = vpop.f32.mrf.mxu0
        %v695 = vpop.f32.mrf.mxu0
        %696 = vdwg.mxu0
        %vm697 = vcmp.gt.f32.partialorder %v691, 0.0
        %vm698 = vcmp.gt.f32.partialorder %v693, 0.0
        %v699 = vmin.f32 %v691, 0.0
        %v700 = vmin.f32 %v693, 0.0
        %v701 = vmul.f32 %v699, 1.442695
        %v702 = vpow.pop %v701
        %v703 = vmul.f32 %v700, 1.442695
        %v704 = vpow.pop %v703
        %v705 = vsub.f32 %v702, 1.0
        %v706 = vsub.f32 %v704, 1.0
        %v707 = vsel %vm697, %v691, %v705
        %v708 = vsel %vm698, %v693, %v706
        %v709 = vpack.c.bf16 %v707, %v707
        %v710 = vpack.c.bf16 %v708, %v708
        %v711 = vld [vmem:[%s3] sm:$0xff]
        %v712 = vld [vmem:[%s3 + $0x8] sm:$0xff]
        %v713 = vld [vmem:[%s3 + $0x10] sm:$0xff]
        %v714 = vld [vmem:[%s3 + $0x18] sm:$0xff]
        %v715 = vld [vmem:[%s3 + $0x20] sm:$0xff]
        %v716 = vld [vmem:[%s3 + $0x28] sm:$0xff]
        %v717 = vld [vmem:[%s3 + $0x30] sm:$0xff]
        %v718 = vld [vmem:[%s3 + $0x38] sm:$0xff]
        %v719 = vld [vmem:[%s3 + $0x40] sm:$0xff]
        %v720 = vld [vmem:[%s3 + $0x48] sm:$0xff]
        %v721 = vld [vmem:[%s3 + $0x50] sm:$0xff]
        %v722 = vld [vmem:[%s3 + $0x58] sm:$0xff]
        %v723 = vld [vmem:[%s3 + $0x60] sm:$0xff]
        %v724 = vld [vmem:[%s3 + $0x68] sm:$0xff]
        %v725 = vld [vmem:[%s3 + $0x70] sm:$0xff]
        %v726 = vld [vmem:[%s3 + $0x78] sm:$0xff]
        %v727 = vld [vmem:[%s3 + $0x80] sm:$0xff]
        %v728 = vld [vmem:[%s3 + $0x88] sm:$0xff]
        %v729 = vld [vmem:[%s3 + $0x90] sm:$0xff]
        %v730 = vld [vmem:[%s3 + $0x98] sm:$0xff]
        %v731 = vld [vmem:[%s3 + $0xa0] sm:$0xff]
        %v732 = vld [vmem:[%s3 + $0xa8] sm:$0xff]
        %v733 = vld [vmem:[%s3 + $0xb0] sm:$0xff]
        %v734 = vld [vmem:[%s3 + $0xb8] sm:$0xff]
        %v735 = vld [vmem:[%s3 + $0xc0] sm:$0xff]
        %v736 = vld [vmem:[%s3 + $0xc8] sm:$0xff]
        %v737 = vld [vmem:[%s3 + $0xd0] sm:$0xff]
        %v738 = vld [vmem:[%s3 + $0xd8] sm:$0xff]
        %v739 = vld [vmem:[%s3 + $0xe0] sm:$0xff]
        %v740 = vld [vmem:[%s3 + $0xe8] sm:$0xff]
        %v741 = vld [vmem:[%s3 + $0xf0] sm:$0xff]
        %v742 = vld [vmem:[%s3 + $0xf8] sm:$0xff]
        %v775 = vunpack.c.l.b16 %v711
        %v776 = vunpack.c.h.b16 %v711
        %v777 = vunpack.c.l.b16 %v712
        %v778 = vunpack.c.h.b16 %v712
        %v779 = vunpack.c.l.b16 %v713
        %v780 = vunpack.c.h.b16 %v713
        %v781 = vunpack.c.l.b16 %v714
        %v782 = vunpack.c.h.b16 %v714
        %v783 = vunpack.c.l.b16 %v715
        %v784 = vunpack.c.h.b16 %v715
        %v785 = vunpack.c.l.b16 %v716
        %v786 = vunpack.c.h.b16 %v716
        %v787 = vunpack.c.l.b16 %v717
        %v788 = vunpack.c.h.b16 %v717
        %v789 = vunpack.c.l.b16 %v718
        %v790 = vunpack.c.h.b16 %v718
        %v791 = vunpack.c.l.b16 %v719
        %v792 = vunpack.c.h.b16 %v719
        %v793 = vunpack.c.l.b16 %v720
        %v794 = vunpack.c.h.b16 %v720
        %v795 = vunpack.c.l.b16 %v721
        %v796 = vunpack.c.h.b16 %v721
        %v797 = vunpack.c.l.b16 %v722
        %v798 = vunpack.c.h.b16 %v722
        %v799 = vunpack.c.l.b16 %v723
        %v800 = vunpack.c.h.b16 %v723
        %v801 = vunpack.c.l.b16 %v724
        %v802 = vunpack.c.h.b16 %v724
        %v803 = vunpack.c.l.b16 %v725
        %v804 = vunpack.c.h.b16 %v725
        %v805 = vunpack.c.l.b16 %v726
        %v806 = vunpack.c.h.b16 %v726
        %v807 = vunpack.c.l.b16 %v727
        %v808 = vunpack.c.h.b16 %v727
        %v809 = vunpack.c.l.b16 %v728
        %v810 = vunpack.c.h.b16 %v728
        %v811 = vunpack.c.l.b16 %v729
        %v812 = vunpack.c.h.b16 %v729
        %v813 = vunpack.c.l.b16 %v730
        %v814 = vunpack.c.h.b16 %v730
        %v815 = vunpack.c.l.b16 %v731
        %v816 = vunpack.c.h.b16 %v731
        %v817 = vunpack.c.l.b16 %v732
        %v818 = vunpack.c.h.b16 %v732
        %v819 = vunpack.c.l.b16 %v733
        %v820 = vunpack.c.h.b16 %v733
        %v821 = vunpack.c.l.b16 %v734
        %v822 = vunpack.c.h.b16 %v734
        %v823 = vunpack.c.l.b16 %v735
        %v824 = vunpack.c.h.b16 %v735
        %v825 = vunpack.c.l.b16 %v736
        %v826 = vunpack.c.h.b16 %v736
        %v827 = vunpack.c.l.b16 %v737
        %v828 = vunpack.c.h.b16 %v737
        %v829 = vunpack.c.l.b16 %v738
        %v830 = vunpack.c.h.b16 %v738
        %v831 = vunpack.c.l.b16 %v739
        %v832 = vunpack.c.h.b16 %v739
        %v833 = vunpack.c.l.b16 %v740
        %v834 = vunpack.c.h.b16 %v740
        %v835 = vunpack.c.l.b16 %v741
        %v836 = vunpack.c.h.b16 %v741
        %v837 = vunpack.c.l.b16 %v742
        %v838 = vunpack.c.h.b16 %v742
        %v839 = vpack.c.b16 %v777, %v775
        %v840 = vpack.c.b16 %v778, %v776
        %v841 = vpack.c.b16 %v781, %v779
        %v842 = vpack.c.b16 %v782, %v780
        %v843 = vpack.c.b16 %v785, %v783
        %v844 = vpack.c.b16 %v786, %v784
        %v845 = vpack.c.b16 %v789, %v787
        %v846 = vpack.c.b16 %v790, %v788
        %v847 = vpack.c.b16 %v793, %v791
        %v848 = vpack.c.b16 %v794, %v792
        %v849 = vpack.c.b16 %v797, %v795
        %v850 = vpack.c.b16 %v798, %v796
        %v851 = vpack.c.b16 %v801, %v799
        %v852 = vpack.c.b16 %v802, %v800
        %v853 = vpack.c.b16 %v805, %v803
        %v854 = vpack.c.b16 %v806, %v804
        %v855 = vpack.c.b16 %v809, %v807
        %v856 = vpack.c.b16 %v810, %v808
        %v857 = vpack.c.b16 %v813, %v811
        %v858 = vpack.c.b16 %v814, %v812
        %v859 = vpack.c.b16 %v817, %v815
        %v860 = vpack.c.b16 %v818, %v816
        %v861 = vpack.c.b16 %v821, %v819
        %v862 = vpack.c.b16 %v822, %v820
        %v863 = vpack.c.b16 %v825, %v823
        %v864 = vpack.c.b16 %v826, %v824
        %v865 = vpack.c.b16 %v829, %v827
        %v866 = vpack.c.b16 %v830, %v828
        %v867 = vpack.c.b16 %v833, %v831
        %v868 = vpack.c.b16 %v834, %v832
        %v869 = vpack.c.b16 %v837, %v835
        %v870 = vpack.c.b16 %v838, %v836
        %903 = vmatprep.subr.bf16.mxu0 %v854
        %904 = vmatpush1.bf16.msra.mxu0 %v853
        %905 = vmatprep.subr.bf16.mxu0 %v852
        %906 = vmatpush1.bf16.msra.mxu0 %v851
        %907 = vmatprep.subr.bf16.mxu0 %v850
        %908 = vmatpush1.bf16.msra.mxu0 %v849
        %909 = vmatprep.subr.bf16.mxu0 %v848
        %910 = vmatpush1.bf16.msra.mxu0 %v847
        %911 = vmatprep.subr.bf16.mxu0 %v846
        %912 = vmatpush1.bf16.msra.mxu0 %v845
        %913 = vmatprep.subr.bf16.mxu0 %v844
        %914 = vmatpush1.bf16.msra.mxu0 %v843
        %915 = vmatprep.subr.bf16.mxu0 %v842
        %916 = vmatpush1.bf16.msra.mxu0 %v841
        %917 = vmatprep.subr.bf16.mxu0 %v840
        %918 = vmatpush1.bf16.msra.mxu0 %v839
        %919 = vmatprep.subr.bf16.mxu0 %v870
        %920 = vmatpush2.bf16.msra.mxu0 %v869
        %921 = vmatprep.subr.bf16.mxu0 %v868
        %922 = vmatpush2.bf16.msra.mxu0 %v867
        %923 = vmatprep.subr.bf16.mxu0 %v866
        %924 = vmatpush2.bf16.msra.mxu0 %v865
        %925 = vmatprep.subr.bf16.mxu0 %v864
        %926 = vmatpush2.bf16.msra.mxu0 %v863
        %927 = vmatprep.subr.bf16.mxu0 %v862
        %928 = vmatpush2.bf16.msra.mxu0 %v861
        %929 = vmatprep.subr.bf16.mxu0 %v860
        %930 = vmatpush2.bf16.msra.mxu0 %v859
        %931 = vmatprep.subr.bf16.mxu0 %v858
        %932 = vmatpush2.bf16.msra.mxu0 %v857
        %933 = vmatprep.subr.bf16.mxu0 %v856
        %934 = vmatpush2.bf16.msra.mxu0 %v855
        %935 = vmatprep.mubr.bf16.mxu0 %v710
        %936 = vmatmul.mubr.bf16.gmra.mxu0 %v709
        %v937 = vpop.f32.mrf.mxu0
        %v938 = vadd.f32 0.0, %v937
        %v939 = vpop.f32.mrf.mxu0
        %v940 = vadd.f32 0.0, %v939
        %v941 = vpop.f32.mrf.mxu0
        %v942 = vpop.f32.mrf.mxu0
        %943 = vdwg.mxu0
        %944 = vst [vmem:[%s190] sm:$0xff] %v938
        %945 = vst [vmem:[%s190 + $0x8] sm:$0xff] %v940
        %s946 = sand.u32 %s115, 1
        %s947 = scalar_lea.sflag [#allocation3], %s946
        %s948 = sand.u32 %s115, 1
        %s949 = smul.addr %s948, 16
        %s950 = scalar_lea.vmem [#allocation2], %s949
        // Predicated region
        $region37: #{lex3d_forward.7} parent=35 // pred_check
          %p951 = pneg %p125
        $region38: #{lex3d_forward.7} parent=35 // pred_check_branch
          %953 = sbr.rel (%p951) target = $region40
        $region39: #{lex3d_forward.7} parent=35 // pred_region
          %s955 = ssub.s32 256, 256
          %956 = vsyncadd %s947, %s955
          %s957 = smul.addr %s18, 2
          %s958 = smul.addr %s957, 128
          %s959 = scalar_lea.hbm %s4, %s958
          %s961 = sshll.u32 %s950, 4
          %s962 = int_to_ptr.vmem [resolvable:$true] %s961
          %964 = dma.vmem_to_hbm [thread:$0]  %s962, 256, %s959, %s947
        $region40: #{lex3d_forward.7} parent=35 // pred_fallthru
          _
      $region36: #{lex3d_forward.7} parent=5 // pred_fallthru
        _
      %p965 = scmp.le.s32.totalorder 2, %s13
      // Predicated region
      $region41: #{lex3d_forward.7} parent=5 // pred_check
        %p966 = pneg %p965
      $region42: #{lex3d_forward.7} parent=5 // pred_check_branch
        %968 = sbr.rel (%p966) target = $region44
      $region43: #{lex3d_forward.7} parent=5 // pred_region
        %s969 = ssub.s32 %s13, 2
        // Predicated region
        $region45: #{lex3d_forward.7} parent=43 // pred_check
          %p970 = pneg %p131
        $region46: #{lex3d_forward.7} parent=43 // pred_check_branch
          %972 = sbr.rel (%p970) target = $region48
        $region47: #{lex3d_forward.7} parent=43 // pred_region
          %s973 = sand.u32 %s116, 1
          %s974 = scalar_lea.sflag [#allocation3], %s973
          %s975 = sand.u32 %s116, 1
          %s976 = smul.addr %s975, 16
          %s977 = scalar_lea.vmem [#allocation2], %s976
          %978 = dma.done %s974, 256
        $region48: #{lex3d_forward.7} parent=43 // pred_fallthru
          _
      $region44: #{lex3d_forward.7} parent=5 // pred_fallthru
        _
    $region6: #{lex3d_forward.7} parent=1 // loop_footer
      %s17 = sadd.s32 1, %s13
    $region7: #{lex3d_forward.7} parent=1 // loop_footer_branch
      %12 = sbr.rel target = $region3
    $region8: #{lex3d_forward.7} parent=1 // loop_exit
      _
    %979 = vsyncpa [#allocation3], 1
    %s980 = scalar_lea.sflag [#allocation3], 1
    %981 = vsyncpa %s980, 1

// kernel: lex3d_forward.5
$region0: #{lex3d_forward.5}
  #allocation0 [shape = 'u32[]', space=smem, size = 0x4, offset = 0x4, fixed_abs, tag = 'smem constant byte address 0x4 - core index']
  #allocation1 [shape = 'u32[144,128]{1,0:T(1,128)}', space=vmem, size = 0x12000, scoped, tag = 'internal scratch']
  #allocation2 [shape = 'f32[16,512]{1,0:T(8,128)}', space=vmem, size = 0x8000, scoped, tag = 'scratch operand']
  #allocation3 [shape = 'f32[1,16]{1,0:T(1,128)}', space=vmem, size = 0x200, scoped, tag = 'scratch operand']
  #allocation4 [shape = 'f32[1,16]{1,0:T(1,128)}', space=vmem, size = 0x200, scoped, tag = 'scratch operand']
  #allocation5 [shape = 'f32[1,16]{1,0:T(1,128)}', space=vmem, size = 0x200, scoped, tag = 'scratch operand']
  #allocation6 [shape = 'f32[16,256]{1,0:T(8,128)}', space=vmem, size = 0x4000, scoped, tag = 'scratch operand']
  %s0 = inlined_call_operand.vmem [shape: f32[16,256], index: 0, kind: input, shape index: {}]
  %s1 = inlined_call_operand.vmem [shape: bf16[256,512], index: 1, kind: input, shape index: {}]
  %s2 = inlined_call_operand.vmem [shape: f32[1,512], index: 2, kind: input, shape index: {}]
  %s3 = inlined_call_operand.vmem [shape: bf16[32,128], index: 3, kind: input, shape index: {}]
  %s4 = inlined_call_operand.vmem [shape: f32[1,128], index: 4, kind: input, shape index: {}]
  %s5 = inlined_call_operand.vmem [shape: bf16[128,128], index: 5, kind: input, shape index: {}]
  %s6 = inlined_call_operand.vmem [shape: f32[1,128], index: 6, kind: input, shape index: {}]
  %s7 = inlined_call_operand.vmem [shape: bf16[128,256], index: 7, kind: input, shape index: {}]
  %s8 = inlined_call_operand.vmem [shape: f32[1,256], index: 8, kind: input, shape index: {}]
  %s9 = inlined_call_operand.vmem [shape: s32[32,1], index: 9, kind: input, shape index: {}, may-alias: {9,11,12}]
  %s10 = inlined_call_operand.vmem [shape: s32[32,1], index: 10, kind: input, shape index: {}]
  %s11 = inlined_call_operand.vmem [shape: s32[32,1], index: 11, kind: input, shape index: {}, may-alias: {9,11,12}]
  %s12 = inlined_call_operand.vmem [shape: s32[32,1], index: 12, kind: input, shape index: {}, may-alias: {9,11,12}]
  %s13 = inlined_call_operand.vmem [shape: f32[32,32], index: 13, kind: input, shape index: {}]
  %s14 = inlined_call_operand.vmem [shape: f32[32,1], index: 14, kind: input, shape index: {}]
  %s15 = inlined_call_operand.vmem [shape: f32[16,256], index: 15, kind: output, shape index: {}]
  %s16 = sld [smem:[#allocation0]]
  $region101: #{lex3d_forward.5} parent=0
    _
  %s18 = ssub.s32 1, %s16
  %s19 = scalar_select 0, %s18, %s16
  loop: start=0, step=1, limit=4
  $region2: #{lex3d_forward.5} parent=0 // loop_pre_header
    _
  $region3: #{lex3d_forward.5} parent=0 // loop_header
    %s21 = sphi 0, %s25
    %p22 = scmp.ge.s32.totalorder %s21, 4
    %s29 = sphi 0, %s29
    %s31 = sphi 0, %s29
    %s32 = sphi 0, %s31
    %s46 = sphi 0, %s32
    %s50 = sphi 0, %s50
    %s52 = sphi 0, %s50
    %s53 = sphi 0, %s52
    %s67 = sphi 0, %s53
    %s71 = sphi 0, %s71
    %s73 = sphi 0, %s71
    %s74 = sphi 0, %s73
    %s88 = sphi 0, %s74
    %s92 = sphi 0, %s92
    %s94 = sphi 0, %s92
    %s95 = sphi 0, %s94
    %s109 = sphi 0, %s95
    %s113 = sphi 0, %s113
    %s115 = sphi 0, %s113
    %s116 = sphi 0, %s115
    %s130 = sphi 0, %s116
    %s134 = sphi 0, %s134
    %s136 = sphi 0, %s134
    %s137 = sphi 0, %s136
    %s151 = sphi 0, %s137
    %s155 = sphi 0, %s155
    %s157 = sphi 0, %s155
    %s158 = sphi 0, %s157
    %s172 = sphi 0, %s158
    %s176 = sphi 0, %s176
    %s178 = sphi 0, %s176
    %s179 = sphi 0, %s178
    %s193 = sphi 0, %s179
    %s197 = sphi 0, %s197
    %s199 = sphi 0, %s197
    %s200 = sphi 0, %s199
    %s214 = sphi 0, %s200
    %s220 = sphi 0, %s222
    %s223 = sphi 0, %s220
    %s224 = sphi 0, %s223
    %s240 = sphi 0, %s224
    %s246 = sphi 0, %s248
    %s249 = sphi 0, %s246
    %s250 = sphi 0, %s249
    %s266 = sphi 0, %s250
    %s272 = sphi 0, %s274
    %s275 = sphi 0, %s272
    %s276 = sphi 0, %s275
    %s292 = sphi 0, %s276
    %s298 = sphi 0, %s300
    %s301 = sphi 0, %s298
    %s302 = sphi 0, %s301
    %s318 = sphi 0, %s302
    %s324 = sphi 0, %s326
    %s327 = sphi 0, %s324
    %s328 = sphi 0, %s327
    %s344 = sphi 0, %s328
    %s350 = sphi 0, %s352
    %s353 = sphi 0, %s350
    %s354 = sphi 0, %s353
    %s370 = sphi 0, %s354
    %s374 = sphi 0, %s374
    %s376 = sphi 0, %s374
    %s377 = sphi 0, %s376
    %s391 = sphi 0, %s377
  $region4: #{lex3d_forward.5} parent=0 // loop_header_branch
    %24 = sbr.rel (%p22) target = $region8
  $region5: #{lex3d_forward.5} parent=0 // loop_body
    %s26 = ssub.s32 %s21, 1
    %s27 = ssub.s32 %s21, 2
    %s28 = sadd.s32 %s21, 1
    %s30 = sadd.s32 %s29, 1
    %p33 = scmp.eq.s32.totalorder %s21, 1
    %p34 = scmp.ne.s32.totalorder %s29, %s31
    %p35 = scmp.eq.s32.totalorder %s21, 0
    %p36 = por %p34, %p35
    %p37 = scmp.ne.s32.totalorder %s29, %s31
    %p38 = scmp.eq.s32.totalorder %s26, 1
    %p39 = por %p37, %p38
    %p40 = scmp.ne.s32.totalorder %s31, %s32
    %p41 = scmp.eq.s32.totalorder %s26, 0
    %p42 = por %p40, %p41
    %p43 = scmp.ne.s32.totalorder %s31, %s32
    %p44 = scmp.eq.s32.totalorder %s27, 1
    %p45 = por %p43, %p44
    %p47 = scmp.ne.s32.totalorder %s32, %s46
    %p48 = scmp.eq.s32.totalorder %s27, 0
    %p49 = por %p47, %p48
    %s51 = sadd.s32 %s50, 1
    %p54 = scmp.eq.s32.totalorder %s21, 1
    %p55 = scmp.ne.s32.totalorder %s50, %s52
    %p56 = scmp.eq.s32.totalorder %s21, 0
    %p57 = por %p55, %p56
    %p58 = scmp.ne.s32.totalorder %s50, %s52
    %p59 = scmp.eq.s32.totalorder %s26, 1
    %p60 = por %p58, %p59
    %p61 = scmp.ne.s32.totalorder %s52, %s53
    %p62 = scmp.eq.s32.totalorder %s26, 0
    %p63 = por %p61, %p62
    %p64 = scmp.ne.s32.totalorder %s52, %s53
    %p65 = scmp.eq.s32.totalorder %s27, 1
    %p66 = por %p64, %p65
    %p68 = scmp.ne.s32.totalorder %s53, %s67
    %p69 = scmp.eq.s32.totalorder %s27, 0
    %p70 = por %p68, %p69
    %s72 = sadd.s32 %s71, 1
    %p75 = scmp.eq.s32.totalorder %s21, 1
    %p76 = scmp.ne.s32.totalorder %s71, %s73
    %p77 = scmp.eq.s32.totalorder %s21, 0
    %p78 = por %p76, %p77
    %p79 = scmp.ne.s32.totalorder %s71, %s73
    %p80 = scmp.eq.s32.totalorder %s26, 1
    %p81 = por %p79, %p80
    %p82 = scmp.ne.s32.totalorder %s73, %s74
    %p83 = scmp.eq.s32.totalorder %s26, 0
    %p84 = por %p82, %p83
    %p85 = scmp.ne.s32.totalorder %s73, %s74
    %p86 = scmp.eq.s32.totalorder %s27, 1
    %p87 = por %p85, %p86
    %p89 = scmp.ne.s32.totalorder %s74, %s88
    %p90 = scmp.eq.s32.totalorder %s27, 0
    %p91 = por %p89, %p90
    %s93 = sadd.s32 %s92, 1
    %p96 = scmp.eq.s32.totalorder %s21, 1
    %p97 = scmp.ne.s32.totalorder %s92, %s94
    %p98 = scmp.eq.s32.totalorder %s21, 0
    %p99 = por %p97, %p98
    %p100 = scmp.ne.s32.totalorder %s92, %s94
    %p101 = scmp.eq.s32.totalorder %s26, 1
    %p102 = por %p100, %p101
    %p103 = scmp.ne.s32.totalorder %s94, %s95
    %p104 = scmp.eq.s32.totalorder %s26, 0
    %p105 = por %p103, %p104
    %p106 = scmp.ne.s32.totalorder %s94, %s95
    %p107 = scmp.eq.s32.totalorder %s27, 1
    %p108 = por %p106, %p107
    %p110 = scmp.ne.s32.totalorder %s95, %s109
    %p111 = scmp.eq.s32.totalorder %s27, 0
    %p112 = por %p110, %p111
    %s114 = sadd.s32 %s113, 1
    %p117 = scmp.eq.s32.totalorder %s21, 1
    %p118 = scmp.ne.s32.totalorder %s113, %s115
    %p119 = scmp.eq.s32.totalorder %s21, 0
    %p120 = por %p118, %p119
    %p121 = scmp.ne.s32.totalorder %s113, %s115
    %p122 = scmp.eq.s32.totalorder %s26, 1
    %p123 = por %p121, %p122
    %p124 = scmp.ne.s32.totalorder %s115, %s116
    %p125 = scmp.eq.s32.totalorder %s26, 0
    %p126 = por %p124, %p125
    %p127 = scmp.ne.s32.totalorder %s115, %s116
    %p128 = scmp.eq.s32.totalorder %s27, 1
    %p129 = por %p127, %p128
    %p131 = scmp.ne.s32.totalorder %s116, %s130
    %p132 = scmp.eq.s32.totalorder %s27, 0
    %p133 = por %p131, %p132
    %s135 = sadd.s32 %s134, 1
    %p138 = scmp.eq.s32.totalorder %s21, 1
    %p139 = scmp.ne.s32.totalorder %s134, %s136
    %p140 = scmp.eq.s32.totalorder %s21, 0
    %p141 = por %p139, %p140
    %p142 = scmp.ne.s32.totalorder %s134, %s136
    %p143 = scmp.eq.s32.totalorder %s26, 1
    %p144 = por %p142, %p143
    %p145 = scmp.ne.s32.totalorder %s136, %s137
    %p146 = scmp.eq.s32.totalorder %s26, 0
    %p147 = por %p145, %p146
    %p148 = scmp.ne.s32.totalorder %s136, %s137
    %p149 = scmp.eq.s32.totalorder %s27, 1
    %p150 = por %p148, %p149
    %p152 = scmp.ne.s32.totalorder %s137, %s151
    %p153 = scmp.eq.s32.totalorder %s27, 0
    %p154 = por %p152, %p153
    %s156 = sadd.s32 %s155, 1
    %p159 = scmp.eq.s32.totalorder %s21, 1
    %p160 = scmp.ne.s32.totalorder %s155, %s157
    %p161 = scmp.eq.s32.totalorder %s21, 0
    %p162 = por %p160, %p161
    %p163 = scmp.ne.s32.totalorder %s155, %s157
    %p164 = scmp.eq.s32.totalorder %s26, 1
    %p165 = por %p163, %p164
    %p166 = scmp.ne.s32.totalorder %s157, %s158
    %p167 = scmp.eq.s32.totalorder %s26, 0
    %p168 = por %p166, %p167
    %p169 = scmp.ne.s32.totalorder %s157, %s158
    %p170 = scmp.eq.s32.totalorder %s27, 1
    %p171 = por %p169, %p170
    %p173 = scmp.ne.s32.totalorder %s158, %s172
    %p174 = scmp.eq.s32.totalorder %s27, 0
    %p175 = por %p173, %p174
    %s177 = sadd.s32 %s176, 1
    %p180 = scmp.eq.s32.totalorder %s21, 1
    %p181 = scmp.ne.s32.totalorder %s176, %s178
    %p182 = scmp.eq.s32.totalorder %s21, 0
    %p183 = por %p181, %p182
    %p184 = scmp.ne.s32.totalorder %s176, %s178
    %p185 = scmp.eq.s32.totalorder %s26, 1
    %p186 = por %p184, %p185
    %p187 = scmp.ne.s32.totalorder %s178, %s179
    %p188 = scmp.eq.s32.totalorder %s26, 0
    %p189 = por %p187, %p188
    %p190 = scmp.ne.s32.totalorder %s178, %s179
    %p191 = scmp.eq.s32.totalorder %s27, 1
    %p192 = por %p190, %p191
    %p194 = scmp.ne.s32.totalorder %s179, %s193
    %p195 = scmp.eq.s32.totalorder %s27, 0
    %p196 = por %p194, %p195
    %s198 = sadd.s32 %s197, 1
    %p201 = scmp.eq.s32.totalorder %s21, 1
    %p202 = scmp.ne.s32.totalorder %s197, %s199
    %p203 = scmp.eq.s32.totalorder %s21, 0
    %p204 = por %p202, %p203
    %p205 = scmp.ne.s32.totalorder %s197, %s199
    %p206 = scmp.eq.s32.totalorder %s26, 1
    %p207 = por %p205, %p206
    %p208 = scmp.ne.s32.totalorder %s199, %s200
    %p209 = scmp.eq.s32.totalorder %s26, 0
    %p210 = por %p208, %p209
    %p211 = scmp.ne.s32.totalorder %s199, %s200
    %p212 = scmp.eq.s32.totalorder %s27, 1
    %p213 = por %p211, %p212
    %p215 = scmp.ne.s32.totalorder %s200, %s214
    %p216 = scmp.eq.s32.totalorder %s27, 0
    %p217 = por %p215, %p216
    %s218 = ssub.s32 %s21, %s28
    %p219 = scmp.eq.s32.totalorder %s218, 0
    %s221 = sadd.s32 %s220, 1
    %s222 = scalar_select %p219, %s220, %s221
    %p225 = pneg %p219
    %p226 = scmp.eq.s32.totalorder %s21, 1
    %p227 = por %p225, %p226
    %p228 = scmp.ne.s32.totalorder %s220, %s223
    %p229 = scmp.eq.s32.totalorder %s21, 0
    %p230 = por %p228, %p229
    %p231 = scmp.ne.s32.totalorder %s220, %s223
    %p232 = scmp.eq.s32.totalorder %s26, 1
    %p233 = por %p231, %p232
    %p234 = scmp.ne.s32.totalorder %s223, %s224
    %p235 = scmp.eq.s32.totalorder %s26, 0
    %p236 = por %p234, %p235
    %p237 = scmp.ne.s32.totalorder %s223, %s224
    %p238 = scmp.eq.s32.totalorder %s27, 1
    %p239 = por %p237, %p238
    %p241 = scmp.ne.s32.totalorder %s224, %s240
    %p242 = scmp.eq.s32.totalorder %s27, 0
    %p243 = por %p241, %p242
    %s244 = ssub.s32 %s21, %s28
    %p245 = scmp.eq.s32.totalorder %s244, 0
    %s247 = sadd.s32 %s246, 1
    %s248 = scalar_select %p245, %s246, %s247
    %p251 = pneg %p245
    %p252 = scmp.eq.s32.totalorder %s21, 1
    %p253 = por %p251, %p252
    %p254 = scmp.ne.s32.totalorder %s246, %s249
    %p255 = scmp.eq.s32.totalorder %s21, 0
    %p256 = por %p254, %p255
    %p257 = scmp.ne.s32.totalorder %s246, %s249
    %p258 = scmp.eq.s32.totalorder %s26, 1
    %p259 = por %p257, %p258
    %p260 = scmp.ne.s32.totalorder %s249, %s250
    %p261 = scmp.eq.s32.totalorder %s26, 0
    %p262 = por %p260, %p261
    %p263 = scmp.ne.s32.totalorder %s249, %s250
    %p264 = scmp.eq.s32.totalorder %s27, 1
    %p265 = por %p263, %p264
    %p267 = scmp.ne.s32.totalorder %s250, %s266
    %p268 = scmp.eq.s32.totalorder %s27, 0
    %p269 = por %p267, %p268
    %s270 = ssub.s32 %s21, %s28
    %p271 = scmp.eq.s32.totalorder %s270, 0
    %s273 = sadd.s32 %s272, 1
    %s274 = scalar_select %p271, %s272, %s273
    %p277 = pneg %p271
    %p278 = scmp.eq.s32.totalorder %s21, 1
    %p279 = por %p277, %p278
    %p280 = scmp.ne.s32.totalorder %s272, %s275
    %p281 = scmp.eq.s32.totalorder %s21, 0
    %p282 = por %p280, %p281
    %p283 = scmp.ne.s32.totalorder %s272, %s275
    %p284 = scmp.eq.s32.totalorder %s26, 1
    %p285 = por %p283, %p284
    %p286 = scmp.ne.s32.totalorder %s275, %s276
    %p287 = scmp.eq.s32.totalorder %s26, 0
    %p288 = por %p286, %p287
    %p289 = scmp.ne.s32.totalorder %s275, %s276
    %p290 = scmp.eq.s32.totalorder %s27, 1
    %p291 = por %p289, %p290
    %p293 = scmp.ne.s32.totalorder %s276, %s292
    %p294 = scmp.eq.s32.totalorder %s27, 0
    %p295 = por %p293, %p294
    %s296 = ssub.s32 %s21, %s28
    %p297 = scmp.eq.s32.totalorder %s296, 0
    %s299 = sadd.s32 %s298, 1
    %s300 = scalar_select %p297, %s298, %s299
    %p303 = pneg %p297
    %p304 = scmp.eq.s32.totalorder %s21, 1
    %p305 = por %p303, %p304
    %p306 = scmp.ne.s32.totalorder %s298, %s301
    %p307 = scmp.eq.s32.totalorder %s21, 0
    %p308 = por %p306, %p307
    %p309 = scmp.ne.s32.totalorder %s298, %s301
    %p310 = scmp.eq.s32.totalorder %s26, 1
    %p311 = por %p309, %p310
    %p312 = scmp.ne.s32.totalorder %s301, %s302
    %p313 = scmp.eq.s32.totalorder %s26, 0
    %p314 = por %p312, %p313
    %p315 = scmp.ne.s32.totalorder %s301, %s302
    %p316 = scmp.eq.s32.totalorder %s27, 1
    %p317 = por %p315, %p316
    %p319 = scmp.ne.s32.totalorder %s302, %s318
    %p320 = scmp.eq.s32.totalorder %s27, 0
    %p321 = por %p319, %p320
    %s322 = ssub.s32 %s21, %s28
    %p323 = scmp.eq.s32.totalorder %s322, 0
    %s325 = sadd.s32 %s324, 1
    %s326 = scalar_select %p323, %s324, %s325
    %p329 = pneg %p323
    %p330 = scmp.eq.s32.totalorder %s21, 1
    %p331 = por %p329, %p330
    %p332 = scmp.ne.s32.totalorder %s324, %s327
    %p333 = scmp.eq.s32.totalorder %s21, 0
    %p334 = por %p332, %p333
    %p335 = scmp.ne.s32.totalorder %s324, %s327
    %p336 = scmp.eq.s32.totalorder %s26, 1
    %p337 = por %p335, %p336
    %p338 = scmp.ne.s32.totalorder %s327, %s328
    %p339 = scmp.eq.s32.totalorder %s26, 0
    %p340 = por %p338, %p339
    %p341 = scmp.ne.s32.totalorder %s327, %s328
    %p342 = scmp.eq.s32.totalorder %s27, 1
    %p343 = por %p341, %p342
    %p345 = scmp.ne.s32.totalorder %s328, %s344
    %p346 = scmp.eq.s32.totalorder %s27, 0
    %p347 = por %p345, %p346
    %s348 = ssub.s32 %s21, %s28
    %p349 = scmp.eq.s32.totalorder %s348, 0
    %s351 = sadd.s32 %s350, 1
    %s352 = scalar_select %p349, %s350, %s351
    %p355 = pneg %p349
    %p356 = scmp.eq.s32.totalorder %s21, 1
    %p357 = por %p355, %p356
    %p358 = scmp.ne.s32.totalorder %s350, %s353
    %p359 = scmp.eq.s32.totalorder %s21, 0
    %p360 = por %p358, %p359
    %p361 = scmp.ne.s32.totalorder %s350, %s353
    %p362 = scmp.eq.s32.totalorder %s26, 1
    %p363 = por %p361, %p362
    %p364 = scmp.ne.s32.totalorder %s353, %s354
    %p365 = scmp.eq.s32.totalorder %s26, 0
    %p366 = por %p364, %p365
    %p367 = scmp.ne.s32.totalorder %s353, %s354
    %p368 = scmp.eq.s32.totalorder %s27, 1
    %p369 = por %p367, %p368
    %p371 = scmp.ne.s32.totalorder %s354, %s370
    %p372 = scmp.eq.s32.totalorder %s27, 0
    %p373 = por %p371, %p372
    %s375 = sadd.s32 %s374, 1
    %p378 = scmp.eq.s32.totalorder %s21, 1
    %p379 = scmp.ne.s32.totalorder %s374, %s376
    %p380 = scmp.eq.s32.totalorder %s21, 0
    %p381 = por %p379, %p380
    %p382 = scmp.ne.s32.totalorder %s374, %s376
    %p383 = scmp.eq.s32.totalorder %s26, 1
    %p384 = por %p382, %p383
    %p385 = scmp.ne.s32.totalorder %s376, %s377
    %p386 = scmp.eq.s32.totalorder %s26, 0
    %p387 = por %p385, %p386
    %p388 = scmp.ne.s32.totalorder %s376, %s377
    %p389 = scmp.eq.s32.totalorder %s27, 1
    %p390 = por %p388, %p389
    %p392 = scmp.ne.s32.totalorder %s377, %s391
    %p393 = scmp.eq.s32.totalorder %s27, 0
    %p394 = por %p392, %p393
    %p395 = scmp.le.s32.totalorder 1, %s21
    %p396 = scmp.lt.s32.totalorder %s21, 3
    %p397 = pnand %p395, %p396
    %p398 = pneg %p397
    // Predicated region
    $region9: #{lex3d_forward.5} parent=5 // pred_check
      _
    $region10: #{lex3d_forward.5} parent=5 // pred_check_branch
      %400 = sbr.rel (%p397) target = $region12
    $region11: #{lex3d_forward.5} parent=5 // pred_region
      %s401 = ssub.s32 %s21, 1
      // Predicated region
      $region13: #{lex3d_forward.5} parent=11 // pred_check
        %p402 = pneg %p42
      $region14: #{lex3d_forward.5} parent=11 // pred_check_branch
        %404 = sbr.rel (%p402) target = $region16
      $region15: #{lex3d_forward.5} parent=11 // pred_region
        _
      $region16: #{lex3d_forward.5} parent=11 // pred_fallthru
        _
      // Predicated region
      $region17: #{lex3d_forward.5} parent=11 // pred_check
        %p405 = pneg %p63
      $region18: #{lex3d_forward.5} parent=11 // pred_check_branch
        %407 = sbr.rel (%p405) target = $region20
      $region19: #{lex3d_forward.5} parent=11 // pred_region
        _
      $region20: #{lex3d_forward.5} parent=11 // pred_fallthru
        _
      // Predicated region
      $region21: #{lex3d_forward.5} parent=11 // pred_check
        %p408 = pneg %p84
      $region22: #{lex3d_forward.5} parent=11 // pred_check_branch
        %410 = sbr.rel (%p408) target = $region24
      $region23: #{lex3d_forward.5} parent=11 // pred_region
        _
      $region24: #{lex3d_forward.5} parent=11 // pred_fallthru
        _
      // Predicated region
      $region25: #{lex3d_forward.5} parent=11 // pred_check
        %p411 = pneg %p105
      $region26: #{lex3d_forward.5} parent=11 // pred_check_branch
        %413 = sbr.rel (%p411) target = $region28
      $region27: #{lex3d_forward.5} parent=11 // pred_region
        _
      $region28: #{lex3d_forward.5} parent=11 // pred_fallthru
        _
      // Predicated region
      $region29: #{lex3d_forward.5} parent=11 // pred_check
        %p414 = pneg %p126
      $region30: #{lex3d_forward.5} parent=11 // pred_check_branch
        %416 = sbr.rel (%p414) target = $region32
      $region31: #{lex3d_forward.5} parent=11 // pred_region
        _
      $region32: #{lex3d_forward.5} parent=11 // pred_fallthru
        _
      // Predicated region
      $region33: #{lex3d_forward.5} parent=11 // pred_check
        %p417 = pneg %p147
      $region34: #{lex3d_forward.5} parent=11 // pred_check_branch
        %419 = sbr.rel (%p417) target = $region36
      $region35: #{lex3d_forward.5} parent=11 // pred_region
        _
      $region36: #{lex3d_forward.5} parent=11 // pred_fallthru
        _
      // Predicated region
      $region37: #{lex3d_forward.5} parent=11 // pred_check
        %p420 = pneg %p168
      $region38: #{lex3d_forward.5} parent=11 // pred_check_branch
        %422 = sbr.rel (%p420) target = $region40
      $region39: #{lex3d_forward.5} parent=11 // pred_region
        _
      $region40: #{lex3d_forward.5} parent=11 // pred_fallthru
        _
      // Predicated region
      $region41: #{lex3d_forward.5} parent=11 // pred_check
        %p423 = pneg %p189
      $region42: #{lex3d_forward.5} parent=11 // pred_check_branch
        %425 = sbr.rel (%p423) target = $region44
      $region43: #{lex3d_forward.5} parent=11 // pred_region
        _
      $region44: #{lex3d_forward.5} parent=11 // pred_fallthru
        _
      // Predicated region
      $region45: #{lex3d_forward.5} parent=11 // pred_check
        %p426 = pneg %p210
      $region46: #{lex3d_forward.5} parent=11 // pred_check_branch
        %428 = sbr.rel (%p426) target = $region48
      $region47: #{lex3d_forward.5} parent=11 // pred_region
        _
      $region48: #{lex3d_forward.5} parent=11 // pred_fallthru
        _
    $region12: #{lex3d_forward.5} parent=5 // pred_fallthru
      _
    %p429 = scmp.lt.s32.totalorder %s21, 2
    // Predicated region
    $region49: #{lex3d_forward.5} parent=5 // pred_check
      %p430 = pneg %p429
    $region50: #{lex3d_forward.5} parent=5 // pred_check_branch
      %432 = sbr.rel (%p430) target = $region52
    $region51: #{lex3d_forward.5} parent=5 // pred_region
      // Predicated region
      $region53: #{lex3d_forward.5} parent=51 // pred_check
        %p433 = pneg %p230
      $region54: #{lex3d_forward.5} parent=51 // pred_check_branch
        %435 = sbr.rel (%p433) target = $region56
      $region55: #{lex3d_forward.5} parent=51 // pred_region
        %s436 = smul.u32 2, %s21
        %p437 = scmp.lt.s32.totalorder %s436, 3
        %s438 = scalar_select %p437, %s436, 3
        %s439 = smul.addr %s438, 8
        %s440 = scalar_lea.vmem %s9, %s439
        %s441 = smul.u32 2, %s21
      $region56: #{lex3d_forward.5} parent=51 // pred_fallthru
        _
      // Predicated region
      $region57: #{lex3d_forward.5} parent=51 // pred_check
        %p442 = pneg %p256
      $region58: #{lex3d_forward.5} parent=51 // pred_check_branch
        %444 = sbr.rel (%p442) target = $region60
      $region59: #{lex3d_forward.5} parent=51 // pred_region
        %s445 = smul.u32 2, %s21
        %p446 = scmp.lt.s32.totalorder %s445, 3
        %s447 = scalar_select %p446, %s445, 3
        %s448 = smul.addr %s447, 8
        %s449 = scalar_lea.vmem %s10, %s448
        %s450 = smul.u32 2, %s21
      $region60: #{lex3d_forward.5} parent=51 // pred_fallthru
        _
      // Predicated region
      $region61: #{lex3d_forward.5} parent=51 // pred_check
        %p451 = pneg %p282
      $region62: #{lex3d_forward.5} parent=51 // pred_check_branch
        %453 = sbr.rel (%p451) target = $region64
      $region63: #{lex3d_forward.5} parent=51 // pred_region
        %s454 = smul.u32 2, %s21
        %p455 = scmp.lt.s32.totalorder %s454, 3
        %s456 = scalar_select %p455, %s454, 3
        %s457 = smul.addr %s456, 8
        %s458 = scalar_lea.vmem %s11, %s457
        %s459 = smul.u32 2, %s21
      $region64: #{lex3d_forward.5} parent=51 // pred_fallthru
        _
      // Predicated region
      $region65: #{lex3d_forward.5} parent=51 // pred_check
        %p460 = pneg %p308
      $region66: #{lex3d_forward.5} parent=51 // pred_check_branch
        %462 = sbr.rel (%p460) target = $region68
      $region67: #{lex3d_forward.5} parent=51 // pred_region
        %s463 = smul.u32 2, %s21
        %p464 = scmp.lt.s32.totalorder %s463, 3
        %s465 = scalar_select %p464, %s463, 3
        %s466 = smul.addr %s465, 8
        %s467 = scalar_lea.vmem %s12, %s466
        %s468 = smul.u32 2, %s21
      $region68: #{lex3d_forward.5} parent=51 // pred_fallthru
        _
      // Predicated region
      $region69: #{lex3d_forward.5} parent=51 // pred_check
        %p469 = pneg %p334
      $region70: #{lex3d_forward.5} parent=51 // pred_check_branch
        %471 = sbr.rel (%p469) target = $region72
      $region71: #{lex3d_forward.5} parent=51 // pred_region
        %s472 = smul.u32 2, %s21
        %p473 = scmp.lt.s32.totalorder %s472, 3
        %s474 = scalar_select %p473, %s472, 3
        %s475 = smul.addr %s474, 8
        %s476 = scalar_lea.vmem %s13, %s475
        %s477 = smul.u32 2, %s21
      $region72: #{lex3d_forward.5} parent=51 // pred_fallthru
        _
      // Predicated region
      $region73: #{lex3d_forward.5} parent=51 // pred_check
        %p478 = pneg %p360
      $region74: #{lex3d_forward.5} parent=51 // pred_check_branch
        %480 = sbr.rel (%p478) target = $region76
      $region75: #{lex3d_forward.5} parent=51 // pred_region
        %s481 = smul.u32 2, %s21
        %p482 = scmp.lt.s32.totalorder %s481, 3
        %s483 = scalar_select %p482, %s481, 3
        %s484 = smul.addr %s483, 8
        %s485 = scalar_lea.vmem %s14, %s484
        %s486 = smul.u32 2, %s21
      $region76: #{lex3d_forward.5} parent=51 // pred_fallthru
        _
    $region52: #{lex3d_forward.5} parent=5 // pred_fallthru
      _
    %p487 = scmp.le.s32.totalorder 1, %s21
    %p488 = scmp.lt.s32.totalorder %s21, 3
    %p489 = pnand %p487, %p488
    %p490 = pneg %p489
    // Predicated region
    $region77: #{lex3d_forward.5} parent=5 // pred_check
      _
    $region78: #{lex3d_forward.5} parent=5 // pred_check_branch
      %492 = sbr.rel (%p489) target = $region80
    $region79: #{lex3d_forward.5} parent=5 // pred_region
      %s493 = ssub.s32 %s21, 1
      %p494 = pneg %p42
      %p495 = pneg %p39
      %p496 = pneg %p63
      %p497 = pneg %p60
      %p498 = pneg %p84
      %p499 = pneg %p81
      %p500 = pneg %p105
      %p501 = pneg %p102
      %p502 = pneg %p126
      %p503 = pneg %p123
      %p504 = pneg %p147
      %p505 = pneg %p144
      %p506 = pneg %p168
      %p507 = pneg %p165
      %p508 = pneg %p189
      %p509 = pneg %p186
      %p510 = pneg %p210
      %p511 = pneg %p207
      %s512 = smul.u32 2, %s26
      %p513 = scmp.lt.s32.totalorder %s512, 3
      %s514 = scalar_select %p513, %s512, 3
      %s515 = smul.addr %s514, 8
      %s516 = scalar_lea.vmem %s9, %s515
      %p517 = pneg %p236
      %p518 = pneg %p233
      %s519 = smul.u32 2, %s26
      %p520 = scmp.lt.s32.totalorder %s519, 3
      %s521 = scalar_select %p520, %s519, 3
      %s522 = smul.addr %s521, 8
      %s523 = scalar_lea.vmem %s10, %s522
      %p524 = pneg %p262
      %p525 = pneg %p259
      %s526 = smul.u32 2, %s26
      %p527 = scmp.lt.s32.totalorder %s526, 3
      %s528 = scalar_select %p527, %s526, 3
      %s529 = smul.addr %s528, 8
      %s530 = scalar_lea.vmem %s11, %s529
      %p531 = pneg %p288
      %p532 = pneg %p285
      %s533 = smul.u32 2, %s26
      %p534 = scmp.lt.s32.totalorder %s533, 3
      %s535 = scalar_select %p534, %s533, 3
      %s536 = smul.addr %s535, 8
      %s537 = scalar_lea.vmem %s12, %s536
      %p538 = pneg %p314
      %p539 = pneg %p311
      %s540 = smul.u32 2, %s26
      %p541 = scmp.lt.s32.totalorder %s540, 3
      %s542 = scalar_select %p541, %s540, 3
      %s543 = smul.addr %s542, 8
      %s544 = scalar_lea.vmem %s13, %s543
      %p545 = pneg %p340
      %p546 = pneg %p337
      %s547 = smul.u32 2, %s26
      %p548 = scmp.lt.s32.totalorder %s547, 3
      %s549 = scalar_select %p548, %s547, 3
      %s550 = smul.addr %s549, 8
      %s551 = scalar_lea.vmem %s14, %s550
      %p552 = pneg %p366
      %p553 = pneg %p363
      %p554 = pneg %p387
      %p555 = pneg %p384
      %s556 = smul.u32 2, %s26
      %p557 = scmp.lt.s32.totalorder %s556, 3
      %s558 = scalar_select %p557, %s556, 3
      %s559 = smul.addr %s558, 8
      %s560 = scalar_lea.vmem %s9, %s559
      %s561 = smul.u32 2, %s26
      %s562 = smul.u32 2, %s26
      %p563 = scmp.lt.s32.totalorder %s562, 3
      %s564 = scalar_select %p563, %s562, 3
      %s565 = smul.addr %s564, 8
      %s566 = scalar_lea.vmem %s10, %s565
      %s567 = smul.u32 2, %s26
      %s568 = smul.u32 2, %s26
      %p569 = scmp.lt.s32.totalorder %s568, 3
      %s570 = scalar_select %p569, %s568, 3
      %s571 = smul.addr %s570, 8
      %s572 = scalar_lea.vmem %s11, %s571
      %s573 = smul.u32 2, %s26
      %s574 = smul.u32 2, %s26
      %p575 = scmp.lt.s32.totalorder %s574, 3
      %s576 = scalar_select %p575, %s574, 3
      %s577 = smul.addr %s576, 8
      %s578 = scalar_lea.vmem %s12, %s577
      %s579 = smul.u32 2, %s26
      %s580 = smul.u32 2, %s26
      %p581 = scmp.lt.s32.totalorder %s580, 3
      %s582 = scalar_select %p581, %s580, 3
      %s583 = smul.addr %s582, 8
      %s584 = scalar_lea.vmem %s13, %s583
      %s585 = smul.u32 2, %s26
      %s586 = smul.u32 2, %s26
      %p587 = scmp.lt.s32.totalorder %s586, 3
      %s588 = scalar_select %p587, %s586, 3
      %s589 = smul.addr %s588, 8
      %s590 = scalar_lea.vmem %s14, %s589
      %s591 = smul.u32 2, %s26
      %p593 = scmp.eq.s32.totalorder %s26, 0
      // Predicated region
      $region81: #{lex3d_forward.5} parent=79 // pred_check
        %p594 = pneg %p593
      $region82: #{lex3d_forward.5} parent=79 // pred_check_branch
        %596 = sbr.rel (%p594) target = $region84
      $region83: #{lex3d_forward.5} parent=79 // pred_region
        %v597 = vld [vmem:[%s0] sm:$0xff]
        %v598 = vld [vmem:[%s0 + $0x8] sm:$0xff]
        %v599 = vld [vmem:[%s0 + $0x10] sm:$0xff]
        %v600 = vld [vmem:[%s0 + $0x18] sm:$0xff]
        %v601 = vpack.c.bf16 %v599, %v597
        %v602 = vpack.c.bf16 %v600, %v598
        %v603 = vld [vmem:[%s1] sm:$0xff]
        %v604 = vld [vmem:[%s1 + $0x8] sm:$0xff]
        %v605 = vld [vmem:[%s1 + $0x10] sm:$0xff]
        %v606 = vld [vmem:[%s1 + $0x18] sm:$0xff]
        %v607 = vld [vmem:[%s1 + $0x20] sm:$0xff]
        %v608 = vld [vmem:[%s1 + $0x28] sm:$0xff]
        %v609 = vld [vmem:[%s1 + $0x30] sm:$0xff]
        %v610 = vld [vmem:[%s1 + $0x38] sm:$0xff]
        %v611 = vld [vmem:[%s1 + $0x40] sm:$0xff]
        %v612 = vld [vmem:[%s1 + $0x48] sm:$0xff]
        %v613 = vld [vmem:[%s1 + $0x50] sm:$0xff]
        %v614 = vld [vmem:[%s1 + $0x58] sm:$0xff]
        %v615 = vld [vmem:[%s1 + $0x60] sm:$0xff]
        %v616 = vld [vmem:[%s1 + $0x68] sm:$0xff]
        %v617 = vld [vmem:[%s1 + $0x70] sm:$0xff]
        %v618 = vld [vmem:[%s1 + $0x78] sm:$0xff]
        %v619 = vld [vmem:[%s1 + $0x80] sm:$0xff]
        %v620 = vld [vmem:[%s1 + $0x88] sm:$0xff]
        %v621 = vld [vmem:[%s1 + $0x90] sm:$0xff]
        %v622 = vld [vmem:[%s1 + $0x98] sm:$0xff]
        %v623 = vld [vmem:[%s1 + $0xa0] sm:$0xff]
        %v624 = vld [vmem:[%s1 + $0xa8] sm:$0xff]
        %v625 = vld [vmem:[%s1 + $0xb0] sm:$0xff]
        %v626 = vld [vmem:[%s1 + $0xb8] sm:$0xff]
        %v627 = vld [vmem:[%s1 + $0xc0] sm:$0xff]
        %v628 = vld [vmem:[%s1 + $0xc8] sm:$0xff]
        %v629 = vld [vmem:[%s1 + $0xd0] sm:$0xff]
        %v630 = vld [vmem:[%s1 + $0xd8] sm:$0xff]
        %v631 = vld [vmem:[%s1 + $0xe0] sm:$0xff]
        %v632 = vld [vmem:[%s1 + $0xe8] sm:$0xff]
        %v633 = vld [vmem:[%s1 + $0xf0] sm:$0xff]
        %v634 = vld [vmem:[%s1 + $0xf8] sm:$0xff]
        %v635 = vld [vmem:[%s1 + $0x100] sm:$0xff]
        %v636 = vld [vmem:[%s1 + $0x108] sm:$0xff]
        %v637 = vld [vmem:[%s1 + $0x110] sm:$0xff]
        %v638 = vld [vmem:[%s1 + $0x118] sm:$0xff]
        %v639 = vld [vmem:[%s1 + $0x120] sm:$0xff]
        %v640 = vld [vmem:[%s1 + $0x128] sm:$0xff]
        %v641 = vld [vmem:[%s1 + $0x130] sm:$0xff]
        %v642 = vld [vmem:[%s1 + $0x138] sm:$0xff]
        %v643 = vld [vmem:[%s1 + $0x140] sm:$0xff]
        %v644 = vld [vmem:[%s1 + $0x148] sm:$0xff]
        %v645 = vld [vmem:[%s1 + $0x150] sm:$0xff]
        %v646 = vld [vmem:[%s1 + $0x158] sm:$0xff]
        %v647 = vld [vmem:[%s1 + $0x160] sm:$0xff]
        %v648 = vld [vmem:[%s1 + $0x168] sm:$0xff]
        %v649 = vld [vmem:[%s1 + $0x170] sm:$0xff]
        %v650 = vld [vmem:[%s1 + $0x178] sm:$0xff]
        %v651 = vld [vmem:[%s1 + $0x180] sm:$0xff]
        %v652 = vld [vmem:[%s1 + $0x188] sm:$0xff]
        %v653 = vld [vmem:[%s1 + $0x190] sm:$0xff]
        %v654 = vld [vmem:[%s1 + $0x198] sm:$0xff]
        %v655 = vld [vmem:[%s1 + $0x1a0] sm:$0xff]
        %v656 = vld [vmem:[%s1 + $0x1a8] sm:$0xff]
        %v657 = vld [vmem:[%s1 + $0x1b0] sm:$0xff]
        %v658 = vld [vmem:[%s1 + $0x1b8] sm:$0xff]
        %v659 = vld [vmem:[%s1 + $0x1c0] sm:$0xff]
        %v660 = vld [vmem:[%s1 + $0x1c8] sm:$0xff]
        %v661 = vld [vmem:[%s1 + $0x1d0] sm:$0xff]
        %v662 = vld [vmem:[%s1 + $0x1d8] sm:$0xff]
        %v663 = vld [vmem:[%s1 + $0x1e0] sm:$0xff]
        %v664 = vld [vmem:[%s1 + $0x1e8] sm:$0xff]
        %v665 = vld [vmem:[%s1 + $0x1f0] sm:$0xff]
        %v666 = vld [vmem:[%s1 + $0x1f8] sm:$0xff]
        %v667 = vld [vmem:[%s2] sm:$0xf]
        %v669 = vlaneseq
        %v670 = vshrl.u32 %v669, 7
        %v671 = vsub.s32 0, %v670
        %v672 = vrot.slane %v667, %v671
        %v673 = vlaneseq
        %v674 = vshrl.u32 %v673, 7
        %v675 = vsub.s32 1, %v674
        %v676 = vrot.slane %v667, %v675
        %v677 = vlaneseq
        %v678 = vshrl.u32 %v677, 7
        %v679 = vsub.s32 2, %v678
        %v680 = vrot.slane %v667, %v679
        %v681 = vlaneseq
        %v682 = vshrl.u32 %v681, 7
        %v683 = vsub.s32 3, %v682
        %v684 = vrot.slane %v667, %v683
        %v753 = vunpack.c.l.b16 %v603
        %v754 = vunpack.c.h.b16 %v603
        %v755 = vunpack.c.l.b16 %v604
        %v756 = vunpack.c.h.b16 %v604
        %v757 = vunpack.c.l.b16 %v605
        %v758 = vunpack.c.h.b16 %v605
        %v759 = vunpack.c.l.b16 %v606
        %v760 = vunpack.c.h.b16 %v606
        %v761 = vunpack.c.l.b16 %v607
        %v762 = vunpack.c.h.b16 %v607
        %v763 = vunpack.c.l.b16 %v608
        %v764 = vunpack.c.h.b16 %v608
        %v765 = vunpack.c.l.b16 %v609
        %v766 = vunpack.c.h.b16 %v609
        %v767 = vunpack.c.l.b16 %v610
        %v768 = vunpack.c.h.b16 %v610
        %v769 = vunpack.c.l.b16 %v611
        %v770 = vunpack.c.h.b16 %v611
        %v771 = vunpack.c.l.b16 %v612
        %v772 = vunpack.c.h.b16 %v612
        %v773 = vunpack.c.l.b16 %v613
        %v774 = vunpack.c.h.b16 %v613
        %v775 = vunpack.c.l.b16 %v614
        %v776 = vunpack.c.h.b16 %v614
        %v777 = vunpack.c.l.b16 %v615
        %v778 = vunpack.c.h.b16 %v615
        %v779 = vunpack.c.l.b16 %v616
        %v780 = vunpack.c.h.b16 %v616
        %v781 = vunpack.c.l.b16 %v617
        %v782 = vunpack.c.h.b16 %v617
        %v783 = vunpack.c.l.b16 %v618
        %v784 = vunpack.c.h.b16 %v618
        %v785 = vunpack.c.l.b16 %v619
        %v786 = vunpack.c.h.b16 %v619
        %v787 = vunpack.c.l.b16 %v620
        %v788 = vunpack.c.h.b16 %v620
        %v789 = vunpack.c.l.b16 %v621
        %v790 = vunpack.c.h.b16 %v621
        %v791 = vunpack.c.l.b16 %v622
        %v792 = vunpack.c.h.b16 %v622
        %v793 = vunpack.c.l.b16 %v623
        %v794 = vunpack.c.h.b16 %v623
        %v795 = vunpack.c.l.b16 %v624
        %v796 = vunpack.c.h.b16 %v624
        %v797 = vunpack.c.l.b16 %v625
        %v798 = vunpack.c.h.b16 %v625
        %v799 = vunpack.c.l.b16 %v626
        %v800 = vunpack.c.h.b16 %v626
        %v801 = vunpack.c.l.b16 %v627
        %v802 = vunpack.c.h.b16 %v627
        %v803 = vunpack.c.l.b16 %v628
        %v804 = vunpack.c.h.b16 %v628
        %v805 = vunpack.c.l.b16 %v629
        %v806 = vunpack.c.h.b16 %v629
        %v807 = vunpack.c.l.b16 %v630
        %v808 = vunpack.c.h.b16 %v630
        %v809 = vunpack.c.l.b16 %v631
        %v810 = vunpack.c.h.b16 %v631
        %v811 = vunpack.c.l.b16 %v632
        %v812 = vunpack.c.h.b16 %v632
        %v813 = vunpack.c.l.b16 %v633
        %v814 = vunpack.c.h.b16 %v633
        %v815 = vunpack.c.l.b16 %v634
        %v816 = vunpack.c.h.b16 %v634
        %v817 = vunpack.c.l.b16 %v635
        %v818 = vunpack.c.h.b16 %v635
        %v819 = vunpack.c.l.b16 %v636
        %v820 = vunpack.c.h.b16 %v636
        %v821 = vunpack.c.l.b16 %v637
        %v822 = vunpack.c.h.b16 %v637
        %v823 = vunpack.c.l.b16 %v638
        %v824 = vunpack.c.h.b16 %v638
        %v825 = vunpack.c.l.b16 %v639
        %v826 = vunpack.c.h.b16 %v639
        %v827 = vunpack.c.l.b16 %v640
        %v828 = vunpack.c.h.b16 %v640
        %v829 = vunpack.c.l.b16 %v641
        %v830 = vunpack.c.h.b16 %v641
        %v831 = vunpack.c.l.b16 %v642
        %v832 = vunpack.c.h.b16 %v642
        %v833 = vunpack.c.l.b16 %v643
        %v834 = vunpack.c.h.b16 %v643
        %v835 = vunpack.c.l.b16 %v644
        %v836 = vunpack.c.h.b16 %v644
        %v837 = vunpack.c.l.b16 %v645
        %v838 = vunpack.c.h.b16 %v645
        %v839 = vunpack.c.l.b16 %v646
        %v840 = vunpack.c.h.b16 %v646
        %v841 = vunpack.c.l.b16 %v647
        %v842 = vunpack.c.h.b16 %v647
        %v843 = vunpack.c.l.b16 %v648
        %v844 = vunpack.c.h.b16 %v648
        %v845 = vunpack.c.l.b16 %v649
        %v846 = vunpack.c.h.b16 %v649
        %v847 = vunpack.c.l.b16 %v650
        %v848 = vunpack.c.h.b16 %v650
        %v849 = vunpack.c.l.b16 %v651
        %v850 = vunpack.c.h.b16 %v651
        %v851 = vunpack.c.l.b16 %v652
        %v852 = vunpack.c.h.b16 %v652
        %v853 = vunpack.c.l.b16 %v653
        %v854 = vunpack.c.h.b16 %v653
        %v855 = vunpack.c.l.b16 %v654
        %v856 = vunpack.c.h.b16 %v654
        %v857 = vunpack.c.l.b16 %v655
        %v858 = vunpack.c.h.b16 %v655
        %v859 = vunpack.c.l.b16 %v656
        %v860 = vunpack.c.h.b16 %v656
        %v861 = vunpack.c.l.b16 %v657
        %v862 = vunpack.c.h.b16 %v657
        %v863 = vunpack.c.l.b16 %v658
        %v864 = vunpack.c.h.b16 %v658
        %v865 = vunpack.c.l.b16 %v659
        %v866 = vunpack.c.h.b16 %v659
        %v867 = vunpack.c.l.b16 %v660
        %v868 = vunpack.c.h.b16 %v660
        %v869 = vunpack.c.l.b16 %v661
        %v870 = vunpack.c.h.b16 %v661
        %v871 = vunpack.c.l.b16 %v662
        %v872 = vunpack.c.h.b16 %v662
        %v873 = vunpack.c.l.b16 %v663
        %v874 = vunpack.c.h.b16 %v663
        %v875 = vunpack.c.l.b16 %v664
        %v876 = vunpack.c.h.b16 %v664
        %v877 = vunpack.c.l.b16 %v665
        %v878 = vunpack.c.h.b16 %v665
        %v879 = vunpack.c.l.b16 %v666
        %v880 = vunpack.c.h.b16 %v666
        %v881 = vpack.c.b16 %v757, %v753
        %v882 = vpack.c.b16 %v758, %v754
        %v883 = vpack.c.b16 %v759, %v755
        %v884 = vpack.c.b16 %v760, %v756
        %v885 = vpack.c.b16 %v765, %v761
        %v886 = vpack.c.b16 %v766, %v762
        %v887 = vpack.c.b16 %v767, %v763
        %v888 = vpack.c.b16 %v768, %v764
        %v889 = vpack.c.b16 %v773, %v769
        %v890 = vpack.c.b16 %v774, %v770
        %v891 = vpack.c.b16 %v775, %v771
        %v892 = vpack.c.b16 %v776, %v772
        %v893 = vpack.c.b16 %v781, %v777
        %v894 = vpack.c.b16 %v782, %v778
        %v895 = vpack.c.b16 %v783, %v779
        %v896 = vpack.c.b16 %v784, %v780
        %v897 = vpack.c.b16 %v789, %v785
        %v898 = vpack.c.b16 %v790, %v786
        %v899 = vpack.c.b16 %v791, %v787
        %v900 = vpack.c.b16 %v792, %v788
        %v901 = vpack.c.b16 %v797, %v793
        %v902 = vpack.c.b16 %v798, %v794
        %v903 = vpack.c.b16 %v799, %v795
        %v904 = vpack.c.b16 %v800, %v796
        %v905 = vpack.c.b16 %v805, %v801
        %v906 = vpack.c.b16 %v806, %v802
        %v907 = vpack.c.b16 %v807, %v803
        %v908 = vpack.c.b16 %v808, %v804
        %v909 = vpack.c.b16 %v813, %v809
        %v910 = vpack.c.b16 %v814, %v810
        %v911 = vpack.c.b16 %v815, %v811
        %v912 = vpack.c.b16 %v816, %v812
        %v913 = vpack.c.b16 %v821, %v817
        %v914 = vpack.c.b16 %v822, %v818
        %v915 = vpack.c.b16 %v823, %v819
        %v916 = vpack.c.b16 %v824, %v820
        %v917 = vpack.c.b16 %v829, %v825
        %v918 = vpack.c.b16 %v830, %v826
        %v919 = vpack.c.b16 %v831, %v827
        %v920 = vpack.c.b16 %v832, %v828
        %v921 = vpack.c.b16 %v837, %v833
        %v922 = vpack.c.b16 %v838, %v834
        %v923 = vpack.c.b16 %v839, %v835
        %v924 = vpack.c.b16 %v840, %v836
        %v925 = vpack.c.b16 %v845, %v841
        %v926 = vpack.c.b16 %v846, %v842
        %v927 = vpack.c.b16 %v847, %v843
        %v928 = vpack.c.b16 %v848, %v844
        %v929 = vpack.c.b16 %v853, %v849
        %v930 = vpack.c.b16 %v854, %v850
        %v931 = vpack.c.b16 %v855, %v851
        %v932 = vpack.c.b16 %v856, %v852
        %v933 = vpack.c.b16 %v861, %v857
        %v934 = vpack.c.b16 %v862, %v858
        %v935 = vpack.c.b16 %v863, %v859
        %v936 = vpack.c.b16 %v864, %v860
        %v937 = vpack.c.b16 %v869, %v865
        %v938 = vpack.c.b16 %v870, %v866
        %v939 = vpack.c.b16 %v871, %v867
        %v940 = vpack.c.b16 %v872, %v868
        %v941 = vpack.c.b16 %v877, %v873
        %v942 = vpack.c.b16 %v878, %v874
        %v943 = vpack.c.b16 %v879, %v875
        %v944 = vpack.c.b16 %v880, %v876
        %1009 = vmatprep.subr.bf16.mxu0 %v910
        %1010 = vmatpush1.bf16.msra.mxu0 %v909
        %1011 = vmatprep.subr.bf16.mxu0 %v906
        %1012 = vmatpush1.bf16.msra.mxu0 %v905
        %1013 = vmatprep.subr.bf16.mxu0 %v902
        %1014 = vmatpush1.bf16.msra.mxu0 %v901
        %1015 = vmatprep.subr.bf16.mxu0 %v898
        %1016 = vmatpush1.bf16.msra.mxu0 %v897
        %1017 = vmatprep.subr.bf16.mxu0 %v894
        %1018 = vmatpush1.bf16.msra.mxu0 %v893
        %1019 = vmatprep.subr.bf16.mxu0 %v890
        %1020 = vmatpush1.bf16.msra.mxu0 %v889
        %1021 = vmatprep.subr.bf16.mxu0 %v886
        %1022 = vmatpush1.bf16.msra.mxu0 %v885
        %1023 = vmatprep.subr.bf16.mxu0 %v882
        %1024 = vmatpush1.bf16.msra.mxu0 %v881
        %1025 = vmatprep.subr.bf16.mxu0 %v942
        %1026 = vmatpush2.bf16.msra.mxu0 %v941
        %1027 = vmatprep.subr.bf16.mxu0 %v938
        %1028 = vmatpush2.bf16.msra.mxu0 %v937
        %1029 = vmatprep.subr.bf16.mxu0 %v934
        %1030 = vmatpush2.bf16.msra.mxu0 %v933
        %1031 = vmatprep.subr.bf16.mxu0 %v930
        %1032 = vmatpush2.bf16.msra.mxu0 %v929
        %1033 = vmatprep.subr.bf16.mxu0 %v926
        %1034 = vmatpush2.bf16.msra.mxu0 %v925
        %1035 = vmatprep.subr.bf16.mxu0 %v922
        %1036 = vmatpush2.bf16.msra.mxu0 %v921
        %1037 = vmatprep.subr.bf16.mxu0 %v918
        %1038 = vmatpush2.bf16.msra.mxu0 %v917
        %1039 = vmatprep.subr.bf16.mxu0 %v914
        %1040 = vmatpush2.bf16.msra.mxu0 %v913
        %1041 = vmatprep.mubr.bf16.mxu0 %v602
        %1042 = vmatmul.mubr.bf16.gmra.mxu0 %v601
        %v1043 = vpop.f32.mrf.mxu0
        %v1044 = vadd.f32 %v672, %v1043
        %v1045 = vpop.f32.mrf.mxu0
        %v1046 = vadd.f32 %v676, %v1045
        %v1047 = vpop.f32.mrf.mxu0
        %v1048 = vadd.f32 %v672, %v1047
        %v1049 = vpop.f32.mrf.mxu0
        %v1050 = vadd.f32 %v676, %v1049
        %1051 = vdwg.mxu0
        %1052 = vmatprep.subr.bf16.mxu0 %v912
        %1053 = vmatpush1.bf16.msra.mxu0 %v911
        %1054 = vmatprep.subr.bf16.mxu0 %v908
        %1055 = vmatpush1.bf16.msra.mxu0 %v907
        %1056 = vmatprep.subr.bf16.mxu0 %v904
        %1057 = vmatpush1.bf16.msra.mxu0 %v903
        %1058 = vmatprep.subr.bf16.mxu0 %v900
        %1059 = vmatpush1.bf16.msra.mxu0 %v899
        %1060 = vmatprep.subr.bf16.mxu0 %v896
        %1061 = vmatpush1.bf16.msra.mxu0 %v895
        %1062 = vmatprep.subr.bf16.mxu0 %v892
        %1063 = vmatpush1.bf16.msra.mxu0 %v891
        %1064 = vmatprep.subr.bf16.mxu0 %v888
        %1065 = vmatpush1.bf16.msra.mxu0 %v887
        %1066 = vmatprep.subr.bf16.mxu0 %v884
        %1067 = vmatpush1.bf16.msra.mxu0 %v883
        %1068 = vmatprep.subr.bf16.mxu0 %v944
        %1069 = vmatpush2.bf16.msra.mxu0 %v943
        %1070 = vmatprep.subr.bf16.mxu0 %v940
        %1071 = vmatpush2.bf16.msra.mxu0 %v939
        %1072 = vmatprep.subr.bf16.mxu0 %v936
        %1073 = vmatpush2.bf16.msra.mxu0 %v935
        %1074 = vmatprep.subr.bf16.mxu0 %v932
        %1075 = vmatpush2.bf16.msra.mxu0 %v931
        %1076 = vmatprep.subr.bf16.mxu0 %v928
        %1077 = vmatpush2.bf16.msra.mxu0 %v927
        %1078 = vmatprep.subr.bf16.mxu0 %v924
        %1079 = vmatpush2.bf16.msra.mxu0 %v923
        %1080 = vmatprep.subr.bf16.mxu0 %v920
        %1081 = vmatpush2.bf16.msra.mxu0 %v919
        %1082 = vmatprep.subr.bf16.mxu0 %v916
        %1083 = vmatpush2.bf16.msra.mxu0 %v915
        %1084 = vmatprep.mubr.bf16.mxu0 %v602
        %1085 = vmatmul.mubr.bf16.gmra.mxu0 %v601
        %v1086 = vpop.f32.mrf.mxu0
        %v1087 = vadd.f32 %v680, %v1086
        %v1088 = vpop.f32.mrf.mxu0
        %v1089 = vadd.f32 %v684, %v1088
        %v1090 = vpop.f32.mrf.mxu0
        %v1091 = vadd.f32 %v680, %v1090
        %v1092 = vpop.f32.mrf.mxu0
        %v1093 = vadd.f32 %v684, %v1092
        %1094 = vdwg.mxu0
        %1095 = vst [vmem:[#allocation2] sm:$0xff] %v1044
        %1096 = vst [vmem:[#allocation2 + $0x8] sm:$0xff] %v1046
        %1097 = vst [vmem:[#allocation2 + $0x10] sm:$0xff] %v1087
        %1098 = vst [vmem:[#allocation2 + $0x18] sm:$0xff] %v1089
        %1099 = vst [vmem:[#allocation2 + $0x20] sm:$0xff] %v1048
        %1100 = vst [vmem:[#allocation2 + $0x28] sm:$0xff] %v1050
        %1101 = vst [vmem:[#allocation2 + $0x30] sm:$0xff] %v1091
        %1102 = vst [vmem:[#allocation2 + $0x38] sm:$0xff] %v1093
        %vm1103 = vcmask 122880
        %1104 = vst.msk [vmem:[#allocation3] sm:$0x1] %vm1103, -1e+30
        %1105 = vst.msk [vmem:[#allocation4] sm:$0x1] %vm1103, 0.0
        %1106 = vst.msk [vmem:[#allocation5] sm:$0x1] %vm1103, 0.0
        %1107 = vst [vmem:[#allocation6] sm:$0xff] 0.0
        %1108 = vst [vmem:[#allocation6 + $0x8] sm:$0xff] 0.0
        %1109 = vst [vmem:[#allocation6 + $0x10] sm:$0xff] 0.0
        %1110 = vst [vmem:[#allocation6 + $0x18] sm:$0xff] 0.0
      $region84: #{lex3d_forward.5} parent=79 // pred_fallthru
        _
      %v1111 = vlaneseq
      %v1112 = vand.u32 %v1111, 127
      %v1113 = vld [vmem:[%s560] sm:$0xff]
      %v1114 = vld [vmem:[%s560 + $0x8] sm:$0xff]
      %1115 = vset.pattern.permute.xlu0 0
      %1116 = vperm.xlu0 %1115, %v1113
      %v1117 = vpop.permute.xlu0 %1116
      %1118 = vset.pattern.permute.xlu0 0
      %1119 = vperm.xlu0 %1118, %v1114
      %v1120 = vpop.permute.xlu0 %1119
      %vm1121 = vcmp.eq.s32.totalorder %v1112, %v1117
      %vm1122 = vcmp.eq.s32.totalorder %v1112, %v1120
      %v1123 = vsel %vm1121, 1, 0
      %v1124 = vsel %vm1122, 1, 0
      %v1125 = vcvt.s32.f32 %v1123
      %v1126 = vcvt.s32.f32 %v1124
      %v1127 = vpack.c.bf16 %v1126, %v1125
      %v1128 = vld [vmem:[%s566] sm:$0xff]
      %v1129 = vld [vmem:[%s566 + $0x8] sm:$0xff]
      %1130 = vset.pattern.permute.xlu0 0
      %1131 = vperm.xlu0 %1130, %v1128
      %v1132 = vpop.permute.xlu0 %1131
      %1133 = vset.pattern.permute.xlu0 0
      %1134 = vperm.xlu0 %1133, %v1129
      %v1135 = vpop.permute.xlu0 %1134
      %vm1136 = vcmp.eq.s32.totalorder %v1112, %v1132
      %vm1137 = vcmp.eq.s32.totalorder %v1112, %v1135
      %v1138 = vsel %vm1136, 1, 0
      %v1139 = vsel %vm1137, 1, 0
      %v1140 = vcvt.s32.f32 %v1138
      %v1141 = vcvt.s32.f32 %v1139
      %v1142 = vpack.c.bf16 %v1141, %v1140
      %v1143 = vld [vmem:[%s572] sm:$0xff]
      %v1144 = vld [vmem:[%s572 + $0x8] sm:$0xff]
      %1145 = vset.pattern.permute.xlu0 0
      %1146 = vperm.xlu0 %1145, %v1143
      %v1147 = vpop.permute.xlu0 %1146
      %1148 = vset.pattern.permute.xlu0 0
      %1149 = vperm.xlu0 %1148, %v1144
      %v1150 = vpop.permute.xlu0 %1149
      %vm1151 = vcmp.eq.s32.totalorder %v1112, %v1147
      %vm1152 = vcmp.eq.s32.totalorder %v1112, %v1150
      %v1153 = vsel %vm1151, 1, 0
      %v1154 = vsel %vm1152, 1, 0
      %v1155 = vcvt.s32.f32 %v1153
      %v1156 = vcvt.s32.f32 %v1154
      %v1157 = vpack.c.bf16 %v1156, %v1155
      %v1158 = vld [vmem:[%s578] sm:$0xff]
      %v1159 = vld [vmem:[%s578 + $0x8] sm:$0xff]
      %1160 = vset.pattern.permute.xlu0 0
      %1161 = vperm.xlu0 %1160, %v1158
      %v1162 = vpop.permute.xlu0 %1161
      %1163 = vset.pattern.permute.xlu0 0
      %1164 = vperm.xlu0 %1163, %v1159
      %v1165 = vpop.permute.xlu0 %1164
      %vm1166 = vcmp.eq.s32.totalorder %v1112, %v1162
      %vm1167 = vcmp.eq.s32.totalorder %v1112, %v1165
      %v1168 = vsel %vm1166, 1, 0
      %v1169 = vsel %vm1167, 1, 0
      %v1170 = vcvt.s32.f32 %v1168
      %v1171 = vcvt.s32.f32 %v1169
      %v1172 = vld [vmem:[#allocation2] sm:$0xff]
      %v1173 = vld [vmem:[#allocation2 + $0x8] sm:$0xff]
      %v1174 = vld [vmem:[#allocation2 + $0x10] sm:$0xff]
      %v1175 = vld [vmem:[#allocation2 + $0x18] sm:$0xff]
      %v1176 = vld [vmem:[#allocation2 + $0x20] sm:$0xff]
      %v1177 = vld [vmem:[#allocation2 + $0x28] sm:$0xff]
      %v1178 = vld [vmem:[#allocation2 + $0x30] sm:$0xff]
      %v1179 = vld [vmem:[#allocation2 + $0x38] sm:$0xff]
      %v1180 = vpack.c.bf16 %v1176, %v1172
      %v1181 = vpack.c.bf16 %v1177, %v1173
      %v1182 = vpack.c.bf16 %v1178, %v1174
      %v1183 = vpack.c.bf16 %v1179, %v1175
      %vm1184 = vcmask 130048
      %v1186 = vsel %vm1184, %v1142, 0
      %1188 = vmatprep.subr.bf16.mxu0 0
      %1189 = vmatpush1.bf16.msra.mxu0 0
      %1190 = vmatprep.subr.bf16.mxu0 0
      %1191 = vmatpush1.bf16.msra.mxu0 0
      %1192 = vmatprep.subr.bf16.mxu0 0
      %1193 = vmatpush1.bf16.msra.mxu0 0
      %1194 = vmatprep.subr.bf16.mxu0 0
      %1195 = vmatpush1.bf16.msra.mxu0 0
      %1196 = vmatprep.subr.bf16.mxu0 0
      %1197 = vmatpush1.bf16.msra.mxu0 0
      %1198 = vmatprep.subr.bf16.mxu0 0
      %1199 = vmatpush1.bf16.msra.mxu0 0
      %1200 = vmatprep.subr.bf16.mxu0 0
      %1201 = vmatpush1.bf16.msra.mxu0 0
      %1202 = vmatprep.subr.bf16.mxu0 0
      %1203 = vmatpush1.bf16.msra.mxu0 %v1181
      %1204 = vmatprep.subr.bf16.mxu0 0
      %1205 = vmatpush2.bf16.msra.mxu0 0
      %1206 = vmatprep.subr.bf16.mxu0 0
      %1207 = vmatpush2.bf16.msra.mxu0 0
      %1208 = vmatprep.subr.bf16.mxu0 0
      %1209 = vmatpush2.bf16.msra.mxu0 0
      %1210 = vmatprep.subr.bf16.mxu0 0
      %1211 = vmatpush2.bf16.msra.mxu0 0
      %1212 = vmatprep.subr.bf16.mxu0 0
      %1213 = vmatpush2.bf16.msra.mxu0 0
      %1214 = vmatprep.subr.bf16.mxu0 0
      %1215 = vmatpush2.bf16.msra.mxu0 0
      %1216 = vmatprep.subr.bf16.mxu0 0
      %1217 = vmatpush2.bf16.msra.mxu0 0
      %1218 = vmatprep.subr.bf16.mxu0 0
      %1219 = vmatpush2.bf16.msra.mxu0 0
      %1220 = vmatprep.mubr.bf16.mxu0 0
      %1221 = vmatmul.mubr.bf16.gmra.mxu0 %v1186
      %v1222 = vpop.f32.mrf.mxu0
      %v1223 = vadd.f32 0.0, %v1222
      %v1224 = vpop.f32.mrf.mxu0
      %v1225 = vpop.f32.mrf.mxu0
      %v1226 = vadd.f32 0.0, %v1225
      %v1227 = vpop.f32.mrf.mxu0
      %1228 = vdwg.mxu0
      %v1230 = vsel %vm1184, %v1157, 0
      %1232 = vmatprep.subr.bf16.mxu0 0
      %1233 = vmatpush1.bf16.msra.mxu0 0
      %1234 = vmatprep.subr.bf16.mxu0 0
      %1235 = vmatpush1.bf16.msra.mxu0 0
      %1236 = vmatprep.subr.bf16.mxu0 0
      %1237 = vmatpush1.bf16.msra.mxu0 0
      %1238 = vmatprep.subr.bf16.mxu0 0
      %1239 = vmatpush1.bf16.msra.mxu0 0
      %1240 = vmatprep.subr.bf16.mxu0 0
      %1241 = vmatpush1.bf16.msra.mxu0 0
      %1242 = vmatprep.subr.bf16.mxu0 0
      %1243 = vmatpush1.bf16.msra.mxu0 0
      %1244 = vmatprep.subr.bf16.mxu0 0
      %1245 = vmatpush1.bf16.msra.mxu0 0
      %1246 = vmatprep.subr.bf16.mxu0 0
      %1247 = vmatpush1.bf16.msra.mxu0 %v1182
      %1248 = vmatprep.subr.bf16.mxu0 0
      %1249 = vmatpush2.bf16.msra.mxu0 0
      %1250 = vmatprep.subr.bf16.mxu0 0
      %1251 = vmatpush2.bf16.msra.mxu0 0
      %1252 = vmatprep.subr.bf16.mxu0 0
      %1253 = vmatpush2.bf16.msra.mxu0 0
      %1254 = vmatprep.subr.bf16.mxu0 0
      %1255 = vmatpush2.bf16.msra.mxu0 0
      %1256 = vmatprep.subr.bf16.mxu0 0
      %1257 = vmatpush2.bf16.msra.mxu0 0
      %1258 = vmatprep.subr.bf16.mxu0 0
      %1259 = vmatpush2.bf16.msra.mxu0 0
      %1260 = vmatprep.subr.bf16.mxu0 0
      %1261 = vmatpush2.bf16.msra.mxu0 0
      %1262 = vmatprep.subr.bf16.mxu0 0
      %1263 = vmatpush2.bf16.msra.mxu0 0
      %1264 = vmatprep.mubr.bf16.mxu0 0
      %1265 = vmatmul.mubr.bf16.gmra.mxu0 %v1230
      %v1266 = vpop.f32.mrf.mxu0
      %v1267 = vadd.f32 0.0, %v1266
      %v1268 = vpop.f32.mrf.mxu0
      %v1269 = vpop.f32.mrf.mxu0
      %v1270 = vadd.f32 0.0, %v1269
      %v1271 = vpop.f32.mrf.mxu0
      %1272 = vdwg.mxu0
      %v1273 = vpack.c.bf16 %v1171, %v1170
      %v1275 = vsel %vm1184, %v1273, 0
      %1277 = vmatprep.subr.bf16.mxu0 0
      %1278 = vmatpush1.bf16.msra.mxu0 0
      %1279 = vmatprep.subr.bf16.mxu0 0
      %1280 = vmatpush1.bf16.msra.mxu0 0
      %1281 = vmatprep.subr.bf16.mxu0 0
      %1282 = vmatpush1.bf16.msra.mxu0 0
      %1283 = vmatprep.subr.bf16.mxu0 0
      %1284 = vmatpush1.bf16.msra.mxu0 0
      %1285 = vmatprep.subr.bf16.mxu0 0
      %1286 = vmatpush1.bf16.msra.mxu0 0
      %1287 = vmatprep.subr.bf16.mxu0 0
      %1288 = vmatpush1.bf16.msra.mxu0 0
      %1289 = vmatprep.subr.bf16.mxu0 0
      %1290 = vmatpush1.bf16.msra.mxu0 0
      %1291 = vmatprep.subr.bf16.mxu0 0
      %1292 = vmatpush1.bf16.msra.mxu0 %v1183
      %1293 = vmatprep.subr.bf16.mxu0 0
      %1294 = vmatpush2.bf16.msra.mxu0 0
      %1295 = vmatprep.subr.bf16.mxu0 0
      %1296 = vmatpush2.bf16.msra.mxu0 0
      %1297 = vmatprep.subr.bf16.mxu0 0
      %1298 = vmatpush2.bf16.msra.mxu0 0
      %1299 = vmatprep.subr.bf16.mxu0 0
      %1300 = vmatpush2.bf16.msra.mxu0 0
      %1301 = vmatprep.subr.bf16.mxu0 0
      %1302 = vmatpush2.bf16.msra.mxu0 0
      %1303 = vmatprep.subr.bf16.mxu0 0
      %1304 = vmatpush2.bf16.msra.mxu0 0
      %1305 = vmatprep.subr.bf16.mxu0 0
      %1306 = vmatpush2.bf16.msra.mxu0 0
      %1307 = vmatprep.subr.bf16.mxu0 0
      %1308 = vmatpush2.bf16.msra.mxu0 0
      %1309 = vmatprep.mubr.bf16.mxu0 0
      %1310 = vmatmul.mubr.bf16.gmra.mxu0 %v1275
      %v1311 = vpop.f32.mrf.mxu0
      %v1312 = vadd.f32 0.0, %v1311
      %v1313 = vpop.f32.mrf.mxu0
      %v1314 = vpop.f32.mrf.mxu0
      %v1315 = vadd.f32 0.0, %v1314
      %v1316 = vpop.f32.mrf.mxu0
      %1317 = vdwg.mxu0
      %v1318 = vld [vmem:[%s584] sm:$0xff]
      %v1319 = vld [vmem:[%s584 + $0x8] sm:$0xff]
      %v1320 = vpack.c.bf16 %v1319, %v1318
      %v1321 = vld [vmem:[%s3] sm:$0xf]
      %v1322 = vld [vmem:[%s3 + $0x4] sm:$0xf]
      %v1323 = vld [vmem:[%s3 + $0x8] sm:$0xf]
      %v1324 = vld [vmem:[%s3 + $0xc] sm:$0xf]
      %v1325 = vld [vmem:[%s4] sm:$0x1]
      %v1327 = vlaneseq
      %v1328 = vshrl.u32 %v1327, 7
      %v1329 = vsub.s32 0, %v1328
      %v1330 = vrot.slane %v1325, %v1329
      %v1336 = vunpack.c.l.b16 %v1321
      %v1337 = vunpack.c.l.b16 %v1322
      %v1338 = vunpack.c.l.b16 %v1323
      %v1339 = vunpack.c.l.b16 %v1324
      %v1340 = vpack.c.b16 %v1337, %v1336
      %v1341 = vpack.c.b16 %v1339, %v1338
      %vm1344 = vcmask 261120
      %v1346 = vsel %vm1344, %v1320, 0
      %1348 = vmatprep.subr.bf16.mxu0 0
      %1349 = vmatpush1.bf16.msra.mxu0 0
      %1350 = vmatprep.subr.bf16.mxu0 0
      %1351 = vmatpush1.bf16.msra.mxu0 0
      %1352 = vmatprep.subr.bf16.mxu0 0
      %1353 = vmatpush1.bf16.msra.mxu0 0
      %1354 = vmatprep.subr.bf16.mxu0 0
      %1355 = vmatpush1.bf16.msra.mxu0 0
      %1356 = vmatprep.subr.bf16.mxu0 0
      %1357 = vmatpush1.bf16.msra.mxu0 0
      %1358 = vmatprep.subr.bf16.mxu0 0
      %1359 = vmatpush1.bf16.msra.mxu0 0
      %1360 = vmatprep.subr.bf16.mxu0 0
      %1361 = vmatpush1.bf16.msra.mxu0 %v1341
      %1362 = vmatprep.subr.bf16.mxu0 0
      %1363 = vmatpush1.bf16.msra.mxu0 %v1340
      %1364 = vmatprep.subr.bf16.mxu0 0
      %1365 = vmatpush2.bf16.msra.mxu0 0
      %1366 = vmatprep.subr.bf16.mxu0 0
      %1367 = vmatpush2.bf16.msra.mxu0 0
      %1368 = vmatprep.subr.bf16.mxu0 0
      %1369 = vmatpush2.bf16.msra.mxu0 0
      %1370 = vmatprep.subr.bf16.mxu0 0
      %1371 = vmatpush2.bf16.msra.mxu0 0
      %1372 = vmatprep.subr.bf16.mxu0 0
      %1373 = vmatpush2.bf16.msra.mxu0 0
      %1374 = vmatprep.subr.bf16.mxu0 0
      %1375 = vmatpush2.bf16.msra.mxu0 0
      %1376 = vmatprep.subr.bf16.mxu0 0
      %1377 = vmatpush2.bf16.msra.mxu0 0
      %1378 = vmatprep.subr.bf16.mxu0 0
      %1379 = vmatpush2.bf16.msra.mxu0 0
      %1380 = vmatprep.mubr.bf16.mxu0 0
      %1381 = vmatmul.mubr.bf16.gmra.mxu0 %v1346
      %v1382 = vpop.f32.mrf.mxu0
      %v1383 = vadd.f32 %v1330, %v1382
      %v1384 = vpop.f32.mrf.mxu0
      %v1385 = vpop.f32.mrf.mxu0
      %v1386 = vadd.f32 %v1330, %v1385
      %v1387 = vpop.f32.mrf.mxu0
      %1388 = vdwg.mxu0
      %v1390 = vsel %vm1184, %v1127, 0
      %1392 = vmatprep.subr.bf16.mxu0 0
      %1393 = vmatpush1.bf16.msra.mxu0 0
      %1394 = vmatprep.subr.bf16.mxu0 0
      %1395 = vmatpush1.bf16.msra.mxu0 0
      %1396 = vmatprep.subr.bf16.mxu0 0
      %1397 = vmatpush1.bf16.msra.mxu0 0
      %1398 = vmatprep.subr.bf16.mxu0 0
      %1399 = vmatpush1.bf16.msra.mxu0 0
      %1400 = vmatprep.subr.bf16.mxu0 0
      %1401 = vmatpush1.bf16.msra.mxu0 0
      %1402 = vmatprep.subr.bf16.mxu0 0
      %1403 = vmatpush1.bf16.msra.mxu0 0
      %1404 = vmatprep.subr.bf16.mxu0 0
      %1405 = vmatpush1.bf16.msra.mxu0 0
      %1406 = vmatprep.subr.bf16.mxu0 0
      %1407 = vmatpush1.bf16.msra.mxu0 %v1180
      %1408 = vmatprep.subr.bf16.mxu0 0
      %1409 = vmatpush2.bf16.msra.mxu0 0
      %1410 = vmatprep.subr.bf16.mxu0 0
      %1411 = vmatpush2.bf16.msra.mxu0 0
      %1412 = vmatprep.subr.bf16.mxu0 0
      %1413 = vmatpush2.bf16.msra.mxu0 0
      %1414 = vmatprep.subr.bf16.mxu0 0
      %1415 = vmatpush2.bf16.msra.mxu0 0
      %1416 = vmatprep.subr.bf16.mxu0 0
      %1417 = vmatpush2.bf16.msra.mxu0 0
      %1418 = vmatprep.subr.bf16.mxu0 0
      %1419 = vmatpush2.bf16.msra.mxu0 0
      %1420 = vmatprep.subr.bf16.mxu0 0
      %1421 = vmatpush2.bf16.msra.mxu0 0
      %1422 = vmatprep.subr.bf16.mxu0 0
      %1423 = vmatpush2.bf16.msra.mxu0 0
      %1424 = vmatprep.mubr.bf16.mxu0 0
      %1425 = vmatmul.mubr.bf16.gmra.mxu0 %v1390
      %v1426 = vpop.f32.mrf.mxu0
      %v1427 = vadd.f32 %v1223, %v1426
      %v1428 = vpop.f32.mrf.mxu0
      %v1429 = vpop.f32.mrf.mxu0
      %v1430 = vadd.f32 %v1226, %v1429
      %v1431 = vpop.f32.mrf.mxu0
      %1432 = vdwg.mxu0
      %v1433 = vadd.f32 %v1427, %v1267
      %v1434 = vadd.f32 %v1430, %v1270
      %v1435 = vadd.f32 %v1433, %v1383
      %v1436 = vadd.f32 %v1434, %v1386
      %vm1437 = vcmp.gt.f32.partialorder %v1435, 0.0
      %vm1438 = vcmp.gt.f32.partialorder %v1436, 0.0
      %v1439 = vmin.f32 %v1435, 0.0
      %v1440 = vmin.f32 %v1436, 0.0
      %v1441 = vmul.f32 %v1439, 1.442695
      %v1442 = vpow.pop %v1441
      %v1443 = vmul.f32 %v1440, 1.442695
      %v1444 = vpow.pop %v1443
      %v1445 = vsub.f32 %v1442, 1.0
      %v1446 = vsub.f32 %v1444, 1.0
      %v1447 = vsel %vm1437, %v1435, %v1445
      %v1448 = vsel %vm1438, %v1436, %v1446
      %v1449 = vpack.c.bf16 %v1448, %v1447
      %v1450 = vld [vmem:[%s5] sm:$0xf]
      %v1451 = vld [vmem:[%s5 + $0x4] sm:$0xf]
      %v1452 = vld [vmem:[%s5 + $0x8] sm:$0xf]
      %v1453 = vld [vmem:[%s5 + $0xc] sm:$0xf]
      %v1454 = vld [vmem:[%s5 + $0x10] sm:$0xf]
      %v1455 = vld [vmem:[%s5 + $0x14] sm:$0xf]
      %v1456 = vld [vmem:[%s5 + $0x18] sm:$0xf]
      %v1457 = vld [vmem:[%s5 + $0x1c] sm:$0xf]
      %v1458 = vld [vmem:[%s5 + $0x20] sm:$0xf]
      %v1459 = vld [vmem:[%s5 + $0x24] sm:$0xf]
      %v1460 = vld [vmem:[%s5 + $0x28] sm:$0xf]
      %v1461 = vld [vmem:[%s5 + $0x2c] sm:$0xf]
      %v1462 = vld [vmem:[%s5 + $0x30] sm:$0xf]
      %v1463 = vld [vmem:[%s5 + $0x34] sm:$0xf]
      %v1464 = vld [vmem:[%s5 + $0x38] sm:$0xf]
      %v1465 = vld [vmem:[%s5 + $0x3c] sm:$0xf]
      %v1482 = vunpack.c.l.b16 %v1450
      %v1483 = vunpack.c.l.b16 %v1451
      %v1484 = vunpack.c.l.b16 %v1452
      %v1485 = vunpack.c.l.b16 %v1453
      %v1486 = vunpack.c.l.b16 %v1454
      %v1487 = vunpack.c.l.b16 %v1455
      %v1488 = vunpack.c.l.b16 %v1456
      %v1489 = vunpack.c.l.b16 %v1457
      %v1490 = vunpack.c.l.b16 %v1458
      %v1491 = vunpack.c.l.b16 %v1459
      %v1492 = vunpack.c.l.b16 %v1460
      %v1493 = vunpack.c.l.b16 %v1461
      %v1494 = vunpack.c.l.b16 %v1462
      %v1495 = vunpack.c.l.b16 %v1463
      %v1496 = vunpack.c.l.b16 %v1464
      %v1497 = vunpack.c.l.b16 %v1465
      %v1498 = vpack.c.b16 %v1483, %v1482
      %v1499 = vpack.c.b16 %v1485, %v1484
      %v1500 = vpack.c.b16 %v1487, %v1486
      %v1501 = vpack.c.b16 %v1489, %v1488
      %v1502 = vpack.c.b16 %v1491, %v1490
      %v1503 = vpack.c.b16 %v1493, %v1492
      %v1504 = vpack.c.b16 %v1495, %v1494
      %v1505 = vpack.c.b16 %v1497, %v1496
      %1514 = vmatprep.subr.bf16.mxu0 0
      %1515 = vmatpush1.bf16.msra.mxu0 %v1505
      %1516 = vmatprep.subr.bf16.mxu0 0
      %1517 = vmatpush1.bf16.msra.mxu0 %v1504
      %1518 = vmatprep.subr.bf16.mxu0 0
      %1519 = vmatpush1.bf16.msra.mxu0 %v1503
      %1520 = vmatprep.subr.bf16.mxu0 0
      %1521 = vmatpush1.bf16.msra.mxu0 %v1502
      %1522 = vmatprep.subr.bf16.mxu0 0
      %1523 = vmatpush1.bf16.msra.mxu0 %v1501
      %1524 = vmatprep.subr.bf16.mxu0 0
      %1525 = vmatpush1.bf16.msra.mxu0 %v1500
      %1526 = vmatprep.subr.bf16.mxu0 0
      %1527 = vmatpush1.bf16.msra.mxu0 %v1499
      %1528 = vmatprep.subr.bf16.mxu0 0
      %1529 = vmatpush1.bf16.msra.mxu0 %v1498
      %1530 = vmatprep.subr.bf16.mxu0 0
      %1531 = vmatpush2.bf16.msra.mxu0 0
      %1532 = vmatprep.subr.bf16.mxu0 0
      %1533 = vmatpush2.bf16.msra.mxu0 0
      %1534 = vmatprep.subr.bf16.mxu0 0
      %1535 = vmatpush2.bf16.msra.mxu0 0
      %1536 = vmatprep.subr.bf16.mxu0 0
      %1537 = vmatpush2.bf16.msra.mxu0 0
      %1538 = vmatprep.subr.bf16.mxu0 0
      %1539 = vmatpush2.bf16.msra.mxu0 0
      %1540 = vmatprep.subr.bf16.mxu0 0
      %1541 = vmatpush2.bf16.msra.mxu0 0
      %1542 = vmatprep.subr.bf16.mxu0 0
      %1543 = vmatpush2.bf16.msra.mxu0 0
      %1544 = vmatprep.subr.bf16.mxu0 0
      %1545 = vmatpush2.bf16.msra.mxu0 0
      %1546 = vmatprep.mubr.bf16.mxu0 0
      %1547 = vmatmul.mubr.bf16.gmra.mxu0 %v1449
      %v1548 = vpop.f32.mrf.mxu0
      %v1549 = vadd.f32 %v1312, %v1548
      %v1550 = vpop.f32.mrf.mxu0
      %v1551 = vpop.f32.mrf.mxu0
      %v1552 = vadd.f32 %v1315, %v1551
      %v1553 = vpop.f32.mrf.mxu0
      %1554 = vdwg.mxu0
      %vm1555 = vcmp.ge.f32.partialorder %v1549, 0.0
      %vm1556 = vcmp.ge.f32.partialorder %v1552, 0.0
      %v1557 = vmul.f32 %v1549, 0.01
      %v1558 = vmul.f32 %v1552, 0.01
      %v1559 = vsel %vm1555, %v1549, %v1557
      %v1560 = vsel %vm1556, %v1552, %v1558
      %v1561 = vld [vmem:[%s6] sm:$0x1]
      %v1563 = vlaneseq
      %v1564 = vshrl.u32 %v1563, 7
      %v1565 = vsub.s32 0, %v1564
      %v1566 = vrot.slane %v1561, %v1565
      %v1568 = vmul.f32 %v1559, %v1566
      %v1569 = vmul.f32 %v1560, %v1566
      %1570 = vadd.xlane.f32.xlu0 %v1568
      %v1571 = vpop.xlane.xlu0 %1570
      %1572 = vadd.xlane.f32.xlu0 %v1569
      %v1573 = vpop.xlane.xlu0 %1572
      %vm1574 = vcmp.ge.f32.partialorder %v1571, 0.0
      %vm1575 = vcmp.ge.f32.partialorder %v1573, 0.0
      %v1576 = vmul.f32 %v1571, 0.01
      %v1577 = vmul.f32 %v1573, 0.01
      %v1578 = vsel %vm1574, %v1571, %v1576
      %v1579 = vsel %vm1575, %v1573, %v1577
      %v1580 = vsel %vm1166, %v1578, -1e+30
      %v1581 = vsel %vm1167, %v1579, -1e+30
      %v1582 = vsel %vm1184, %v1580, -inf
      %v1583 = vsel %vm1184, %v1581, -inf
      %v1584 = vmax.f32 %v1582, %v1583
      %v1585 = vrot.slane %v1584, 4
      %v1586 = vmax.f32 %v1584, %v1585
      %v1587 = vrot.slane %v1586, 2
      %v1588 = vmax.f32 %v1586, %v1587
      %v1589 = vrot.slane %v1588, 1
      %v1590 = vmax.f32 %v1588, %v1589
      %v1591 = vld [vmem:[#allocation3] sm:$0x1]
      %v1592 = vmax.f32 %v1591, %v1590
      %v1593 = vsub.f32 %v1591, %v1592
      %v1594 = vmul.f32 %v1593, 1.442695
      %v1595 = vpow.pop %v1594
      %v1597 = vlaneseq
      %v1598 = vshrl.u32 %v1597, 7
      %v1599 = vsub.s32 0, %v1598
      %v1600 = vrot.slane %v1592, %v1599
      %v1602 = vmul.f32 %v1170, %v1600
      %v1603 = vmul.f32 %v1171, %v1600
      %v1604 = vsel %vm1184, %v1602, 0.0
      %1605 = vadd.xlane.f32.xlu0 %v1604
      %v1606 = vpop.xlane.xlu0 %1605
      %v1607 = vsel %vm1184, %v1603, 0.0
      %1608 = vadd.xlane.f32.xlu0 %v1607
      %v1609 = vpop.xlane.xlu0 %1608
      %v1610 = vsub.f32 %v1578, %v1606
      %v1611 = vsub.f32 %v1579, %v1609
      %v1612 = vmul.f32 %v1610, 1.442695
      %v1613 = vpow.pop %v1612
      %v1614 = vmul.f32 %v1611, 1.442695
      %v1615 = vpow.pop %v1614
      %v1616 = vld [vmem:[%s590] sm:$0xff]
      %v1617 = vld [vmem:[%s590 + $0x8] sm:$0xff]
      %v1618 = vmul.f32 %v1613, %v1616
      %v1619 = vmul.f32 %v1615, %v1617
      %v1620 = vld [vmem:[#allocation4] sm:$0x1]
      %v1621 = vmul.f32 %v1620, %v1595
      %1622 = vxpose.xlu0.b32.start [1/16] %v1613, 128
      %1623 = vxpose.xlu0.b32.cont [2/16] %v1615, 128
      %1624 = vxpose.xlu0.b32.cont [3/16] 0.0, 128
      %1625 = vxpose.xlu0.b32.cont [4/16] 0.0, 128
      %1626 = vxpose.xlu0.b32.cont [5/16] 0.0, 128
      %1627 = vxpose.xlu0.b32.cont [6/16] 0.0, 128
      %1628 = vxpose.xlu0.b32.cont [7/16] 0.0, 128
      %1629 = vxpose.xlu0.b32.cont [8/16] 0.0, 128
      %1630 = vxpose.xlu0.b32.cont [9/16] 0.0, 128
      %1631 = vxpose.xlu0.b32.cont [10/16] 0.0, 128
      %1632 = vxpose.xlu0.b32.cont [11/16] 0.0, 128
      %1633 = vxpose.xlu0.b32.cont [12/16] 0.0, 128
      %1634 = vxpose.xlu0.b32.cont [13/16] 0.0, 128
      %1635 = vxpose.xlu0.b32.cont [14/16] 0.0, 128
      %1636 = vxpose.xlu0.b32.cont [15/16] 0.0, 128
      %1637 = vxpose.xlu0.b32.end [16/16] 0.0, 128
      %v1638 = vpop.trf.xlu0
      %v1639 = vpop.trf.xlu0
      %v1640 = vpop.trf.xlu0
      %v1641 = vpop.trf.xlu0
      %v1642 = vpop.trf.xlu0
      %v1643 = vpop.trf.xlu0
      %v1644 = vpop.trf.xlu0
      %v1645 = vpop.trf.xlu0
      %v1646 = vpop.trf.xlu0
      %v1647 = vpop.trf.xlu0
      %v1648 = vpop.trf.xlu0
      %v1649 = vpop.trf.xlu0
      %v1650 = vpop.trf.xlu0
      %v1651 = vpop.trf.xlu0
      %v1652 = vpop.trf.xlu0
      %v1653 = vpop.trf.xlu0
      %v1655 = vsel %vm1184, %v1638, 0
      %1657 = vmatprep.subr.mxu0 0.0
      %1658 = vmatpush1.msra.mxu0 0.0
      %1659 = vmatprep.subr.mxu0 0.0
      %1660 = vmatpush1.msra.mxu0 0.0
      %1661 = vmatprep.subr.mxu0 0.0
      %1662 = vmatpush1.msra.mxu0 0.0
      %1663 = vmatprep.subr.mxu0 0.0
      %1664 = vmatpush1.msra.mxu0 0.0
      %1665 = vmatprep.subr.mxu0 0.0
      %1666 = vmatpush1.msra.mxu0 0.0
      %1667 = vmatprep.subr.mxu0 0.0
      %1668 = vmatpush1.msra.mxu0 0.0
      %1669 = vmatprep.subr.mxu0 0.0
      %1670 = vmatpush1.msra.mxu0 0.0
      %1671 = vmatprep.subr.mxu0 0.0
      %1672 = vmatpush1.msra.mxu0 0.0
      %1673 = vmatprep.subr.mxu0 0.0
      %1674 = vmatpush1.msra.mxu0 0.0
      %1675 = vmatprep.subr.mxu0 0.0
      %1676 = vmatpush1.msra.mxu0 0.0
      %1677 = vmatprep.subr.mxu0 0.0
      %1678 = vmatpush1.msra.mxu0 0.0
      %1679 = vmatprep.subr.mxu0 0.0
      %1680 = vmatpush1.msra.mxu0 0.0
      %1681 = vmatprep.subr.mxu0 0.0
      %1682 = vmatpush1.msra.mxu0 0.0
      %1683 = vmatprep.subr.mxu0 0.0
      %1684 = vmatpush1.msra.mxu0 0.0
      %1685 = vmatprep.subr.mxu0 0.0
      %1686 = vmatpush1.msra.mxu0 %v1171
      %1687 = vmatprep.subr.mxu0 0.0
      %1688 = vmatpush1.msra.mxu0 %v1170
      %1689 = vmatprep.subr.mxu0 0.0
      %1690 = vmatpush2.msra.mxu0 0.0
      %1691 = vmatprep.subr.mxu0 0.0
      %1692 = vmatpush2.msra.mxu0 0.0
      %1693 = vmatprep.subr.mxu0 0.0
      %1694 = vmatpush2.msra.mxu0 0.0
      %1695 = vmatprep.subr.mxu0 0.0
      %1696 = vmatpush2.msra.mxu0 0.0
      %1697 = vmatprep.subr.mxu0 0.0
      %1698 = vmatpush2.msra.mxu0 0.0
      %1699 = vmatprep.subr.mxu0 0.0
      %1700 = vmatpush2.msra.mxu0 0.0
      %1701 = vmatprep.subr.mxu0 0.0
      %1702 = vmatpush2.msra.mxu0 0.0
      %1703 = vmatprep.subr.mxu0 0.0
      %1704 = vmatpush2.msra.mxu0 0.0
      %1705 = vmatprep.subr.mxu0 0.0
      %1706 = vmatpush2.msra.mxu0 0.0
      %1707 = vmatprep.subr.mxu0 0.0
      %1708 = vmatpush2.msra.mxu0 0.0
      %1709 = vmatprep.subr.mxu0 0.0
      %1710 = vmatpush2.msra.mxu0 0.0
      %1711 = vmatprep.subr.mxu0 0.0
      %1712 = vmatpush2.msra.mxu0 0.0
      %1713 = vmatprep.subr.mxu0 0.0
      %1714 = vmatpush2.msra.mxu0 0.0
      %1715 = vmatprep.subr.mxu0 0.0
      %1716 = vmatpush2.msra.mxu0 0.0
      %1717 = vmatprep.subr.mxu0 0.0
      %1718 = vmatpush2.msra.mxu0 0.0
      %1719 = vmatprep.subr.mxu0 0.0
      %1720 = vmatpush2.msra.mxu0 0.0
      %1721 = vmatprep.mubr.f32.mxu0 0.0
      %1722 = vmatmul.mubr.f32.gmra.mxu0 %v1655
      %v1723 = vpop.f32.mrf.mxu0
      %v1724 = vadd.f32 0.0, %v1723
      %v1725 = vpop.f32.mrf.mxu0
      %1726 = vdwg.mxu0
      %v1727 = vadd.f32 %v1621, %v1724
      %vm1728 = vcmask 122880
      %1729 = vst.msk [vmem:[#allocation4] sm:$0x1] %vm1728, %v1727
      %v1730 = vld [vmem:[#allocation5] sm:$0x1]
      %v1731 = vmul.f32 %v1730, %v1595
      %1732 = vxpose.xlu0.b32.start [1/16] %v1618, 128
      %1733 = vxpose.xlu0.b32.cont [2/16] %v1619, 128
      %1734 = vxpose.xlu0.b32.cont [3/16] 0.0, 128
      %1735 = vxpose.xlu0.b32.cont [4/16] 0.0, 128
      %1736 = vxpose.xlu0.b32.cont [5/16] 0.0, 128
      %1737 = vxpose.xlu0.b32.cont [6/16] 0.0, 128
      %1738 = vxpose.xlu0.b32.cont [7/16] 0.0, 128
      %1739 = vxpose.xlu0.b32.cont [8/16] 0.0, 128
      %1740 = vxpose.xlu0.b32.cont [9/16] 0.0, 128
      %1741 = vxpose.xlu0.b32.cont [10/16] 0.0, 128
      %1742 = vxpose.xlu0.b32.cont [11/16] 0.0, 128
      %1743 = vxpose.xlu0.b32.cont [12/16] 0.0, 128
      %1744 = vxpose.xlu0.b32.cont [13/16] 0.0, 128
      %1745 = vxpose.xlu0.b32.cont [14/16] 0.0, 128
      %1746 = vxpose.xlu0.b32.cont [15/16] 0.0, 128
      %1747 = vxpose.xlu0.b32.end [16/16] 0.0, 128
      %v1748 = vpop.trf.xlu0
      %v1749 = vpop.trf.xlu0
      %v1750 = vpop.trf.xlu0
      %v1751 = vpop.trf.xlu0
      %v1752 = vpop.trf.xlu0
      %v1753 = vpop.trf.xlu0
      %v1754 = vpop.trf.xlu0
      %v1755 = vpop.trf.xlu0
      %v1756 = vpop.trf.xlu0
      %v1757 = vpop.trf.xlu0
      %v1758 = vpop.trf.xlu0
      %v1759 = vpop.trf.xlu0
      %v1760 = vpop.trf.xlu0
      %v1761 = vpop.trf.xlu0
      %v1762 = vpop.trf.xlu0
      %v1763 = vpop.trf.xlu0
      %v1765 = vsel %vm1184, %v1748, 0
      %1767 = vmatprep.subr.mxu0 0.0
      %1768 = vmatpush1.msra.mxu0 0.0
      %1769 = vmatprep.subr.mxu0 0.0
      %1770 = vmatpush1.msra.mxu0 0.0
      %1771 = vmatprep.subr.mxu0 0.0
      %1772 = vmatpush1.msra.mxu0 0.0
      %1773 = vmatprep.subr.mxu0 0.0
      %1774 = vmatpush1.msra.mxu0 0.0
      %1775 = vmatprep.subr.mxu0 0.0
      %1776 = vmatpush1.msra.mxu0 0.0
      %1777 = vmatprep.subr.mxu0 0.0
      %1778 = vmatpush1.msra.mxu0 0.0
      %1779 = vmatprep.subr.mxu0 0.0
      %1780 = vmatpush1.msra.mxu0 0.0
      %1781 = vmatprep.subr.mxu0 0.0
      %1782 = vmatpush1.msra.mxu0 0.0
      %1783 = vmatprep.subr.mxu0 0.0
      %1784 = vmatpush1.msra.mxu0 0.0
      %1785 = vmatprep.subr.mxu0 0.0
      %1786 = vmatpush1.msra.mxu0 0.0
      %1787 = vmatprep.subr.mxu0 0.0
      %1788 = vmatpush1.msra.mxu0 0.0
      %1789 = vmatprep.subr.mxu0 0.0
      %1790 = vmatpush1.msra.mxu0 0.0
      %1791 = vmatprep.subr.mxu0 0.0
      %1792 = vmatpush1.msra.mxu0 0.0
      %1793 = vmatprep.subr.mxu0 0.0
      %1794 = vmatpush1.msra.mxu0 0.0
      %1795 = vmatprep.subr.mxu0 0.0
      %1796 = vmatpush1.msra.mxu0 %v1171
      %1797 = vmatprep.subr.mxu0 0.0
      %1798 = vmatpush1.msra.mxu0 %v1170
      %1799 = vmatprep.subr.mxu0 0.0
      %1800 = vmatpush2.msra.mxu0 0.0
      %1801 = vmatprep.subr.mxu0 0.0
      %1802 = vmatpush2.msra.mxu0 0.0
      %1803 = vmatprep.subr.mxu0 0.0
      %1804 = vmatpush2.msra.mxu0 0.0
      %1805 = vmatprep.subr.mxu0 0.0
      %1806 = vmatpush2.msra.mxu0 0.0
      %1807 = vmatprep.subr.mxu0 0.0
      %1808 = vmatpush2.msra.mxu0 0.0
      %1809 = vmatprep.subr.mxu0 0.0
      %1810 = vmatpush2.msra.mxu0 0.0
      %1811 = vmatprep.subr.mxu0 0.0
      %1812 = vmatpush2.msra.mxu0 0.0
      %1813 = vmatprep.subr.mxu0 0.0
      %1814 = vmatpush2.msra.mxu0 0.0
      %1815 = vmatprep.subr.mxu0 0.0
      %1816 = vmatpush2.msra.mxu0 0.0
      %1817 = vmatprep.subr.mxu0 0.0
      %1818 = vmatpush2.msra.mxu0 0.0
      %1819 = vmatprep.subr.mxu0 0.0
      %1820 = vmatpush2.msra.mxu0 0.0
      %1821 = vmatprep.subr.mxu0 0.0
      %1822 = vmatpush2.msra.mxu0 0.0
      %1823 = vmatprep.subr.mxu0 0.0
      %1824 = vmatpush2.msra.mxu0 0.0
      %1825 = vmatprep.subr.mxu0 0.0
      %1826 = vmatpush2.msra.mxu0 0.0
      %1827 = vmatprep.subr.mxu0 0.0
      %1828 = vmatpush2.msra.mxu0 0.0
      %1829 = vmatprep.subr.mxu0 0.0
      %1830 = vmatpush2.msra.mxu0 0.0
      %1831 = vmatprep.mubr.f32.mxu0 0.0
      %1832 = vmatmul.mubr.f32.gmra.mxu0 %v1765
      %v1833 = vpop.f32.mrf.mxu0
      %v1834 = vadd.f32 0.0, %v1833
      %v1835 = vpop.f32.mrf.mxu0
      %1836 = vdwg.mxu0
      %v1837 = vadd.f32 %v1731, %v1834
      %1838 = vst.msk [vmem:[#allocation5] sm:$0x1] %vm1728, %v1837
      %v1839 = vlaneseq
      %v1840 = vshrl.u32 %v1839, 7
      %v1841 = vadd.s32 %v1840, 8
      %vm1842 = vcmp.eq.s32.totalorder %v1840, %v1112
      %vm1843 = vcmp.eq.s32.totalorder %v1841, %v1112
      %v1844 = vsel %vm1842, 1, 0
      %v1845 = vsel %vm1843, 1, 0
      %v1846 = vcvt.s32.f32 %v1844
      %v1847 = vcvt.s32.f32 %v1845
      %v1849 = vlaneseq
      %v1850 = vshrl.u32 %v1849, 7
      %v1851 = vsub.s32 0, %v1850
      %v1852 = vrot.slane %v1595, %v1851
      %v1854 = vmul.f32 %v1846, %v1852
      %v1855 = vmul.f32 %v1847, %v1852
      %v1856 = vsel %vm1184, %v1854, 0.0
      %1857 = vadd.xlane.f32.xlu0 %v1856
      %v1858 = vpop.xlane.xlu0 %1857
      %v1859 = vsel %vm1184, %v1855, 0.0
      %1860 = vadd.xlane.f32.xlu0 %v1859
      %v1861 = vpop.xlane.xlu0 %1860
      %v1862 = vld [vmem:[%s7] sm:$0xff]
      %v1863 = vld [vmem:[%s7 + $0x8] sm:$0xff]
      %v1864 = vld [vmem:[%s7 + $0x10] sm:$0xff]
      %v1865 = vld [vmem:[%s7 + $0x18] sm:$0xff]
      %v1866 = vld [vmem:[%s7 + $0x20] sm:$0xff]
      %v1867 = vld [vmem:[%s7 + $0x28] sm:$0xff]
      %v1868 = vld [vmem:[%s7 + $0x30] sm:$0xff]
      %v1869 = vld [vmem:[%s7 + $0x38] sm:$0xff]
      %v1870 = vld [vmem:[%s7 + $0x40] sm:$0xff]
      %v1871 = vld [vmem:[%s7 + $0x48] sm:$0xff]
      %v1872 = vld [vmem:[%s7 + $0x50] sm:$0xff]
      %v1873 = vld [vmem:[%s7 + $0x58] sm:$0xff]
      %v1874 = vld [vmem:[%s7 + $0x60] sm:$0xff]
      %v1875 = vld [vmem:[%s7 + $0x68] sm:$0xff]
      %v1876 = vld [vmem:[%s7 + $0x70] sm:$0xff]
      %v1877 = vld [vmem:[%s7 + $0x78] sm:$0xff]
      %v1894 = vunpack.c.l.b16 %v1862
      %v1895 = vunpack.c.h.b16 %v1862
      %v1896 = vunpack.c.l.b16 %v1863
      %v1897 = vunpack.c.h.b16 %v1863
      %v1898 = vunpack.c.l.b16 %v1864
      %v1899 = vunpack.c.h.b16 %v1864
      %v1900 = vunpack.c.l.b16 %v1865
      %v1901 = vunpack.c.h.b16 %v1865
      %v1902 = vunpack.c.l.b16 %v1866
      %v1903 = vunpack.c.h.b16 %v1866
      %v1904 = vunpack.c.l.b16 %v1867
      %v1905 = vunpack.c.h.b16 %v1867
      %v1906 = vunpack.c.l.b16 %v1868
      %v1907 = vunpack.c.h.b16 %v1868
      %v1908 = vunpack.c.l.b16 %v1869
      %v1909 = vunpack.c.h.b16 %v1869
      %v1910 = vunpack.c.l.b16 %v1870
      %v1911 = vunpack.c.h.b16 %v1870
      %v1912 = vunpack.c.l.b16 %v1871
      %v1913 = vunpack.c.h.b16 %v1871
      %v1914 = vunpack.c.l.b16 %v1872
      %v1915 = vunpack.c.h.b16 %v1872
      %v1916 = vunpack.c.l.b16 %v1873
      %v1917 = vunpack.c.h.b16 %v1873
      %v1918 = vunpack.c.l.b16 %v1874
      %v1919 = vunpack.c.h.b16 %v1874
      %v1920 = vunpack.c.l.b16 %v1875
      %v1921 = vunpack.c.h.b16 %v1875
      %v1922 = vunpack.c.l.b16 %v1876
      %v1923 = vunpack.c.h.b16 %v1876
      %v1924 = vunpack.c.l.b16 %v1877
      %v1925 = vunpack.c.h.b16 %v1877
      %v1926 = vpack.c.b16 %v1896, %v1894
      %v1927 = vpack.c.b16 %v1897, %v1895
      %v1928 = vpack.c.b16 %v1900, %v1898
      %v1929 = vpack.c.b16 %v1901, %v1899
      %v1930 = vpack.c.b16 %v1904, %v1902
      %v1931 = vpack.c.b16 %v1905, %v1903
      %v1932 = vpack.c.b16 %v1908, %v1906
      %v1933 = vpack.c.b16 %v1909, %v1907
      %v1934 = vpack.c.b16 %v1912, %v1910
      %v1935 = vpack.c.b16 %v1913, %v1911
      %v1936 = vpack.c.b16 %v1916, %v1914
      %v1937 = vpack.c.b16 %v1917, %v1915
      %v1938 = vpack.c.b16 %v1920, %v1918
      %v1939 = vpack.c.b16 %v1921, %v1919
      %v1940 = vpack.c.b16 %v1924, %v1922
      %v1941 = vpack.c.b16 %v1925, %v1923
      %1958 = vmatprep.subr.bf16.mxu0 %v1941
      %1959 = vmatpush1.bf16.msra.mxu0 %v1940
      %1960 = vmatprep.subr.bf16.mxu0 %v1939
      %1961 = vmatpush1.bf16.msra.mxu0 %v1938
      %1962 = vmatprep.subr.bf16.mxu0 %v1937
      %1963 = vmatpush1.bf16.msra.mxu0 %v1936
      %1964 = vmatprep.subr.bf16.mxu0 %v1935
      %1965 = vmatpush1.bf16.msra.mxu0 %v1934
      %1966 = vmatprep.subr.bf16.mxu0 %v1933
      %1967 = vmatpush1.bf16.msra.mxu0 %v1932
      %1968 = vmatprep.subr.bf16.mxu0 %v1931
      %1969 = vmatpush1.bf16.msra.mxu0 %v1930
      %1970 = vmatprep.subr.bf16.mxu0 %v1929
      %1971 = vmatpush1.bf16.msra.mxu0 %v1928
      %1972 = vmatprep.subr.bf16.mxu0 %v1927
      %1973 = vmatpush1.bf16.msra.mxu0 %v1926
      %1974 = vmatprep.subr.bf16.mxu0 0
      %1975 = vmatpush2.bf16.msra.mxu0 0
      %1976 = vmatprep.subr.bf16.mxu0 0
      %1977 = vmatpush2.bf16.msra.mxu0 0
      %1978 = vmatprep.subr.bf16.mxu0 0
      %1979 = vmatpush2.bf16.msra.mxu0 0
      %1980 = vmatprep.subr.bf16.mxu0 0
      %1981 = vmatpush2.bf16.msra.mxu0 0
      %1982 = vmatprep.subr.bf16.mxu0 0
      %1983 = vmatpush2.bf16.msra.mxu0 0
      %1984 = vmatprep.subr.bf16.mxu0 0
      %1985 = vmatpush2.bf16.msra.mxu0 0
      %1986 = vmatprep.subr.bf16.mxu0 0
      %1987 = vmatpush2.bf16.msra.mxu0 0
      %1988 = vmatprep.subr.bf16.mxu0 0
      %1989 = vmatpush2.bf16.msra.mxu0 0
      %1990 = vmatprep.mubr.bf16.mxu0 0
      %1991 = vmatmul.mubr.bf16.gmra.mxu0 %v1449
      %v1992 = vpop.f32.mrf.mxu0
      %v1993 = vadd.f32 0.0, %v1992
      %v1994 = vpop.f32.mrf.mxu0
      %v1995 = vadd.f32 0.0, %v1994
      %v1996 = vpop.f32.mrf.mxu0
      %v1997 = vadd.f32 0.0, %v1996
      %v1998 = vpop.f32.mrf.mxu0
      %v1999 = vadd.f32 0.0, %v1998
      %2000 = vdwg.mxu0
      %2002 = vset.pattern.permute.xlu0 0
      %2003 = vperm.xlu0 %2002, %v1618
      %v2004 = vpop.permute.xlu0 %2003
      %2007 = vset.pattern.permute.xlu0 0
      %2008 = vperm.xlu0 %2007, %v1619
      %v2009 = vpop.permute.xlu0 %2008
      %v2011 = vmul.f32 %v1993, %v2004
      %v2012 = vmul.f32 %v1995, %v2004
      %v2013 = vmul.f32 %v1997, %v2009
      %v2014 = vmul.f32 %v1999, %v2009
      %v2015 = vpack.c.bf16 %v2013, %v2011
      %v2016 = vpack.c.bf16 %v2014, %v2012
      %v2017 = vld [vmem:[#allocation6] sm:$0xff]
      %v2018 = vld [vmem:[#allocation6 + $0x8] sm:$0xff]
      %v2019 = vld [vmem:[#allocation6 + $0x10] sm:$0xff]
      %v2020 = vld [vmem:[#allocation6 + $0x18] sm:$0xff]
      %v2021 = vmul.f32 %v2017, %v1858
      %v2022 = vmul.f32 %v2018, %v1858
      %v2023 = vmul.f32 %v2019, %v1861
      %v2024 = vmul.f32 %v2020, %v1861
      %2025 = vxpose.xlu0.c.b16.start [1/8] %v1273, 128
      %2026 = vxpose.xlu0.c.b16.cont [2/8] 0, 128
      %2027 = vxpose.xlu0.c.b16.cont [3/8] 0, 128
      %2028 = vxpose.xlu0.c.b16.cont [4/8] 0, 128
      %2029 = vxpose.xlu0.c.b16.cont [5/8] 0, 128
      %2030 = vxpose.xlu0.c.b16.cont [6/8] 0, 128
      %2031 = vxpose.xlu0.c.b16.cont [7/8] 0, 128
      %2032 = vxpose.xlu0.c.b16.end [8/8] 0, 128
      %v2033 = vpop.trf.xlu0
      %v2034 = vpop.trf.xlu0
      %v2035 = vpop.trf.xlu0
      %v2036 = vpop.trf.xlu0
      %v2037 = vpop.trf.xlu0
      %v2038 = vpop.trf.xlu0
      %v2039 = vpop.trf.xlu0
      %v2040 = vpop.trf.xlu0
      %v2042 = vsel %vm1184, %v2033, 0
      %2044 = vmatprep.subr.bf16.mxu0 0
      %2045 = vmatpush1.bf16.msra.mxu0 0
      %2046 = vmatprep.subr.bf16.mxu0 0
      %2047 = vmatpush1.bf16.msra.mxu0 0
      %2048 = vmatprep.subr.bf16.mxu0 0
      %2049 = vmatpush1.bf16.msra.mxu0 0
      %2050 = vmatprep.subr.bf16.mxu0 0
      %2051 = vmatpush1.bf16.msra.mxu0 0
      %2052 = vmatprep.subr.bf16.mxu0 0
      %2053 = vmatpush1.bf16.msra.mxu0 0
      %2054 = vmatprep.subr.bf16.mxu0 0
      %2055 = vmatpush1.bf16.msra.mxu0 0
      %2056 = vmatprep.subr.bf16.mxu0 0
      %2057 = vmatpush1.bf16.msra.mxu0 0
      %2058 = vmatprep.subr.bf16.mxu0 %v2016
      %2059 = vmatpush1.bf16.msra.mxu0 %v2015
      %2060 = vmatprep.subr.bf16.mxu0 0
      %2061 = vmatpush2.bf16.msra.mxu0 0
      %2062 = vmatprep.subr.bf16.mxu0 0
      %2063 = vmatpush2.bf16.msra.mxu0 0
      %2064 = vmatprep.subr.bf16.mxu0 0
      %2065 = vmatpush2.bf16.msra.mxu0 0
      %2066 = vmatprep.subr.bf16.mxu0 0
      %2067 = vmatpush2.bf16.msra.mxu0 0
      %2068 = vmatprep.subr.bf16.mxu0 0
      %2069 = vmatpush2.bf16.msra.mxu0 0
      %2070 = vmatprep.subr.bf16.mxu0 0
      %2071 = vmatpush2.bf16.msra.mxu0 0
      %2072 = vmatprep.subr.bf16.mxu0 0
      %2073 = vmatpush2.bf16.msra.mxu0 0
      %2074 = vmatprep.subr.bf16.mxu0 0
      %2075 = vmatpush2.bf16.msra.mxu0 0
      %2076 = vmatprep.mubr.bf16.mxu0 0
      %2077 = vmatmul.mubr.bf16.gmra.mxu0 %v2042
      %v2078 = vpop.f32.mrf.mxu0
      %v2079 = vadd.f32 0.0, %v2078
      %v2080 = vpop.f32.mrf.mxu0
      %v2081 = vadd.f32 0.0, %v2080
      %v2082 = vpop.f32.mrf.mxu0
      %v2083 = vadd.f32 0.0, %v2082
      %v2084 = vpop.f32.mrf.mxu0
      %v2085 = vadd.f32 0.0, %v2084
      %2086 = vdwg.mxu0
      %v2087 = vadd.f32 %v2021, %v2079
      %v2088 = vadd.f32 %v2022, %v2081
      %v2089 = vadd.f32 %v2023, %v2083
      %v2090 = vadd.f32 %v2024, %v2085
      %2091 = vst [vmem:[#allocation6] sm:$0xff] %v2087
      %2092 = vst [vmem:[#allocation6 + $0x8] sm:$0xff] %v2088
      %2093 = vst [vmem:[#allocation6 + $0x10] sm:$0xff] %v2089
      %2094 = vst [vmem:[#allocation6 + $0x18] sm:$0xff] %v2090
      %2095 = vst.msk [vmem:[#allocation3] sm:$0x1] %vm1728, %v1592
      %p2096 = scmp.eq.s32.totalorder %s26, 1
      // Predicated region
      $region85: #{lex3d_forward.5} parent=79 // pred_check
        %p2097 = pneg %p2096
      $region86: #{lex3d_forward.5} parent=79 // pred_check_branch
        %2099 = sbr.rel (%p2097) target = $region88
      $region87: #{lex3d_forward.5} parent=79 // pred_region
        %v2100 = vld [vmem:[#allocation5] sm:$0x1]
        %v2101 = vld [vmem:[#allocation4] sm:$0x1]
        %v2102 = vadd.f32 %v2101, 1e-16
        %v2103 = vmul.f32 %v2102, 1e-05
        %v2104 = vadd.f32 %v2100, %v2103
        %v2106 = vlaneseq
        %v2107 = vshrl.u32 %v2106, 7
        %v2108 = vsub.s32 0, %v2107
        %v2109 = vrot.slane %v2104, %v2108
        %v2111 = vmul.f32 %v1846, %v2109
        %v2112 = vmul.f32 %v1847, %v2109
        %v2113 = vsel %vm1184, %v2111, 0.0
        %2114 = vadd.xlane.f32.xlu0 %v2113
        %v2115 = vpop.xlane.xlu0 %2114
        %v2116 = vsel %vm1184, %v2112, 0.0
        %2117 = vadd.xlane.f32.xlu0 %v2116
        %v2118 = vpop.xlane.xlu0 %2117
        %v2119 = vld [vmem:[#allocation6] sm:$0xff]
        %v2120 = vld [vmem:[#allocation6 + $0x8] sm:$0xff]
        %v2121 = vld [vmem:[#allocation6 + $0x10] sm:$0xff]
        %v2122 = vld [vmem:[#allocation6 + $0x18] sm:$0xff]
        %v2123 = vrcp.pop %v2115
        %v2124 = vrcp.pop %v2118
        %v2125 = vmul.f32 %v2119, %v2123
        %v2126 = vmul.f32 %v2120, %v2123
        %v2127 = vmul.f32 %v2121, %v2124
        %v2128 = vmul.f32 %v2122, %v2124
        %v2129 = vld [vmem:[%s0] sm:$0xff]
        %v2130 = vld [vmem:[%s0 + $0x8] sm:$0xff]
        %v2131 = vld [vmem:[%s0 + $0x10] sm:$0xff]
        %v2132 = vld [vmem:[%s0 + $0x18] sm:$0xff]
        %v2133 = vadd.f32 %v2129, %v2125
        %v2134 = vadd.f32 %v2130, %v2126
        %v2135 = vadd.f32 %v2131, %v2127
        %v2136 = vadd.f32 %v2132, %v2128
        %v2137 = vld [vmem:[%s8] sm:$0x3]
        %v2139 = vlaneseq
        %v2140 = vshrl.u32 %v2139, 7
        %v2141 = vsub.s32 0, %v2140
        %v2142 = vrot.slane %v2137, %v2141
        %v2143 = vlaneseq
        %v2144 = vshrl.u32 %v2143, 7
        %v2145 = vsub.s32 1, %v2144
        %v2146 = vrot.slane %v2137, %v2145
        %v2149 = vadd.f32 %v2133, %v2142
        %v2150 = vadd.f32 %v2134, %v2146
        %v2151 = vadd.f32 %v2135, %v2142
        %v2152 = vadd.f32 %v2136, %v2146
        %vm2153 = vcmp.gt.f32.partialorder %v2149, 0.0
        %vm2154 = vcmp.gt.f32.partialorder %v2150, 0.0
        %vm2155 = vcmp.gt.f32.partialorder %v2151, 0.0
        %vm2156 = vcmp.gt.f32.partialorder %v2152, 0.0
        %v2157 = vmin.f32 %v2149, 0.0
        %v2158 = vmin.f32 %v2150, 0.0
        %v2159 = vmin.f32 %v2151, 0.0
        %v2160 = vmin.f32 %v2152, 0.0
        %v2161 = vmul.f32 %v2157, 1.442695
        %v2162 = vpow.pop %v2161
        %v2163 = vmul.f32 %v2158, 1.442695
        %v2164 = vpow.pop %v2163
        %v2165 = vmul.f32 %v2159, 1.442695
        %v2166 = vpow.pop %v2165
        %v2167 = vmul.f32 %v2160, 1.442695
        %v2168 = vpow.pop %v2167
        %v2169 = vsub.f32 %v2162, 1.0
        %v2170 = vsub.f32 %v2164, 1.0
        %v2171 = vsub.f32 %v2166, 1.0
        %v2172 = vsub.f32 %v2168, 1.0
        %v2173 = vsel %vm2153, %v2149, %v2169
        %v2174 = vsel %vm2154, %v2150, %v2170
        %v2175 = vsel %vm2155, %v2151, %v2171
        %v2176 = vsel %vm2156, %v2152, %v2172
        %2177 = vst [vmem:[%s15] sm:$0xff] %v2173
        %2178 = vst [vmem:[%s15 + $0x8] sm:$0xff] %v2174
        %2179 = vst [vmem:[%s15 + $0x10] sm:$0xff] %v2175
        %2180 = vst [vmem:[%s15 + $0x18] sm:$0xff] %v2176
      $region88: #{lex3d_forward.5} parent=79 // pred_fallthru
        _
      // Predicated region
      $region89: #{lex3d_forward.5} parent=79 // pred_check
        %p2181 = pneg %p384
      $region90: #{lex3d_forward.5} parent=79 // pred_check_branch
        %2183 = sbr.rel (%p2181) target = $region92
      $region91: #{lex3d_forward.5} parent=79 // pred_region
        _
      $region92: #{lex3d_forward.5} parent=79 // pred_fallthru
        _
      // Predicated region
      $region93: #{lex3d_forward.5} parent=79 // pred_check
        %p2184 = pneg %p384
      $region94: #{lex3d_forward.5} parent=79 // pred_check_branch
        %2186 = sbr.rel (%p2184) target = $region96
      $region95: #{lex3d_forward.5} parent=79 // pred_region
        _
      $region96: #{lex3d_forward.5} parent=79 // pred_fallthru
        _
    $region80: #{lex3d_forward.5} parent=5 // pred_fallthru
      _
    %p2187 = scmp.le.s32.totalorder 2, %s21
    // Predicated region
    $region97: #{lex3d_forward.5} parent=5 // pred_check
      %p2188 = pneg %p2187
    $region98: #{lex3d_forward.5} parent=5 // pred_check_branch
      %2190 = sbr.rel (%p2188) target = $region100
    $region99: #{lex3d_forward.5} parent=5 // pred_region
      %s2191 = ssub.s32 %s21, 2
    $region100: #{lex3d_forward.5} parent=5 // pred_fallthru
      _
  $region6: #{lex3d_forward.5} parent=0 // loop_footer
    %s25 = sadd.s32 1, %s21
  $region7: #{lex3d_forward.5} parent=0 // loop_footer_branch
    %20 = sbr.rel target = $region3
  $region8: #{lex3d_forward.5} parent=0 // loop_exit
    _

</llo_original>
